<compile_context>
chip_gen: v7x
topology: tpu7x:2x2x1
jax: 0.10.0
libtpu: 0.0.40
codegen_flags: <defaults>
</compile_context>

<pallas_src>
import math
import numpy as np
import jax
import jax.numpy as jnp
from jax.experimental import pallas as pl
from jax.experimental.pallas import tpu as pltpu


# ----------------------------- in-kernel helpers (VMEM values) -----------------------------

def _layernorm(x, w, b, eps=1e-5):
    mean = jnp.mean(x, axis=-1, keepdims=True)
    var = jnp.mean(jnp.square(x - mean), axis=-1, keepdims=True)   # biased var (PyTorch LN)
    return (x - mean) * jax.lax.rsqrt(var + eps) * w + b


def _proj(x_f32, w_bf16, b_f32):
    # bf16 MXU matmul, f32 accumulation, f32 bias epilogue.
    return jnp.dot(x_f32.astype(jnp.bfloat16), w_bf16,
                   preferred_element_type=jnp.float32) + b_f32


def _mha(q, k, v, wo_heads, bo, n_head):
    """q: (Sq, D) already scaled by 1/sqrt(hd); k, v: (Sk, D); wo_heads: (n_head, hd, D) bf16.
    Per-head attention output is accumulated directly through the matching slice of the
    output projection -> no lane-axis concatenate."""
    Sq, D = q.shape
    hd = D // n_head
    acc = jnp.zeros((Sq, D), jnp.float32)
    for h in range(n_head):                      # static unroll (n_head is tiny)
        lo = h * hd
        qh = q[:, lo:lo + hd].astype(jnp.bfloat16)
        kh = k[:, lo:lo + hd].astype(jnp.bfloat16)
        vh = v[:, lo:lo + hd].astype(jnp.bfloat16)
        # q @ k^T via dot_general with rhs-contracted dim (no explicit transpose)
        s = jax.lax.dot_general(qh, kh, (((1,), (1,)), ((), ())),
                                preferred_element_type=jnp.float32)
        s = s - jnp.max(s, axis=-1, keepdims=True)
        p = jnp.exp(s)
        p = p * pl.reciprocal(jnp.sum(p, axis=-1, keepdims=True), approx=False)
        oh = jnp.dot(p.astype(jnp.bfloat16), vh, preferred_element_type=jnp.float32)
        acc = acc + jnp.dot(oh.astype(jnp.bfloat16), wo_heads[h],
                            preferred_element_type=jnp.float32)
    return acc + bo


# ----------------------------- fully fused layer kernel -----------------------------

def _make_layer_kernel(n_head, d_model, scale):
    D = d_model

    def kernel(x_ref, cond_ref, pe_ref, cpe_ref,
               ln1w, ln1b, ln2w, ln2b, ln3w, ln3b,
               s_wqk, s_bqk, s_wv, s_bv, s_wo, s_bo,
               c_wq, c_bq, c_wk, c_bk, c_wv, c_bv, c_wo, c_bo,
               f_w1, f_b1, f_w2, f_b2,
               o_ref):
        x = x_ref[0]                                   # (S, D)  f32, VMEM-resident all stages
        cond = cond_ref[0]                             # (Sk, Dk)
        pe = pe_ref[...]
        cpe = cpe_ref[...]

        # ---- stage 1: LN1 + self-attention + residual ----
        nx = _layernorm(x, ln1w[...], ln1b[...])
        qk_in = nx + pe                                # computed once, reused for Q and K
        qk = _proj(qk_in, s_wqk[...], s_bqk[...])      # fused Q|K projection, (S, 2D)
        q = qk[:, :D] * scale                          # scale folded into q once
        k = qk[:, D:]
        v = _proj(nx, s_wv[...], s_bv[...])            # value takes no positional encoding
        x = x + _mha(q, k, v, s_wo[...], s_bo[...], n_head)   # dropout1 = identity (eval)

        # ---- stage 2: LN2 + cross-attention + residual ----
        nx = _layernorm(x, ln2w[...], ln2b[...])
        q = _proj(nx + pe, c_wq[...], c_bq[...]) * scale
        k = _proj(cond + cpe, c_wk[...], c_bk[...])
        v = _proj(cond, c_wv[...], c_bv[...])
        x = x + _mha(q, k, v, c_wo[...], c_bo[...], n_head)   # dropout2 = identity (eval)

        # ---- stage 3: LN3 + FFN + residual (dim_ff hidden never touches HBM) ----
        nx = _layernorm(x, ln3w[...], ln3b[...])
        h = jnp.maximum(_proj(nx, f_w1[...], f_b1[...]), 0.0)  # relu; ffnn_dropout = identity
        x = x + _proj(h, f_w2[...], f_b2[...])                 # dropout3 = identity (eval)

        o_ref[0] = x

    return kernel


# ----------------------------- pallas_call wrapper -----------------------------

def _const_spec(shape):
    """Whole-array block with a constant index_map: DMA'd once, not per grid step."""
    nd = len(shape)
    return pl.BlockSpec(shape, lambda *_: (0,) * nd)


def transformer_layer_forward(x, cond, params, n_head):
    """x: [B, S, D], cond: [B, Sk, Dk].  Dropout layers are identity (eval mode)."""
    B, S, D = x.shape
    _, Sk, Dk = cond.shape
    F = params["ffn_w1"].shape[1]
    scale = 1.0 / math.sqrt(D // n_head)

    row = pl.BlockSpec((1, S, D), lambda b: (b, 0, 0))
    kv_row = pl.BlockSpec((1, Sk, Dk), lambda b: (b, 0, 0))

    p = params
    m, c = p["mha"], p["cond_mha"]

    # Advisory cost estimate for XLA's scheduler.
    flops = 2 * B * (S * D * (2 * D) + S * D * D            # self: fused QK proj + V proj
                     + 2 * S * S * D + S * D * D            # self: scores+PV + out proj
                     + S * D * D + 2 * Sk * Dk * D          # cross: Q, K, V proj
                     + 2 * S * Sk * D + S * D * D           # cross: scores+PV + out proj
                     + 2 * S * D * F)                       # FFN
    transcendentals = B * n_head * S * (S + Sk) + 3 * B * S
    bytes_accessed = 4 * (2 * B * S * D + B * Sk * Dk) + sum(
        int(np.prod(v.shape)) * v.dtype.itemsize
        for v in jax.tree_util.tree_leaves(params))

    kernel = _make_layer_kernel(n_head, D, scale)
    return pl.pallas_call(
        kernel,
        out_shape=jax.ShapeDtypeStruct((B, S, D), jnp.float32),
        grid=(B,),
        in_specs=[row, kv_row,
                  _const_spec((S, D)), _const_spec((Sk, Dk)),
                  _const_spec((1, D)), _const_spec((1, D)),
                  _const_spec((1, D)), _const_spec((1, D)),
                  _const_spec((1, D)), _const_spec((1, D)),
                  _const_spec(m["wqk"].shape), _const_spec(m["bqk"].shape),
                  _const_spec(m["wv"].shape), _const_spec(m["bv"].shape),
                  _const_spec(m["wo"].shape), _const_spec(m["bo"].shape),
                  _const_spec(c["wq"].shape), _const_spec(c["bq"].shape),
                  _const_spec(c["wk"].shape), _const_spec(c["bk"].shape),
                  _const_spec(c["wv"].shape), _const_spec(c["bv"].shape),
                  _const_spec(c["wo"].shape), _const_spec(c["bo"].shape),
                  _const_spec(p["ffn_w1"].shape), _const_spec(p["ffn_b1"].shape),
                  _const_spec(p["ffn_w2"].shape), _const_spec(p["ffn_b2"].shape)],
        out_specs=row,
        compiler_params=pltpu.CompilerParams(
            dimension_semantics=("parallel",),
            vmem_limit_bytes=32 * 1024 * 1024),
        cost_estimate=pl.CostEstimate(flops=flops,
                                      transcendentals=transcendentals,
                                      bytes_accessed=bytes_accessed),
    )(x, cond, p["pe"], p["cond_pe"],
      p["norm1_w"], p["norm1_b"], p["norm2_w"], p["norm2_b"],
      p["norm3_w"], p["norm3_b"],
      m["wqk"], m["bqk"], m["wv"], m["bv"], m["wo"], m["bo"],
      c["wq"], c["bq"], c["wk"], c["bk"], c["wv"], c["bv"], c["wo"], c["bo"],
      p["ffn_w1"], p["ffn_b1"], p["ffn_w2"], p["ffn_b2"])


# ----------------------------- model glue -----------------------------

def positional_encoding_sine(n_pos, d_model, max_n_pos, normalize=True, scale=None):
    """Standard 1D sine positional encoding, shape (n_pos, d_model)."""
    if scale is None:
        scale = 2 * math.pi
    pos = np.arange(n_pos, dtype=np.float32)
    if normalize:
        eps = 1e-6
        pos = pos / (pos[-1] + eps) * scale
    dim_t = 10000.0 ** (2.0 * (np.arange(d_model) // 2) / d_model)
    ang = pos[:, None] / dim_t[None, :]
    pe = np.zeros((n_pos, d_model), dtype=np.float32)
    pe[:, 0::2] = np.sin(ang[:, 0::2])
    pe[:, 1::2] = np.cos(ang[:, 1::2])
    return jnp.asarray(pe)


def init_params(key, d_model, n_token, n_head, dim_ff, cond_d_model, cond_n_token):
    ks = jax.random.split(key, 9)
    hd = d_model // n_head
    rnd = lambda k, shape, s=0.05: jax.random.normal(k, shape, jnp.float32) * s
    # Matmul weights stored bf16 (MXU-native, halves weight DMA; documented precision
    # deviation from an all-f32 PyTorch layer). Biases / LN params / PE stay f32.
    w_bf16 = lambda k, shape: rnd(k, shape).astype(jnp.bfloat16)
    bias = lambda n: jnp.zeros((1, n), jnp.float32)
    ones = lambda n: jnp.ones((1, n), jnp.float32)
    zeros = lambda n: jnp.zeros((1, n), jnp.float32)

    # Self-attn: Q and K share the (LN1(x) + pe) input -> concatenate their projections.
    # Output projections are pre-reshaped to (n_head, hd, d_model) for concat-free MHA.
    self_mha = {
        "wqk": w_bf16(ks[0], (d_model, 2 * d_model)), "bqk": bias(2 * d_model),
        "wv": w_bf16(ks[1], (d_model, d_model)),      "bv": bias(d_model),
        "wo": w_bf16(ks[2], (d_model, d_model)).reshape(n_head, hd, d_model),
        "bo": bias(d_model),
    }
    cond_mha = {
        "wq": w_bf16(ks[3], (d_model, d_model)),      "bq": bias(d_model),
        "wk": w_bf16(ks[4], (cond_d_model, d_model)), "bk": bias(d_model),
        "wv": w_bf16(ks[5], (cond_d_model, d_model)), "bv": bias(d_model),
        "wo": w_bf16(ks[6], (d_model, d_model)).reshape(n_head, hd, d_model),
        "bo": bias(d_model),
    }
    return {
        "pe": positional_encoding_sine(n_token, d_model, n_token, normalize=True),
        "cond_pe": positional_encoding_sine(cond_n_token, cond_d_model, cond_n_token,
                                            normalize=True),
        "mha": self_mha,
        "cond_mha": cond_mha,
        "ffn_w1": w_bf16(ks[7], (d_model, dim_ff)), "ffn_b1": bias(dim_ff),
        "ffn_w2": w_bf16(ks[8], (dim_ff, d_model)), "ffn_b2": bias(d_model),
        "norm1_w": ones(d_model), "norm1_b": zeros(d_model),
        "norm2_w": ones(d_model), "norm2_b": zeros(d_model),
        "norm3_w": ones(d_model), "norm3_b": zeros(d_model),
    }


if __name__ == "__main__":
    # small config consistent with the module
    B = 2
    d_model, n_token, n_head, dim_ff = 32, 8, 4, 64
    cond_d_model, cond_n_token = 16, 8

    key = jax.random.PRNGKey(0)
    k_in, k_cond, k_p = jax.random.split(key, 3)
    x = jax.random.normal(k_in, (B, n_token, d_model), jnp.float32)
    cond = jax.random.normal(k_cond, (B, cond_n_token, cond_d_model), jnp.float32)
    params = init_params(k_p, d_model, n_token, n_head, dim_ff, cond_d_model, cond_n_token)

    # TODO(synk): dropout layers (dropout1/2/3, ffnn_dropout) are identity here (eval mode).
    fwd = jax.jit(lambda x_, c_, p_: transformer_layer_forward(x_, c_, p_, n_head))
    out = jax.block_until_ready(fwd(x, cond, params))
    assert out.shape == (B, n_token, d_model) and bool(jnp.all(jnp.isfinite(out)))
    print("KERNEL_OK")
</pallas_src>

<mosaic_0001>
module attributes {stable_mosaic.version = 11 : i64} {
  func.func @kernel(%arg0: i32, %arg1: memref<1x8x32xf32, #tpu.memory_space<vmem>>, %arg2: memref<1x8x16xf32, #tpu.memory_space<vmem>>, %arg3: memref<8x32xf32, #tpu.memory_space<vmem>>, %arg4: memref<8x16xf32, #tpu.memory_space<vmem>>, %arg5: memref<1x32xf32, #tpu.memory_space<vmem>>, %arg6: memref<1x32xf32, #tpu.memory_space<vmem>>, %arg7: memref<1x32xf32, #tpu.memory_space<vmem>>, %arg8: memref<1x32xf32, #tpu.memory_space<vmem>>, %arg9: memref<1x32xf32, #tpu.memory_space<vmem>>, %arg10: memref<1x32xf32, #tpu.memory_space<vmem>>, %arg11: memref<32x64xbf16, #tpu.memory_space<vmem>>, %arg12: memref<1x64xf32, #tpu.memory_space<vmem>>, %arg13: memref<32x32xbf16, #tpu.memory_space<vmem>>, %arg14: memref<1x32xf32, #tpu.memory_space<vmem>>, %arg15: memref<4x8x32xbf16, #tpu.memory_space<vmem>>, %arg16: memref<1x32xf32, #tpu.memory_space<vmem>>, %arg17: memref<32x32xbf16, #tpu.memory_space<vmem>>, %arg18: memref<1x32xf32, #tpu.memory_space<vmem>>, %arg19: memref<16x32xbf16, #tpu.memory_space<vmem>>, %arg20: memref<1x32xf32, #tpu.memory_space<vmem>>, %arg21: memref<16x32xbf16, #tpu.memory_space<vmem>>, %arg22: memref<1x32xf32, #tpu.memory_space<vmem>>, %arg23: memref<4x8x32xbf16, #tpu.memory_space<vmem>>, %arg24: memref<1x32xf32, #tpu.memory_space<vmem>>, %arg25: memref<32x64xbf16, #tpu.memory_space<vmem>>, %arg26: memref<1x64xf32, #tpu.memory_space<vmem>>, %arg27: memref<64x32xbf16, #tpu.memory_space<vmem>>, %arg28: memref<1x32xf32, #tpu.memory_space<vmem>>, %arg29: memref<1x8x32xf32, #tpu.memory_space<vmem>>) attributes {dimension_semantics = [#tpu.dimension_semantics<parallel>], iteration_bounds = array<i64: 2>, scalar_prefetch = 0 : i64, scratch_operands = 0 : i64, tpu.core_type = #tpu.core_type<tc>, window_params = [{transform_indices = @transform_0, window_bounds = array<i64: 1, 8, 32>}, {transform_indices = @transform_1, window_bounds = array<i64: 1, 8, 16>}, {pipeline_mode = #tpu.pipeline_mode<synchronous>, transform_indices = @transform_2, window_bounds = array<i64: 8, 32>}, {pipeline_mode = #tpu.pipeline_mode<synchronous>, transform_indices = @transform_3, window_bounds = array<i64: 8, 16>}, {pipeline_mode = #tpu.pipeline_mode<synchronous>, transform_indices = @transform_4, window_bounds = array<i64: 1, 32>}, {pipeline_mode = #tpu.pipeline_mode<synchronous>, transform_indices = @transform_5, window_bounds = array<i64: 1, 32>}, {pipeline_mode = #tpu.pipeline_mode<synchronous>, transform_indices = @transform_6, window_bounds = array<i64: 1, 32>}, {pipeline_mode = #tpu.pipeline_mode<synchronous>, transform_indices = @transform_7, window_bounds = array<i64: 1, 32>}, {pipeline_mode = #tpu.pipeline_mode<synchronous>, transform_indices = @transform_8, window_bounds = array<i64: 1, 32>}, {pipeline_mode = #tpu.pipeline_mode<synchronous>, transform_indices = @transform_9, window_bounds = array<i64: 1, 32>}, {pipeline_mode = #tpu.pipeline_mode<synchronous>, transform_indices = @transform_10, window_bounds = array<i64: 32, 64>}, {pipeline_mode = #tpu.pipeline_mode<synchronous>, transform_indices = @transform_11, window_bounds = array<i64: 1, 64>}, {pipeline_mode = #tpu.pipeline_mode<synchronous>, transform_indices = @transform_12, window_bounds = array<i64: 32, 32>}, {pipeline_mode = #tpu.pipeline_mode<synchronous>, transform_indices = @transform_13, window_bounds = array<i64: 1, 32>}, {pipeline_mode = #tpu.pipeline_mode<synchronous>, transform_indices = @transform_14, window_bounds = array<i64: 4, 8, 32>}, {pipeline_mode = #tpu.pipeline_mode<synchronous>, transform_indices = @transform_15, window_bounds = array<i64: 1, 32>}, {pipeline_mode = #tpu.pipeline_mode<synchronous>, transform_indices = @transform_16, window_bounds = array<i64: 32, 32>}, {pipeline_mode = #tpu.pipeline_mode<synchronous>, transform_indices = @transform_17, window_bounds = array<i64: 1, 32>}, {pipeline_mode = #tpu.pipeline_mode<synchronous>, transform_indices = @transform_18, window_bounds = array<i64: 16, 32>}, {pipeline_mode = #tpu.pipeline_mode<synchronous>, transform_indices = @transform_19, window_bounds = array<i64: 1, 32>}, {pipeline_mode = #tpu.pipeline_mode<synchronous>, transform_indices = @transform_20, window_bounds = array<i64: 16, 32>}, {pipeline_mode = #tpu.pipeline_mode<synchronous>, transform_indices = @transform_21, window_bounds = array<i64: 1, 32>}, {pipeline_mode = #tpu.pipeline_mode<synchronous>, transform_indices = @transform_22, window_bounds = array<i64: 4, 8, 32>}, {pipeline_mode = #tpu.pipeline_mode<synchronous>, transform_indices = @transform_23, window_bounds = array<i64: 1, 32>}, {pipeline_mode = #tpu.pipeline_mode<synchronous>, transform_indices = @transform_24, window_bounds = array<i64: 32, 64>}, {pipeline_mode = #tpu.pipeline_mode<synchronous>, transform_indices = @transform_25, window_bounds = array<i64: 1, 64>}, {pipeline_mode = #tpu.pipeline_mode<synchronous>, transform_indices = @transform_26, window_bounds = array<i64: 64, 32>}, {pipeline_mode = #tpu.pipeline_mode<synchronous>, transform_indices = @transform_27, window_bounds = array<i64: 1, 32>}, {transform_indices = @transform_28, window_bounds = array<i64: 1, 8, 32>}]} {
    %c0 = arith.constant 0 : index
    %c0_0 = arith.constant 0 : index
    %c0_1 = arith.constant 0 : index
    %0 = vector.load %arg1[%c0, %c0_0, %c0_1] : memref<1x8x32xf32, #tpu.memory_space<vmem>>, vector<1x8x32xf32>
    %1 = vector.shape_cast %0 : vector<1x8x32xf32> to vector<8x32xf32>
    %c0_2 = arith.constant 0 : index
    %c0_3 = arith.constant 0 : index
    %c0_4 = arith.constant 0 : index
    %2 = vector.load %arg2[%c0_2, %c0_3, %c0_4] : memref<1x8x16xf32, #tpu.memory_space<vmem>>, vector<1x8x16xf32>
    %3 = vector.shape_cast %2 : vector<1x8x16xf32> to vector<8x16xf32>
    %c0_5 = arith.constant 0 : index
    %c0_6 = arith.constant 0 : index
    %4 = vector.load %arg3[%c0_5, %c0_6] : memref<8x32xf32, #tpu.memory_space<vmem>>, vector<8x32xf32>
    %c0_7 = arith.constant 0 : index
    %c0_8 = arith.constant 0 : index
    %5 = vector.load %arg4[%c0_7, %c0_8] : memref<8x16xf32, #tpu.memory_space<vmem>>, vector<8x16xf32>
    %c0_9 = arith.constant 0 : index
    %c0_10 = arith.constant 0 : index
    %6 = vector.load %arg5[%c0_9, %c0_10] : memref<1x32xf32, #tpu.memory_space<vmem>>, vector<1x32xf32>
    %c0_11 = arith.constant 0 : index
    %c0_12 = arith.constant 0 : index
    %7 = vector.load %arg6[%c0_11, %c0_12] : memref<1x32xf32, #tpu.memory_space<vmem>>, vector<1x32xf32>
    %cst = arith.constant dense<0.000000e+00> : vector<8xf32>
    %8 = vector.multi_reduction <add>, %1, %cst [1] : vector<8x32xf32> to vector<8xf32>
    %9 = vector.shape_cast %8 : vector<8xf32> to vector<8x1xf32>
    %cst_13 = arith.constant 3.200000e+01 : f32
    %10 = vector.broadcast %cst_13 : f32 to vector<8x1xf32>
    %11 = arith.divf %9, %10 : vector<8x1xf32>
    %12 = vector.broadcast %11 : vector<8x1xf32> to vector<8x32xf32>
    %13 = arith.subf %1, %12 : vector<8x32xf32>
    %14 = arith.mulf %13, %13 : vector<8x32xf32>
    %cst_14 = arith.constant dense<0.000000e+00> : vector<8xf32>
    %15 = vector.multi_reduction <add>, %14, %cst_14 [1] : vector<8x32xf32> to vector<8xf32>
    %16 = vector.shape_cast %15 : vector<8xf32> to vector<8x1xf32>
    %cst_15 = arith.constant 3.200000e+01 : f32
    %17 = vector.broadcast %cst_15 : f32 to vector<8x1xf32>
    %18 = arith.divf %16, %17 : vector<8x1xf32>
    %19 = vector.broadcast %11 : vector<8x1xf32> to vector<8x32xf32>
    %20 = arith.subf %1, %19 : vector<8x32xf32>
    %cst_16 = arith.constant 9.99999974E-6 : f32
    %21 = vector.broadcast %cst_16 : f32 to vector<8x1xf32>
    %22 = arith.addf %18, %21 : vector<8x1xf32>
    %23 = math.rsqrt %22 : vector<8x1xf32>
    %24 = vector.broadcast %23 : vector<8x1xf32> to vector<8x32xf32>
    %25 = arith.mulf %20, %24 : vector<8x32xf32>
    %26 = vector.broadcast %6 : vector<1x32xf32> to vector<8x32xf32>
    %27 = arith.mulf %25, %26 : vector<8x32xf32>
    %28 = vector.broadcast %7 : vector<1x32xf32> to vector<8x32xf32>
    %29 = arith.addf %27, %28 : vector<8x32xf32>
    %30 = arith.addf %29, %4 : vector<8x32xf32>
    %c0_17 = arith.constant 0 : index
    %c0_18 = arith.constant 0 : index
    %31 = vector.load %arg11[%c0_17, %c0_18] : memref<32x64xbf16, #tpu.memory_space<vmem>>, vector<32x64xbf16>
    %c0_19 = arith.constant 0 : index
    %c0_20 = arith.constant 0 : index
    %32 = vector.load %arg12[%c0_19, %c0_20] : memref<1x64xf32, #tpu.memory_space<vmem>>, vector<1x64xf32>
    %33 = arith.truncf %30 : vector<8x32xf32> to vector<8x32xbf16>
    %cst_21 = arith.constant dense<0.000000e+00> : vector<8x64xf32>
    %34 = tpu.matmul %33, %31, %cst_21 {dimension_numbers = #tpu.dot_dimension_numbers<[1], [0], [0], [1], [0, 0, 1, 1], [], []>} : vector<8x32xbf16>, vector<32x64xbf16>, vector<8x64xf32> -> vector<8x64xf32>
    %35 = vector.broadcast %32 : vector<1x64xf32> to vector<8x64xf32>
    %36 = arith.addf %34, %35 : vector<8x64xf32>
    %37 = vector.extract_strided_slice %36 {offsets = [0, 0], sizes = [8, 32], strides = [1, 1]} : vector<8x64xf32> to vector<8x32xf32>
    %cst_22 = arith.constant 0.353553385 : f32
    %38 = vector.broadcast %cst_22 : f32 to vector<8x32xf32>
    %39 = arith.mulf %37, %38 : vector<8x32xf32>
    %40 = vector.extract_strided_slice %36 {offsets = [0, 32], sizes = [8, 32], strides = [1, 1]} : vector<8x64xf32> to vector<8x32xf32>
    %c0_23 = arith.constant 0 : index
    %c0_24 = arith.constant 0 : index
    %41 = vector.load %arg13[%c0_23, %c0_24] : memref<32x32xbf16, #tpu.memory_space<vmem>>, vector<32x32xbf16>
    %c0_25 = arith.constant 0 : index
    %c0_26 = arith.constant 0 : index
    %42 = vector.load %arg14[%c0_25, %c0_26] : memref<1x32xf32, #tpu.memory_space<vmem>>, vector<1x32xf32>
    %43 = arith.truncf %29 : vector<8x32xf32> to vector<8x32xbf16>
    %cst_27 = arith.constant dense<0.000000e+00> : vector<8x32xf32>
    %44 = tpu.matmul %43, %41, %cst_27 {dimension_numbers = #tpu.dot_dimension_numbers<[1], [0], [0], [1], [0, 0, 1, 1], [], []>} : vector<8x32xbf16>, vector<32x32xbf16>, vector<8x32xf32> -> vector<8x32xf32>
    %45 = vector.broadcast %42 : vector<1x32xf32> to vector<8x32xf32>
    %46 = arith.addf %44, %45 : vector<8x32xf32>
    %c0_28 = arith.constant 0 : index
    %c0_29 = arith.constant 0 : index
    %c0_30 = arith.constant 0 : index
    %47 = vector.load %arg15[%c0_28, %c0_29, %c0_30] : memref<4x8x32xbf16, #tpu.memory_space<vmem>>, vector<4x8x32xbf16>
    %c0_31 = arith.constant 0 : index
    %c0_32 = arith.constant 0 : index
    %48 = vector.load %arg16[%c0_31, %c0_32] : memref<1x32xf32, #tpu.memory_space<vmem>>, vector<1x32xf32>
    %cst_33 = arith.constant 0.000000e+00 : f32
    %49 = vector.broadcast %cst_33 : f32 to vector<8x32xf32>
    %50 = vector.extract_strided_slice %39 {offsets = [0, 0], sizes = [8, 8], strides = [1, 1]} : vector<8x32xf32> to vector<8x8xf32>
    %51 = arith.truncf %50 : vector<8x8xf32> to vector<8x8xbf16>
    %52 = vector.extract_strided_slice %40 {offsets = [0, 0], sizes = [8, 8], strides = [1, 1]} : vector<8x32xf32> to vector<8x8xf32>
    %53 = arith.truncf %52 : vector<8x8xf32> to vector<8x8xbf16>
    %54 = vector.extract_strided_slice %46 {offsets = [0, 0], sizes = [8, 8], strides = [1, 1]} : vector<8x32xf32> to vector<8x8xf32>
    %55 = arith.truncf %54 : vector<8x8xf32> to vector<8x8xbf16>
    %cst_34 = arith.constant dense<0.000000e+00> : vector<8x8xf32>
    %56 = tpu.matmul %51, %53, %cst_34 {dimension_numbers = #tpu.dot_dimension_numbers<[1], [1], [0], [0], [0, 0, 1, 0], [], []>} : vector<8x8xbf16>, vector<8x8xbf16>, vector<8x8xf32> -> vector<8x8xf32>
    %cst_35 = arith.constant dense<0xFF800000> : vector<8xf32>
    %57 = vector.multi_reduction <maximumf>, %56, %cst_35 [1] : vector<8x8xf32> to vector<8xf32>
    %58 = vector.shape_cast %57 : vector<8xf32> to vector<8x1xf32>
    %59 = vector.broadcast %58 : vector<8x1xf32> to vector<8x8xf32>
    %60 = arith.subf %56, %59 : vector<8x8xf32>
    %61 = math.exp %60 : vector<8x8xf32>
    %cst_36 = arith.constant dense<0.000000e+00> : vector<8xf32>
    %62 = vector.multi_reduction <add>, %61, %cst_36 [1] : vector<8x8xf32> to vector<8xf32>
    %63 = vector.shape_cast %62 : vector<8xf32> to vector<8x1xf32>
    %64 = tpu.reciprocal %63 : vector<8x1xf32> -> vector<8x1xf32>
    %65 = vector.broadcast %64 : vector<8x1xf32> to vector<8x8xf32>
    %66 = arith.mulf %61, %65 : vector<8x8xf32>
    %67 = arith.truncf %66 : vector<8x8xf32> to vector<8x8xbf16>
    %cst_37 = arith.constant dense<0.000000e+00> : vector<8x8xf32>
    %68 = tpu.matmul %67, %55, %cst_37 {dimension_numbers = #tpu.dot_dimension_numbers<[1], [0], [0], [1], [0, 0, 1, 1], [], []>} : vector<8x8xbf16>, vector<8x8xbf16>, vector<8x8xf32> -> vector<8x8xf32>
    %69 = arith.truncf %68 : vector<8x8xf32> to vector<8x8xbf16>
    %70 = vector.extract_strided_slice %47 {offsets = [0, 0, 0], sizes = [1, 8, 32], strides = [1, 1, 1]} : vector<4x8x32xbf16> to vector<1x8x32xbf16>
    %71 = vector.shape_cast %70 : vector<1x8x32xbf16> to vector<8x32xbf16>
    %cst_38 = arith.constant dense<0.000000e+00> : vector<8x32xf32>
    %72 = tpu.matmul %69, %71, %cst_38 {dimension_numbers = #tpu.dot_dimension_numbers<[1], [0], [0], [1], [0, 0, 1, 1], [], []>} : vector<8x8xbf16>, vector<8x32xbf16>, vector<8x32xf32> -> vector<8x32xf32>
    %73 = arith.addf %49, %72 : vector<8x32xf32>
    %74 = vector.extract_strided_slice %39 {offsets = [0, 8], sizes = [8, 8], strides = [1, 1]} : vector<8x32xf32> to vector<8x8xf32>
    %75 = arith.truncf %74 : vector<8x8xf32> to vector<8x8xbf16>
    %76 = vector.extract_strided_slice %40 {offsets = [0, 8], sizes = [8, 8], strides = [1, 1]} : vector<8x32xf32> to vector<8x8xf32>
    %77 = arith.truncf %76 : vector<8x8xf32> to vector<8x8xbf16>
    %78 = vector.extract_strided_slice %46 {offsets = [0, 8], sizes = [8, 8], strides = [1, 1]} : vector<8x32xf32> to vector<8x8xf32>
    %79 = arith.truncf %78 : vector<8x8xf32> to vector<8x8xbf16>
    %cst_39 = arith.constant dense<0.000000e+00> : vector<8x8xf32>
    %80 = tpu.matmul %75, %77, %cst_39 {dimension_numbers = #tpu.dot_dimension_numbers<[1], [1], [0], [0], [0, 0, 1, 0], [], []>} : vector<8x8xbf16>, vector<8x8xbf16>, vector<8x8xf32> -> vector<8x8xf32>
    %cst_40 = arith.constant dense<0xFF800000> : vector<8xf32>
    %81 = vector.multi_reduction <maximumf>, %80, %cst_40 [1] : vector<8x8xf32> to vector<8xf32>
    %82 = vector.shape_cast %81 : vector<8xf32> to vector<8x1xf32>
    %83 = vector.broadcast %82 : vector<8x1xf32> to vector<8x8xf32>
    %84 = arith.subf %80, %83 : vector<8x8xf32>
    %85 = math.exp %84 : vector<8x8xf32>
    %cst_41 = arith.constant dense<0.000000e+00> : vector<8xf32>
    %86 = vector.multi_reduction <add>, %85, %cst_41 [1] : vector<8x8xf32> to vector<8xf32>
    %87 = vector.shape_cast %86 : vector<8xf32> to vector<8x1xf32>
    %88 = tpu.reciprocal %87 : vector<8x1xf32> -> vector<8x1xf32>
    %89 = vector.broadcast %88 : vector<8x1xf32> to vector<8x8xf32>
    %90 = arith.mulf %85, %89 : vector<8x8xf32>
    %91 = arith.truncf %90 : vector<8x8xf32> to vector<8x8xbf16>
    %cst_42 = arith.constant dense<0.000000e+00> : vector<8x8xf32>
    %92 = tpu.matmul %91, %79, %cst_42 {dimension_numbers = #tpu.dot_dimension_numbers<[1], [0], [0], [1], [0, 0, 1, 1], [], []>} : vector<8x8xbf16>, vector<8x8xbf16>, vector<8x8xf32> -> vector<8x8xf32>
    %93 = arith.truncf %92 : vector<8x8xf32> to vector<8x8xbf16>
    %94 = vector.extract_strided_slice %47 {offsets = [1, 0, 0], sizes = [1, 8, 32], strides = [1, 1, 1]} : vector<4x8x32xbf16> to vector<1x8x32xbf16>
    %95 = vector.shape_cast %94 : vector<1x8x32xbf16> to vector<8x32xbf16>
    %cst_43 = arith.constant dense<0.000000e+00> : vector<8x32xf32>
    %96 = tpu.matmul %93, %95, %cst_43 {dimension_numbers = #tpu.dot_dimension_numbers<[1], [0], [0], [1], [0, 0, 1, 1], [], []>} : vector<8x8xbf16>, vector<8x32xbf16>, vector<8x32xf32> -> vector<8x32xf32>
    %97 = arith.addf %73, %96 : vector<8x32xf32>
    %98 = vector.extract_strided_slice %39 {offsets = [0, 16], sizes = [8, 8], strides = [1, 1]} : vector<8x32xf32> to vector<8x8xf32>
    %99 = arith.truncf %98 : vector<8x8xf32> to vector<8x8xbf16>
    %100 = vector.extract_strided_slice %40 {offsets = [0, 16], sizes = [8, 8], strides = [1, 1]} : vector<8x32xf32> to vector<8x8xf32>
    %101 = arith.truncf %100 : vector<8x8xf32> to vector<8x8xbf16>
    %102 = vector.extract_strided_slice %46 {offsets = [0, 16], sizes = [8, 8], strides = [1, 1]} : vector<8x32xf32> to vector<8x8xf32>
    %103 = arith.truncf %102 : vector<8x8xf32> to vector<8x8xbf16>
    %cst_44 = arith.constant dense<0.000000e+00> : vector<8x8xf32>
    %104 = tpu.matmul %99, %101, %cst_44 {dimension_numbers = #tpu.dot_dimension_numbers<[1], [1], [0], [0], [0, 0, 1, 0], [], []>} : vector<8x8xbf16>, vector<8x8xbf16>, vector<8x8xf32> -> vector<8x8xf32>
    %cst_45 = arith.constant dense<0xFF800000> : vector<8xf32>
    %105 = vector.multi_reduction <maximumf>, %104, %cst_45 [1] : vector<8x8xf32> to vector<8xf32>
    %106 = vector.shape_cast %105 : vector<8xf32> to vector<8x1xf32>
    %107 = vector.broadcast %106 : vector<8x1xf32> to vector<8x8xf32>
    %108 = arith.subf %104, %107 : vector<8x8xf32>
    %109 = math.exp %108 : vector<8x8xf32>
    %cst_46 = arith.constant dense<0.000000e+00> : vector<8xf32>
    %110 = vector.multi_reduction <add>, %109, %cst_46 [1] : vector<8x8xf32> to vector<8xf32>
    %111 = vector.shape_cast %110 : vector<8xf32> to vector<8x1xf32>
    %112 = tpu.reciprocal %111 : vector<8x1xf32> -> vector<8x1xf32>
    %113 = vector.broadcast %112 : vector<8x1xf32> to vector<8x8xf32>
    %114 = arith.mulf %109, %113 : vector<8x8xf32>
    %115 = arith.truncf %114 : vector<8x8xf32> to vector<8x8xbf16>
    %cst_47 = arith.constant dense<0.000000e+00> : vector<8x8xf32>
    %116 = tpu.matmul %115, %103, %cst_47 {dimension_numbers = #tpu.dot_dimension_numbers<[1], [0], [0], [1], [0, 0, 1, 1], [], []>} : vector<8x8xbf16>, vector<8x8xbf16>, vector<8x8xf32> -> vector<8x8xf32>
    %117 = arith.truncf %116 : vector<8x8xf32> to vector<8x8xbf16>
    %118 = vector.extract_strided_slice %47 {offsets = [2, 0, 0], sizes = [1, 8, 32], strides = [1, 1, 1]} : vector<4x8x32xbf16> to vector<1x8x32xbf16>
    %119 = vector.shape_cast %118 : vector<1x8x32xbf16> to vector<8x32xbf16>
    %cst_48 = arith.constant dense<0.000000e+00> : vector<8x32xf32>
    %120 = tpu.matmul %117, %119, %cst_48 {dimension_numbers = #tpu.dot_dimension_numbers<[1], [0], [0], [1], [0, 0, 1, 1], [], []>} : vector<8x8xbf16>, vector<8x32xbf16>, vector<8x32xf32> -> vector<8x32xf32>
    %121 = arith.addf %97, %120 : vector<8x32xf32>
    %122 = vector.extract_strided_slice %39 {offsets = [0, 24], sizes = [8, 8], strides = [1, 1]} : vector<8x32xf32> to vector<8x8xf32>
    %123 = arith.truncf %122 : vector<8x8xf32> to vector<8x8xbf16>
    %124 = vector.extract_strided_slice %40 {offsets = [0, 24], sizes = [8, 8], strides = [1, 1]} : vector<8x32xf32> to vector<8x8xf32>
    %125 = arith.truncf %124 : vector<8x8xf32> to vector<8x8xbf16>
    %126 = vector.extract_strided_slice %46 {offsets = [0, 24], sizes = [8, 8], strides = [1, 1]} : vector<8x32xf32> to vector<8x8xf32>
    %127 = arith.truncf %126 : vector<8x8xf32> to vector<8x8xbf16>
    %cst_49 = arith.constant dense<0.000000e+00> : vector<8x8xf32>
    %128 = tpu.matmul %123, %125, %cst_49 {dimension_numbers = #tpu.dot_dimension_numbers<[1], [1], [0], [0], [0, 0, 1, 0], [], []>} : vector<8x8xbf16>, vector<8x8xbf16>, vector<8x8xf32> -> vector<8x8xf32>
    %cst_50 = arith.constant dense<0xFF800000> : vector<8xf32>
    %129 = vector.multi_reduction <maximumf>, %128, %cst_50 [1] : vector<8x8xf32> to vector<8xf32>
    %130 = vector.shape_cast %129 : vector<8xf32> to vector<8x1xf32>
    %131 = vector.broadcast %130 : vector<8x1xf32> to vector<8x8xf32>
    %132 = arith.subf %128, %131 : vector<8x8xf32>
    %133 = math.exp %132 : vector<8x8xf32>
    %cst_51 = arith.constant dense<0.000000e+00> : vector<8xf32>
    %134 = vector.multi_reduction <add>, %133, %cst_51 [1] : vector<8x8xf32> to vector<8xf32>
    %135 = vector.shape_cast %134 : vector<8xf32> to vector<8x1xf32>
    %136 = tpu.reciprocal %135 : vector<8x1xf32> -> vector<8x1xf32>
    %137 = vector.broadcast %136 : vector<8x1xf32> to vector<8x8xf32>
    %138 = arith.mulf %133, %137 : vector<8x8xf32>
    %139 = arith.truncf %138 : vector<8x8xf32> to vector<8x8xbf16>
    %cst_52 = arith.constant dense<0.000000e+00> : vector<8x8xf32>
    %140 = tpu.matmul %139, %127, %cst_52 {dimension_numbers = #tpu.dot_dimension_numbers<[1], [0], [0], [1], [0, 0, 1, 1], [], []>} : vector<8x8xbf16>, vector<8x8xbf16>, vector<8x8xf32> -> vector<8x8xf32>
    %141 = arith.truncf %140 : vector<8x8xf32> to vector<8x8xbf16>
    %142 = vector.extract_strided_slice %47 {offsets = [3, 0, 0], sizes = [1, 8, 32], strides = [1, 1, 1]} : vector<4x8x32xbf16> to vector<1x8x32xbf16>
    %143 = vector.shape_cast %142 : vector<1x8x32xbf16> to vector<8x32xbf16>
    %cst_53 = arith.constant dense<0.000000e+00> : vector<8x32xf32>
    %144 = tpu.matmul %141, %143, %cst_53 {dimension_numbers = #tpu.dot_dimension_numbers<[1], [0], [0], [1], [0, 0, 1, 1], [], []>} : vector<8x8xbf16>, vector<8x32xbf16>, vector<8x32xf32> -> vector<8x32xf32>
    %145 = arith.addf %121, %144 : vector<8x32xf32>
    %146 = vector.broadcast %48 : vector<1x32xf32> to vector<8x32xf32>
    %147 = arith.addf %145, %146 : vector<8x32xf32>
    %148 = arith.addf %1, %147 : vector<8x32xf32>
    %c0_54 = arith.constant 0 : index
    %c0_55 = arith.constant 0 : index
    %149 = vector.load %arg7[%c0_54, %c0_55] : memref<1x32xf32, #tpu.memory_space<vmem>>, vector<1x32xf32>
    %c0_56 = arith.constant 0 : index
    %c0_57 = arith.constant 0 : index
    %150 = vector.load %arg8[%c0_56, %c0_57] : memref<1x32xf32, #tpu.memory_space<vmem>>, vector<1x32xf32>
    %cst_58 = arith.constant dense<0.000000e+00> : vector<8xf32>
    %151 = vector.multi_reduction <add>, %148, %cst_58 [1] : vector<8x32xf32> to vector<8xf32>
    %152 = vector.shape_cast %151 : vector<8xf32> to vector<8x1xf32>
    %cst_59 = arith.constant 3.200000e+01 : f32
    %153 = vector.broadcast %cst_59 : f32 to vector<8x1xf32>
    %154 = arith.divf %152, %153 : vector<8x1xf32>
    %155 = vector.broadcast %154 : vector<8x1xf32> to vector<8x32xf32>
    %156 = arith.subf %148, %155 : vector<8x32xf32>
    %157 = arith.mulf %156, %156 : vector<8x32xf32>
    %cst_60 = arith.constant dense<0.000000e+00> : vector<8xf32>
    %158 = vector.multi_reduction <add>, %157, %cst_60 [1] : vector<8x32xf32> to vector<8xf32>
    %159 = vector.shape_cast %158 : vector<8xf32> to vector<8x1xf32>
    %cst_61 = arith.constant 3.200000e+01 : f32
    %160 = vector.broadcast %cst_61 : f32 to vector<8x1xf32>
    %161 = arith.divf %159, %160 : vector<8x1xf32>
    %162 = vector.broadcast %154 : vector<8x1xf32> to vector<8x32xf32>
    %163 = arith.subf %148, %162 : vector<8x32xf32>
    %cst_62 = arith.constant 9.99999974E-6 : f32
    %164 = vector.broadcast %cst_62 : f32 to vector<8x1xf32>
    %165 = arith.addf %161, %164 : vector<8x1xf32>
    %166 = math.rsqrt %165 : vector<8x1xf32>
    %167 = vector.broadcast %166 : vector<8x1xf32> to vector<8x32xf32>
    %168 = arith.mulf %163, %167 : vector<8x32xf32>
    %169 = vector.broadcast %149 : vector<1x32xf32> to vector<8x32xf32>
    %170 = arith.mulf %168, %169 : vector<8x32xf32>
    %171 = vector.broadcast %150 : vector<1x32xf32> to vector<8x32xf32>
    %172 = arith.addf %170, %171 : vector<8x32xf32>
    %173 = arith.addf %172, %4 : vector<8x32xf32>
    %c0_63 = arith.constant 0 : index
    %c0_64 = arith.constant 0 : index
    %174 = vector.load %arg17[%c0_63, %c0_64] : memref<32x32xbf16, #tpu.memory_space<vmem>>, vector<32x32xbf16>
    %c0_65 = arith.constant 0 : index
    %c0_66 = arith.constant 0 : index
    %175 = vector.load %arg18[%c0_65, %c0_66] : memref<1x32xf32, #tpu.memory_space<vmem>>, vector<1x32xf32>
    %176 = arith.truncf %173 : vector<8x32xf32> to vector<8x32xbf16>
    %cst_67 = arith.constant dense<0.000000e+00> : vector<8x32xf32>
    %177 = tpu.matmul %176, %174, %cst_67 {dimension_numbers = #tpu.dot_dimension_numbers<[1], [0], [0], [1], [0, 0, 1, 1], [], []>} : vector<8x32xbf16>, vector<32x32xbf16>, vector<8x32xf32> -> vector<8x32xf32>
    %178 = vector.broadcast %175 : vector<1x32xf32> to vector<8x32xf32>
    %179 = arith.addf %177, %178 : vector<8x32xf32>
    %cst_68 = arith.constant 0.353553385 : f32
    %180 = vector.broadcast %cst_68 : f32 to vector<8x32xf32>
    %181 = arith.mulf %179, %180 : vector<8x32xf32>
    %182 = arith.addf %3, %5 : vector<8x16xf32>
    %c0_69 = arith.constant 0 : index
    %c0_70 = arith.constant 0 : index
    %183 = vector.load %arg19[%c0_69, %c0_70] : memref<16x32xbf16, #tpu.memory_space<vmem>>, vector<16x32xbf16>
    %c0_71 = arith.constant 0 : index
    %c0_72 = arith.constant 0 : index
    %184 = vector.load %arg20[%c0_71, %c0_72] : memref<1x32xf32, #tpu.memory_space<vmem>>, vector<1x32xf32>
    %185 = arith.truncf %182 : vector<8x16xf32> to vector<8x16xbf16>
    %cst_73 = arith.constant dense<0.000000e+00> : vector<8x32xf32>
    %186 = tpu.matmul %185, %183, %cst_73 {dimension_numbers = #tpu.dot_dimension_numbers<[1], [0], [0], [1], [0, 0, 1, 1], [], []>} : vector<8x16xbf16>, vector<16x32xbf16>, vector<8x32xf32> -> vector<8x32xf32>
    %187 = vector.broadcast %184 : vector<1x32xf32> to vector<8x32xf32>
    %188 = arith.addf %186, %187 : vector<8x32xf32>
    %c0_74 = arith.constant 0 : index
    %c0_75 = arith.constant 0 : index
    %189 = vector.load %arg21[%c0_74, %c0_75] : memref<16x32xbf16, #tpu.memory_space<vmem>>, vector<16x32xbf16>
    %c0_76 = arith.constant 0 : index
    %c0_77 = arith.constant 0 : index
    %190 = vector.load %arg22[%c0_76, %c0_77] : memref<1x32xf32, #tpu.memory_space<vmem>>, vector<1x32xf32>
    %191 = arith.truncf %3 : vector<8x16xf32> to vector<8x16xbf16>
    %cst_78 = arith.constant dense<0.000000e+00> : vector<8x32xf32>
    %192 = tpu.matmul %191, %189, %cst_78 {dimension_numbers = #tpu.dot_dimension_numbers<[1], [0], [0], [1], [0, 0, 1, 1], [], []>} : vector<8x16xbf16>, vector<16x32xbf16>, vector<8x32xf32> -> vector<8x32xf32>
    %193 = vector.broadcast %190 : vector<1x32xf32> to vector<8x32xf32>
    %194 = arith.addf %192, %193 : vector<8x32xf32>
    %c0_79 = arith.constant 0 : index
    %c0_80 = arith.constant 0 : index
    %c0_81 = arith.constant 0 : index
    %195 = vector.load %arg23[%c0_79, %c0_80, %c0_81] : memref<4x8x32xbf16, #tpu.memory_space<vmem>>, vector<4x8x32xbf16>
    %c0_82 = arith.constant 0 : index
    %c0_83 = arith.constant 0 : index
    %196 = vector.load %arg24[%c0_82, %c0_83] : memref<1x32xf32, #tpu.memory_space<vmem>>, vector<1x32xf32>
    %cst_84 = arith.constant 0.000000e+00 : f32
    %197 = vector.broadcast %cst_84 : f32 to vector<8x32xf32>
    %198 = vector.extract_strided_slice %181 {offsets = [0, 0], sizes = [8, 8], strides = [1, 1]} : vector<8x32xf32> to vector<8x8xf32>
    %199 = arith.truncf %198 : vector<8x8xf32> to vector<8x8xbf16>
    %200 = vector.extract_strided_slice %188 {offsets = [0, 0], sizes = [8, 8], strides = [1, 1]} : vector<8x32xf32> to vector<8x8xf32>
    %201 = arith.truncf %200 : vector<8x8xf32> to vector<8x8xbf16>
    %202 = vector.extract_strided_slice %194 {offsets = [0, 0], sizes = [8, 8], strides = [1, 1]} : vector<8x32xf32> to vector<8x8xf32>
    %203 = arith.truncf %202 : vector<8x8xf32> to vector<8x8xbf16>
    %cst_85 = arith.constant dense<0.000000e+00> : vector<8x8xf32>
    %204 = tpu.matmul %199, %201, %cst_85 {dimension_numbers = #tpu.dot_dimension_numbers<[1], [1], [0], [0], [0, 0, 1, 0], [], []>} : vector<8x8xbf16>, vector<8x8xbf16>, vector<8x8xf32> -> vector<8x8xf32>
    %cst_86 = arith.constant dense<0xFF800000> : vector<8xf32>
    %205 = vector.multi_reduction <maximumf>, %204, %cst_86 [1] : vector<8x8xf32> to vector<8xf32>
    %206 = vector.shape_cast %205 : vector<8xf32> to vector<8x1xf32>
    %207 = vector.broadcast %206 : vector<8x1xf32> to vector<8x8xf32>
    %208 = arith.subf %204, %207 : vector<8x8xf32>
    %209 = math.exp %208 : vector<8x8xf32>
    %cst_87 = arith.constant dense<0.000000e+00> : vector<8xf32>
    %210 = vector.multi_reduction <add>, %209, %cst_87 [1] : vector<8x8xf32> to vector<8xf32>
    %211 = vector.shape_cast %210 : vector<8xf32> to vector<8x1xf32>
    %212 = tpu.reciprocal %211 : vector<8x1xf32> -> vector<8x1xf32>
    %213 = vector.broadcast %212 : vector<8x1xf32> to vector<8x8xf32>
    %214 = arith.mulf %209, %213 : vector<8x8xf32>
    %215 = arith.truncf %214 : vector<8x8xf32> to vector<8x8xbf16>
    %cst_88 = arith.constant dense<0.000000e+00> : vector<8x8xf32>
    %216 = tpu.matmul %215, %203, %cst_88 {dimension_numbers = #tpu.dot_dimension_numbers<[1], [0], [0], [1], [0, 0, 1, 1], [], []>} : vector<8x8xbf16>, vector<8x8xbf16>, vector<8x8xf32> -> vector<8x8xf32>
    %217 = arith.truncf %216 : vector<8x8xf32> to vector<8x8xbf16>
    %218 = vector.extract_strided_slice %195 {offsets = [0, 0, 0], sizes = [1, 8, 32], strides = [1, 1, 1]} : vector<4x8x32xbf16> to vector<1x8x32xbf16>
    %219 = vector.shape_cast %218 : vector<1x8x32xbf16> to vector<8x32xbf16>
    %cst_89 = arith.constant dense<0.000000e+00> : vector<8x32xf32>
    %220 = tpu.matmul %217, %219, %cst_89 {dimension_numbers = #tpu.dot_dimension_numbers<[1], [0], [0], [1], [0, 0, 1, 1], [], []>} : vector<8x8xbf16>, vector<8x32xbf16>, vector<8x32xf32> -> vector<8x32xf32>
    %221 = arith.addf %197, %220 : vector<8x32xf32>
    %222 = vector.extract_strided_slice %181 {offsets = [0, 8], sizes = [8, 8], strides = [1, 1]} : vector<8x32xf32> to vector<8x8xf32>
    %223 = arith.truncf %222 : vector<8x8xf32> to vector<8x8xbf16>
    %224 = vector.extract_strided_slice %188 {offsets = [0, 8], sizes = [8, 8], strides = [1, 1]} : vector<8x32xf32> to vector<8x8xf32>
    %225 = arith.truncf %224 : vector<8x8xf32> to vector<8x8xbf16>
    %226 = vector.extract_strided_slice %194 {offsets = [0, 8], sizes = [8, 8], strides = [1, 1]} : vector<8x32xf32> to vector<8x8xf32>
    %227 = arith.truncf %226 : vector<8x8xf32> to vector<8x8xbf16>
    %cst_90 = arith.constant dense<0.000000e+00> : vector<8x8xf32>
    %228 = tpu.matmul %223, %225, %cst_90 {dimension_numbers = #tpu.dot_dimension_numbers<[1], [1], [0], [0], [0, 0, 1, 0], [], []>} : vector<8x8xbf16>, vector<8x8xbf16>, vector<8x8xf32> -> vector<8x8xf32>
    %cst_91 = arith.constant dense<0xFF800000> : vector<8xf32>
    %229 = vector.multi_reduction <maximumf>, %228, %cst_91 [1] : vector<8x8xf32> to vector<8xf32>
    %230 = vector.shape_cast %229 : vector<8xf32> to vector<8x1xf32>
    %231 = vector.broadcast %230 : vector<8x1xf32> to vector<8x8xf32>
    %232 = arith.subf %228, %231 : vector<8x8xf32>
    %233 = math.exp %232 : vector<8x8xf32>
    %cst_92 = arith.constant dense<0.000000e+00> : vector<8xf32>
    %234 = vector.multi_reduction <add>, %233, %cst_92 [1] : vector<8x8xf32> to vector<8xf32>
    %235 = vector.shape_cast %234 : vector<8xf32> to vector<8x1xf32>
    %236 = tpu.reciprocal %235 : vector<8x1xf32> -> vector<8x1xf32>
    %237 = vector.broadcast %236 : vector<8x1xf32> to vector<8x8xf32>
    %238 = arith.mulf %233, %237 : vector<8x8xf32>
    %239 = arith.truncf %238 : vector<8x8xf32> to vector<8x8xbf16>
    %cst_93 = arith.constant dense<0.000000e+00> : vector<8x8xf32>
    %240 = tpu.matmul %239, %227, %cst_93 {dimension_numbers = #tpu.dot_dimension_numbers<[1], [0], [0], [1], [0, 0, 1, 1], [], []>} : vector<8x8xbf16>, vector<8x8xbf16>, vector<8x8xf32> -> vector<8x8xf32>
    %241 = arith.truncf %240 : vector<8x8xf32> to vector<8x8xbf16>
    %242 = vector.extract_strided_slice %195 {offsets = [1, 0, 0], sizes = [1, 8, 32], strides = [1, 1, 1]} : vector<4x8x32xbf16> to vector<1x8x32xbf16>
    %243 = vector.shape_cast %242 : vector<1x8x32xbf16> to vector<8x32xbf16>
    %cst_94 = arith.constant dense<0.000000e+00> : vector<8x32xf32>
    %244 = tpu.matmul %241, %243, %cst_94 {dimension_numbers = #tpu.dot_dimension_numbers<[1], [0], [0], [1], [0, 0, 1, 1], [], []>} : vector<8x8xbf16>, vector<8x32xbf16>, vector<8x32xf32> -> vector<8x32xf32>
    %245 = arith.addf %221, %244 : vector<8x32xf32>
    %246 = vector.extract_strided_slice %181 {offsets = [0, 16], sizes = [8, 8], strides = [1, 1]} : vector<8x32xf32> to vector<8x8xf32>
    %247 = arith.truncf %246 : vector<8x8xf32> to vector<8x8xbf16>
    %248 = vector.extract_strided_slice %188 {offsets = [0, 16], sizes = [8, 8], strides = [1, 1]} : vector<8x32xf32> to vector<8x8xf32>
    %249 = arith.truncf %248 : vector<8x8xf32> to vector<8x8xbf16>
    %250 = vector.extract_strided_slice %194 {offsets = [0, 16], sizes = [8, 8], strides = [1, 1]} : vector<8x32xf32> to vector<8x8xf32>
    %251 = arith.truncf %250 : vector<8x8xf32> to vector<8x8xbf16>
    %cst_95 = arith.constant dense<0.000000e+00> : vector<8x8xf32>
    %252 = tpu.matmul %247, %249, %cst_95 {dimension_numbers = #tpu.dot_dimension_numbers<[1], [1], [0], [0], [0, 0, 1, 0], [], []>} : vector<8x8xbf16>, vector<8x8xbf16>, vector<8x8xf32> -> vector<8x8xf32>
    %cst_96 = arith.constant dense<0xFF800000> : vector<8xf32>
    %253 = vector.multi_reduction <maximumf>, %252, %cst_96 [1] : vector<8x8xf32> to vector<8xf32>
    %254 = vector.shape_cast %253 : vector<8xf32> to vector<8x1xf32>
    %255 = vector.broadcast %254 : vector<8x1xf32> to vector<8x8xf32>
    %256 = arith.subf %252, %255 : vector<8x8xf32>
    %257 = math.exp %256 : vector<8x8xf32>
    %cst_97 = arith.constant dense<0.000000e+00> : vector<8xf32>
    %258 = vector.multi_reduction <add>, %257, %cst_97 [1] : vector<8x8xf32> to vector<8xf32>
    %259 = vector.shape_cast %258 : vector<8xf32> to vector<8x1xf32>
    %260 = tpu.reciprocal %259 : vector<8x1xf32> -> vector<8x1xf32>
    %261 = vector.broadcast %260 : vector<8x1xf32> to vector<8x8xf32>
    %262 = arith.mulf %257, %261 : vector<8x8xf32>
    %263 = arith.truncf %262 : vector<8x8xf32> to vector<8x8xbf16>
    %cst_98 = arith.constant dense<0.000000e+00> : vector<8x8xf32>
    %264 = tpu.matmul %263, %251, %cst_98 {dimension_numbers = #tpu.dot_dimension_numbers<[1], [0], [0], [1], [0, 0, 1, 1], [], []>} : vector<8x8xbf16>, vector<8x8xbf16>, vector<8x8xf32> -> vector<8x8xf32>
    %265 = arith.truncf %264 : vector<8x8xf32> to vector<8x8xbf16>
    %266 = vector.extract_strided_slice %195 {offsets = [2, 0, 0], sizes = [1, 8, 32], strides = [1, 1, 1]} : vector<4x8x32xbf16> to vector<1x8x32xbf16>
    %267 = vector.shape_cast %266 : vector<1x8x32xbf16> to vector<8x32xbf16>
    %cst_99 = arith.constant dense<0.000000e+00> : vector<8x32xf32>
    %268 = tpu.matmul %265, %267, %cst_99 {dimension_numbers = #tpu.dot_dimension_numbers<[1], [0], [0], [1], [0, 0, 1, 1], [], []>} : vector<8x8xbf16>, vector<8x32xbf16>, vector<8x32xf32> -> vector<8x32xf32>
    %269 = arith.addf %245, %268 : vector<8x32xf32>
    %270 = vector.extract_strided_slice %181 {offsets = [0, 24], sizes = [8, 8], strides = [1, 1]} : vector<8x32xf32> to vector<8x8xf32>
    %271 = arith.truncf %270 : vector<8x8xf32> to vector<8x8xbf16>
    %272 = vector.extract_strided_slice %188 {offsets = [0, 24], sizes = [8, 8], strides = [1, 1]} : vector<8x32xf32> to vector<8x8xf32>
    %273 = arith.truncf %272 : vector<8x8xf32> to vector<8x8xbf16>
    %274 = vector.extract_strided_slice %194 {offsets = [0, 24], sizes = [8, 8], strides = [1, 1]} : vector<8x32xf32> to vector<8x8xf32>
    %275 = arith.truncf %274 : vector<8x8xf32> to vector<8x8xbf16>
    %cst_100 = arith.constant dense<0.000000e+00> : vector<8x8xf32>
    %276 = tpu.matmul %271, %273, %cst_100 {dimension_numbers = #tpu.dot_dimension_numbers<[1], [1], [0], [0], [0, 0, 1, 0], [], []>} : vector<8x8xbf16>, vector<8x8xbf16>, vector<8x8xf32> -> vector<8x8xf32>
    %cst_101 = arith.constant dense<0xFF800000> : vector<8xf32>
    %277 = vector.multi_reduction <maximumf>, %276, %cst_101 [1] : vector<8x8xf32> to vector<8xf32>
    %278 = vector.shape_cast %277 : vector<8xf32> to vector<8x1xf32>
    %279 = vector.broadcast %278 : vector<8x1xf32> to vector<8x8xf32>
    %280 = arith.subf %276, %279 : vector<8x8xf32>
    %281 = math.exp %280 : vector<8x8xf32>
    %cst_102 = arith.constant dense<0.000000e+00> : vector<8xf32>
    %282 = vector.multi_reduction <add>, %281, %cst_102 [1] : vector<8x8xf32> to vector<8xf32>
    %283 = vector.shape_cast %282 : vector<8xf32> to vector<8x1xf32>
    %284 = tpu.reciprocal %283 : vector<8x1xf32> -> vector<8x1xf32>
    %285 = vector.broadcast %284 : vector<8x1xf32> to vector<8x8xf32>
    %286 = arith.mulf %281, %285 : vector<8x8xf32>
    %287 = arith.truncf %286 : vector<8x8xf32> to vector<8x8xbf16>
    %cst_103 = arith.constant dense<0.000000e+00> : vector<8x8xf32>
    %288 = tpu.matmul %287, %275, %cst_103 {dimension_numbers = #tpu.dot_dimension_numbers<[1], [0], [0], [1], [0, 0, 1, 1], [], []>} : vector<8x8xbf16>, vector<8x8xbf16>, vector<8x8xf32> -> vector<8x8xf32>
    %289 = arith.truncf %288 : vector<8x8xf32> to vector<8x8xbf16>
    %290 = vector.extract_strided_slice %195 {offsets = [3, 0, 0], sizes = [1, 8, 32], strides = [1, 1, 1]} : vector<4x8x32xbf16> to vector<1x8x32xbf16>
    %291 = vector.shape_cast %290 : vector<1x8x32xbf16> to vector<8x32xbf16>
    %cst_104 = arith.constant dense<0.000000e+00> : vector<8x32xf32>
    %292 = tpu.matmul %289, %291, %cst_104 {dimension_numbers = #tpu.dot_dimension_numbers<[1], [0], [0], [1], [0, 0, 1, 1], [], []>} : vector<8x8xbf16>, vector<8x32xbf16>, vector<8x32xf32> -> vector<8x32xf32>
    %293 = arith.addf %269, %292 : vector<8x32xf32>
    %294 = vector.broadcast %196 : vector<1x32xf32> to vector<8x32xf32>
    %295 = arith.addf %293, %294 : vector<8x32xf32>
    %296 = arith.addf %148, %295 : vector<8x32xf32>
    %c0_105 = arith.constant 0 : index
    %c0_106 = arith.constant 0 : index
    %297 = vector.load %arg9[%c0_105, %c0_106] : memref<1x32xf32, #tpu.memory_space<vmem>>, vector<1x32xf32>
    %c0_107 = arith.constant 0 : index
    %c0_108 = arith.constant 0 : index
    %298 = vector.load %arg10[%c0_107, %c0_108] : memref<1x32xf32, #tpu.memory_space<vmem>>, vector<1x32xf32>
    %cst_109 = arith.constant dense<0.000000e+00> : vector<8xf32>
    %299 = vector.multi_reduction <add>, %296, %cst_109 [1] : vector<8x32xf32> to vector<8xf32>
    %300 = vector.shape_cast %299 : vector<8xf32> to vector<8x1xf32>
    %cst_110 = arith.constant 3.200000e+01 : f32
    %301 = vector.broadcast %cst_110 : f32 to vector<8x1xf32>
    %302 = arith.divf %300, %301 : vector<8x1xf32>
    %303 = vector.broadcast %302 : vector<8x1xf32> to vector<8x32xf32>
    %304 = arith.subf %296, %303 : vector<8x32xf32>
    %305 = arith.mulf %304, %304 : vector<8x32xf32>
    %cst_111 = arith.constant dense<0.000000e+00> : vector<8xf32>
    %306 = vector.multi_reduction <add>, %305, %cst_111 [1] : vector<8x32xf32> to vector<8xf32>
    %307 = vector.shape_cast %306 : vector<8xf32> to vector<8x1xf32>
    %cst_112 = arith.constant 3.200000e+01 : f32
    %308 = vector.broadcast %cst_112 : f32 to vector<8x1xf32>
    %309 = arith.divf %307, %308 : vector<8x1xf32>
    %310 = vector.broadcast %302 : vector<8x1xf32> to vector<8x32xf32>
    %311 = arith.subf %296, %310 : vector<8x32xf32>
    %cst_113 = arith.constant 9.99999974E-6 : f32
    %312 = vector.broadcast %cst_113 : f32 to vector<8x1xf32>
    %313 = arith.addf %309, %312 : vector<8x1xf32>
    %314 = math.rsqrt %313 : vector<8x1xf32>
    %315 = vector.broadcast %314 : vector<8x1xf32> to vector<8x32xf32>
    %316 = arith.mulf %311, %315 : vector<8x32xf32>
    %317 = vector.broadcast %297 : vector<1x32xf32> to vector<8x32xf32>
    %318 = arith.mulf %316, %317 : vector<8x32xf32>
    %319 = vector.broadcast %298 : vector<1x32xf32> to vector<8x32xf32>
    %320 = arith.addf %318, %319 : vector<8x32xf32>
    %c0_114 = arith.constant 0 : index
    %c0_115 = arith.constant 0 : index
    %321 = vector.load %arg25[%c0_114, %c0_115] : memref<32x64xbf16, #tpu.memory_space<vmem>>, vector<32x64xbf16>
    %c0_116 = arith.constant 0 : index
    %c0_117 = arith.constant 0 : index
    %322 = vector.load %arg26[%c0_116, %c0_117] : memref<1x64xf32, #tpu.memory_space<vmem>>, vector<1x64xf32>
    %323 = arith.truncf %320 : vector<8x32xf32> to vector<8x32xbf16>
    %cst_118 = arith.constant dense<0.000000e+00> : vector<8x64xf32>
    %324 = tpu.matmul %323, %321, %cst_118 {dimension_numbers = #tpu.dot_dimension_numbers<[1], [0], [0], [1], [0, 0, 1, 1], [], []>} : vector<8x32xbf16>, vector<32x64xbf16>, vector<8x64xf32> -> vector<8x64xf32>
    %325 = vector.broadcast %322 : vector<1x64xf32> to vector<8x64xf32>
    %326 = arith.addf %324, %325 : vector<8x64xf32>
    %cst_119 = arith.constant 0.000000e+00 : f32
    %327 = vector.broadcast %cst_119 : f32 to vector<8x64xf32>
    %328 = arith.maximumf %326, %327 : vector<8x64xf32>
    %c0_120 = arith.constant 0 : index
    %c0_121 = arith.constant 0 : index
    %329 = vector.load %arg27[%c0_120, %c0_121] : memref<64x32xbf16, #tpu.memory_space<vmem>>, vector<64x32xbf16>
    %c0_122 = arith.constant 0 : index
    %c0_123 = arith.constant 0 : index
    %330 = vector.load %arg28[%c0_122, %c0_123] : memref<1x32xf32, #tpu.memory_space<vmem>>, vector<1x32xf32>
    %331 = arith.truncf %328 : vector<8x64xf32> to vector<8x64xbf16>
    %cst_124 = arith.constant dense<0.000000e+00> : vector<8x32xf32>
    %332 = tpu.matmul %331, %329, %cst_124 {dimension_numbers = #tpu.dot_dimension_numbers<[1], [0], [0], [1], [0, 0, 1, 1], [], []>} : vector<8x64xbf16>, vector<64x32xbf16>, vector<8x32xf32> -> vector<8x32xf32>
    %333 = vector.broadcast %330 : vector<1x32xf32> to vector<8x32xf32>
    %334 = arith.addf %332, %333 : vector<8x32xf32>
    %335 = arith.addf %296, %334 : vector<8x32xf32>
    %c0_125 = arith.constant 0 : index
    %c0_126 = arith.constant 0 : index
    %c0_127 = arith.constant 0 : index
    %336 = vector.load %arg29[%c0_125, %c0_126, %c0_127] : memref<1x8x32xf32, #tpu.memory_space<vmem>>, vector<1x8x32xf32>
    %337 = vector.shape_cast %336 : vector<1x8x32xf32> to vector<8x32xf32>
    %338 = vector.shape_cast %335 : vector<8x32xf32> to vector<1x8x32xf32>
    tpu.vector_store %arg29[%c0_125, %c0_126, %c0_127], %338 {strides = array<i32>} : memref<1x8x32xf32, #tpu.memory_space<vmem>>, vector<1x8x32xf32>,
    return
  }
  func.func @transform_0(%arg0: i32) -> (i32, i32, i32) {
    %c0_i32 = arith.constant 0 : i32
    %c0_i32_0 = arith.constant 0 : i32
    %c0_i32_1 = arith.constant 0 : i32
    return %arg0, %c0_i32, %c0_i32_0 : i32, i32, i32
  }
  func.func @transform_1(%arg0: i32) -> (i32, i32, i32) {
    %c0_i32 = arith.constant 0 : i32
    %c0_i32_0 = arith.constant 0 : i32
    %c0_i32_1 = arith.constant 0 : i32
    return %arg0, %c0_i32, %c0_i32_0 : i32, i32, i32
  }
  func.func @transform_2(%arg0: i32) -> (i32, i32) {
    %c0_i32 = arith.constant 0 : i32
    %c0_i32_0 = arith.constant 0 : i32
    %c0_i32_1 = arith.constant 0 : i32
    return %c0_i32, %c0_i32_0 : i32, i32
  }
  func.func @transform_3(%arg0: i32) -> (i32, i32) {
    %c0_i32 = arith.constant 0 : i32
    %c0_i32_0 = arith.constant 0 : i32
    %c0_i32_1 = arith.constant 0 : i32
    return %c0_i32, %c0_i32_0 : i32, i32
  }
  func.func @transform_4(%arg0: i32) -> (i32, i32) {
    %c0_i32 = arith.constant 0 : i32
    %c0_i32_0 = arith.constant 0 : i32
    %c0_i32_1 = arith.constant 0 : i32
    return %c0_i32, %c0_i32_0 : i32, i32
  }
  func.func @transform_5(%arg0: i32) -> (i32, i32) {
    %c0_i32 = arith.constant 0 : i32
    %c0_i32_0 = arith.constant 0 : i32
    %c0_i32_1 = arith.constant 0 : i32
    return %c0_i32, %c0_i32_0 : i32, i32
  }
  func.func @transform_6(%arg0: i32) -> (i32, i32) {
    %c0_i32 = arith.constant 0 : i32
    %c0_i32_0 = arith.constant 0 : i32
    %c0_i32_1 = arith.constant 0 : i32
    return %c0_i32, %c0_i32_0 : i32, i32
  }
  func.func @transform_7(%arg0: i32) -> (i32, i32) {
    %c0_i32 = arith.constant 0 : i32
    %c0_i32_0 = arith.constant 0 : i32
    %c0_i32_1 = arith.constant 0 : i32
    return %c0_i32, %c0_i32_0 : i32, i32
  }
  func.func @transform_8(%arg0: i32) -> (i32, i32) {
    %c0_i32 = arith.constant 0 : i32
    %c0_i32_0 = arith.constant 0 : i32
    %c0_i32_1 = arith.constant 0 : i32
    return %c0_i32, %c0_i32_0 : i32, i32
  }
  func.func @transform_9(%arg0: i32) -> (i32, i32) {
    %c0_i32 = arith.constant 0 : i32
    %c0_i32_0 = arith.constant 0 : i32
    %c0_i32_1 = arith.constant 0 : i32
    return %c0_i32, %c0_i32_0 : i32, i32
  }
  func.func @transform_10(%arg0: i32) -> (i32, i32) {
    %c0_i32 = arith.constant 0 : i32
    %c0_i32_0 = arith.constant 0 : i32
    %c0_i32_1 = arith.constant 0 : i32
    return %c0_i32, %c0_i32_0 : i32, i32
  }
  func.func @transform_11(%arg0: i32) -> (i32, i32) {
    %c0_i32 = arith.constant 0 : i32
    %c0_i32_0 = arith.constant 0 : i32
    %c0_i32_1 = arith.constant 0 : i32
    return %c0_i32, %c0_i32_0 : i32, i32
  }
  func.func @transform_12(%arg0: i32) -> (i32, i32) {
    %c0_i32 = arith.constant 0 : i32
    %c0_i32_0 = arith.constant 0 : i32
    %c0_i32_1 = arith.constant 0 : i32
    return %c0_i32, %c0_i32_0 : i32, i32
  }
  func.func @transform_13(%arg0: i32) -> (i32, i32) {
    %c0_i32 = arith.constant 0 : i32
    %c0_i32_0 = arith.constant 0 : i32
    %c0_i32_1 = arith.constant 0 : i32
    return %c0_i32, %c0_i32_0 : i32, i32
  }
  func.func @transform_14(%arg0: i32) -> (i32, i32, i32) {
    %c0_i32 = arith.constant 0 : i32
    %c0_i32_0 = arith.constant 0 : i32
    %c0_i32_1 = arith.constant 0 : i32
    %c0_i32_2 = arith.constant 0 : i32
    return %c0_i32, %c0_i32_0, %c0_i32_1 : i32, i32, i32
  }
  func.func @transform_15(%arg0: i32) -> (i32, i32) {
    %c0_i32 = arith.constant 0 : i32
    %c0_i32_0 = arith.constant 0 : i32
    %c0_i32_1 = arith.constant 0 : i32
    return %c0_i32, %c0_i32_0 : i32, i32
  }
  func.func @transform_16(%arg0: i32) -> (i32, i32) {
    %c0_i32 = arith.constant 0 : i32
    %c0_i32_0 = arith.constant 0 : i32
    %c0_i32_1 = arith.constant 0 : i32
    return %c0_i32, %c0_i32_0 : i32, i32
  }
  func.func @transform_17(%arg0: i32) -> (i32, i32) {
    %c0_i32 = arith.constant 0 : i32
    %c0_i32_0 = arith.constant 0 : i32
    %c0_i32_1 = arith.constant 0 : i32
    return %c0_i32, %c0_i32_0 : i32, i32
  }
  func.func @transform_18(%arg0: i32) -> (i32, i32) {
    %c0_i32 = arith.constant 0 : i32
    %c0_i32_0 = arith.constant 0 : i32
    %c0_i32_1 = arith.constant 0 : i32
    return %c0_i32, %c0_i32_0 : i32, i32
  }
  func.func @transform_19(%arg0: i32) -> (i32, i32) {
    %c0_i32 = arith.constant 0 : i32
    %c0_i32_0 = arith.constant 0 : i32
    %c0_i32_1 = arith.constant 0 : i32
    return %c0_i32, %c0_i32_0 : i32, i32
  }
  func.func @transform_20(%arg0: i32) -> (i32, i32) {
    %c0_i32 = arith.constant 0 : i32
    %c0_i32_0 = arith.constant 0 : i32
    %c0_i32_1 = arith.constant 0 : i32
    return %c0_i32, %c0_i32_0 : i32, i32
  }
  func.func @transform_21(%arg0: i32) -> (i32, i32) {
    %c0_i32 = arith.constant 0 : i32
    %c0_i32_0 = arith.constant 0 : i32
    %c0_i32_1 = arith.constant 0 : i32
    return %c0_i32, %c0_i32_0 : i32, i32
  }
  func.func @transform_22(%arg0: i32) -> (i32, i32, i32) {
    %c0_i32 = arith.constant 0 : i32
    %c0_i32_0 = arith.constant 0 : i32
    %c0_i32_1 = arith.constant 0 : i32
    %c0_i32_2 = arith.constant 0 : i32
    return %c0_i32, %c0_i32_0, %c0_i32_1 : i32, i32, i32
  }
  func.func @transform_23(%arg0: i32) -> (i32, i32) {
    %c0_i32 = arith.constant 0 : i32
    %c0_i32_0 = arith.constant 0 : i32
    %c0_i32_1 = arith.constant 0 : i32
    return %c0_i32, %c0_i32_0 : i32, i32
  }
  func.func @transform_24(%arg0: i32) -> (i32, i32) {
    %c0_i32 = arith.constant 0 : i32
    %c0_i32_0 = arith.constant 0 : i32
    %c0_i32_1 = arith.constant 0 : i32
    return %c0_i32, %c0_i32_0 : i32, i32
  }
  func.func @transform_25(%arg0: i32) -> (i32, i32) {
    %c0_i32 = arith.constant 0 : i32
    %c0_i32_0 = arith.constant 0 : i32
    %c0_i32_1 = arith.constant 0 : i32
    return %c0_i32, %c0_i32_0 : i32, i32
  }
  func.func @transform_26(%arg0: i32) -> (i32, i32) {
    %c0_i32 = arith.constant 0 : i32
    %c0_i32_0 = arith.constant 0 : i32
    %c0_i32_1 = arith.constant 0 : i32
    return %c0_i32, %c0_i32_0 : i32, i32
  }
  func.func @transform_27(%arg0: i32) -> (i32, i32) {
    %c0_i32 = arith.constant 0 : i32
    %c0_i32_0 = arith.constant 0 : i32
    %c0_i32_1 = arith.constant 0 : i32
    return %c0_i32, %c0_i32_0 : i32, i32
  }
  func.func @transform_28(%arg0: i32) -> (i32, i32, i32) {
    %c0_i32 = arith.constant 0 : i32
    %c0_i32_0 = arith.constant 0 : i32
    %c0_i32_1 = arith.constant 0 : i32
    return %arg0, %c0_i32, %c0_i32_0 : i32, i32, i32
  }
}

</mosaic_0001>

<llo_original>
// kernel: _lambda_.1
$region0: #{_lambda_.1}
  #allocation0 [shape = 'u32[]', space=smem, size = 0x4, offset = 0x4, fixed_abs, tag = 'smem constant byte address 0x4 - core index']
  #allocation1 [shape = 'u32[144,128]{1,0:T(1,128)}', space=vmem, size = 0x12000, scoped, tag = 'internal scratch']
  %s0 = inlined_call_operand.vmem [shape: f32[2,8,32], index: 0, kind: input, shape index: {}]
  %s1 = inlined_call_operand.vmem [shape: f32[2,8,16], index: 1, kind: input, shape index: {}]
  %s2 = inlined_call_operand.vmem [shape: f32[8,32], index: 2, kind: input, shape index: {}]
  %s3 = inlined_call_operand.hbm [shape: f32[8,16], index: 3, kind: input, shape index: {}]
  %s4 = inlined_call_operand.vmem [shape: f32[1,32], index: 4, kind: input, shape index: {}]
  %s5 = inlined_call_operand.vmem [shape: f32[1,32], index: 5, kind: input, shape index: {}]
  %s6 = inlined_call_operand.vmem [shape: f32[1,32], index: 6, kind: input, shape index: {}]
  %s7 = inlined_call_operand.vmem [shape: f32[1,32], index: 7, kind: input, shape index: {}]
  %s8 = inlined_call_operand.vmem [shape: f32[1,32], index: 8, kind: input, shape index: {}]
  %s9 = inlined_call_operand.vmem [shape: f32[1,32], index: 9, kind: input, shape index: {}]
  %s10 = inlined_call_operand.vmem [shape: bf16[32,64], index: 10, kind: input, shape index: {}]
  %s11 = inlined_call_operand.hbm [shape: f32[1,64], index: 11, kind: input, shape index: {}]
  %s12 = inlined_call_operand.vmem [shape: bf16[32,32], index: 12, kind: input, shape index: {}]
  %s13 = inlined_call_operand.vmem [shape: f32[1,32], index: 13, kind: input, shape index: {}]
  %s14 = inlined_call_operand.vmem [shape: bf16[4,8,32], index: 14, kind: input, shape index: {}]
  %s15 = inlined_call_operand.hbm [shape: f32[1,32], index: 15, kind: input, shape index: {}]
  %s16 = inlined_call_operand.hbm [shape: bf16[32,32], index: 16, kind: input, shape index: {}]
  %s17 = inlined_call_operand.hbm [shape: f32[1,32], index: 17, kind: input, shape index: {}]
  %s18 = inlined_call_operand.hbm [shape: bf16[16,32], index: 18, kind: input, shape index: {}]
  %s19 = inlined_call_operand.hbm [shape: f32[1,32], index: 19, kind: input, shape index: {}]
  %s20 = inlined_call_operand.hbm [shape: bf16[16,32], index: 20, kind: input, shape index: {}]
  %s21 = inlined_call_operand.hbm [shape: f32[1,32], index: 21, kind: input, shape index: {}]
  %s22 = inlined_call_operand.hbm [shape: bf16[4,8,32], index: 22, kind: input, shape index: {}]
  %s23 = inlined_call_operand.hbm [shape: f32[1,32], index: 23, kind: input, shape index: {}]
  %s24 = inlined_call_operand.hbm [shape: bf16[32,64], index: 24, kind: input, shape index: {}]
  %s25 = inlined_call_operand.hbm [shape: f32[1,64], index: 25, kind: input, shape index: {}]
  %s26 = inlined_call_operand.vmem [shape: bf16[64,32], index: 26, kind: input, shape index: {}]
  %s27 = inlined_call_operand.hbm [shape: f32[1,32], index: 27, kind: input, shape index: {}]
  %s28 = inlined_call_operand.hbm [shape: f32[2,8,32], index: 28, kind: output, shape index: {}]
  %s29 = sld [smem:[#allocation0]]
  $region201: #{_lambda_.1} parent=0
    _
  %s31 = ssub.s32 1, %s29
  %s32 = scalar_select 0, %s31, %s29
  $region1: #{_lambda_.1} parent=0
    #allocation2 [shape = 'u8[4096]{0}', space=vmem, size = 0x1000, scoped, tag = 'input window, operand 3, single buffered']
    #allocation3 [shape = 's32[2]{0}', space=sflag, size = 0x8, scoped, tag = 'scoped memory for _lambda_.1']
    #allocation4 [shape = 's32[2]{0}', space=sflag, size = 0x8, scoped, tag = 'scoped memory for _lambda_.1']
    #allocation5 [shape = 'u8[512]{0}', space=vmem, size = 0x400, scoped, tag = 'input window, operand 11, single buffered']
    #allocation6 [shape = 's32[1]{0}', space=sflag, size = 0x4, scoped, tag = 'scoped memory for _lambda_.1']
    #allocation7 [shape = 'u8[512]{0}', space=vmem, size = 0x400, scoped, tag = 'input window, operand 15, single buffered']
    #allocation8 [shape = 'u8[8192]{0}', space=vmem, size = 0x2000, scoped, tag = 'input window, operand 16, single buffered']
    #allocation9 [shape = 's32[1]{0}', space=sflag, size = 0x4, scoped, tag = 'scoped memory for _lambda_.1']
    #allocation10 [shape = 'u8[512]{0}', space=vmem, size = 0x400, scoped, tag = 'input window, operand 17, single buffered']
    #allocation11 [shape = 'u8[4096]{0}', space=vmem, size = 0x1000, scoped, tag = 'input window, operand 18, single buffered']
    #allocation12 [shape = 's32[1]{0}', space=sflag, size = 0x4, scoped, tag = 'scoped memory for _lambda_.1']
    #allocation13 [shape = 'u8[512]{0}', space=vmem, size = 0x400, scoped, tag = 'input window, operand 19, single buffered']
    #allocation14 [shape = 'u8[4096]{0}', space=vmem, size = 0x1000, scoped, tag = 'input window, operand 20, single buffered']
    #allocation15 [shape = 's32[1]{0}', space=sflag, size = 0x4, scoped, tag = 'scoped memory for _lambda_.1']
    #allocation16 [shape = 'u8[512]{0}', space=vmem, size = 0x400, scoped, tag = 'input window, operand 21, single buffered']
    #allocation17 [shape = 'u8[8192]{0}', space=vmem, size = 0x2000, scoped, tag = 'input window, operand 22, single buffered']
    #allocation18 [shape = 's32[1]{0}', space=sflag, size = 0x4, scoped, tag = 'scoped memory for _lambda_.1']
    #allocation19 [shape = 'u8[512]{0}', space=vmem, size = 0x400, scoped, tag = 'input window, operand 23, single buffered']
    #allocation20 [shape = 'u8[8192]{0}', space=vmem, size = 0x2000, scoped, tag = 'input window, operand 24, single buffered']
    #allocation21 [shape = 's32[1]{0}', space=sflag, size = 0x4, scoped, tag = 'scoped memory for _lambda_.1']
    #allocation22 [shape = 'u8[512]{0}', space=vmem, size = 0x400, scoped, tag = 'input window, operand 25, single buffered']
    #allocation23 [shape = 'u8[512]{0}', space=vmem, size = 0x400, scoped, tag = 'input window, operand 27, single buffered']
    #allocation24 [shape = 's32[1]{0}', space=sflag, size = 0x4, scoped, tag = 'scoped memory for _lambda_.1']
    #allocation25 [shape = 'u8[8192]{0}', space=vmem, size = 0x2000, scoped, tag = 'output window, operand 0']
    %33 = vsyncpa [#allocation3], 0
    %34 = vsyncpa [#allocation6], 0
    %35 = vsyncpa [#allocation9], 0
    %36 = vsyncpa [#allocation12], 0
    %37 = vsyncpa [#allocation15], 0
    %38 = vsyncpa [#allocation18], 0
    %39 = vsyncpa [#allocation21], 0
    %40 = vsyncpa [#allocation24], 0
    %41 = vsyncpa [#allocation4], 0
    %s42 = scalar_lea.sflag [#allocation4], 1
    %43 = vsyncpa %s42, 0
    loop: start=0, step=1, limit=4
    $region2: #{_lambda_.1} parent=1 // loop_pre_header
      _
    $region3: #{_lambda_.1} parent=1 // loop_header
      %s45 = sphi 0, %s49
      %p46 = scmp.ge.s32.totalorder %s45, 4
      %s55 = sphi 0, %s57
      %s58 = sphi 0, %s55
      %s59 = sphi 0, %s58
      %s75 = sphi 0, %s59
      %s81 = sphi 0, %s83
      %s84 = sphi 0, %s81
      %s85 = sphi 0, %s84
      %s101 = sphi 0, %s85
      %s105 = sphi 0, %s105
      %s107 = sphi 0, %s105
      %s108 = sphi 0, %s107
      %s122 = sphi 0, %s108
      %s126 = sphi 0, %s126
      %s128 = sphi 0, %s126
      %s129 = sphi 0, %s128
      %s143 = sphi 0, %s129
      %s147 = sphi 0, %s147
      %s149 = sphi 0, %s147
      %s150 = sphi 0, %s149
      %s164 = sphi 0, %s150
      %s168 = sphi 0, %s168
      %s170 = sphi 0, %s168
      %s171 = sphi 0, %s170
      %s185 = sphi 0, %s171
      %s189 = sphi 0, %s189
      %s191 = sphi 0, %s189
      %s192 = sphi 0, %s191
      %s206 = sphi 0, %s192
      %s210 = sphi 0, %s210
      %s212 = sphi 0, %s210
      %s213 = sphi 0, %s212
      %s227 = sphi 0, %s213
      %s231 = sphi 0, %s231
      %s233 = sphi 0, %s231
      %s234 = sphi 0, %s233
      %s248 = sphi 0, %s234
      %s252 = sphi 0, %s252
      %s254 = sphi 0, %s252
      %s255 = sphi 0, %s254
      %s269 = sphi 0, %s255
      %s273 = sphi 0, %s273
      %s275 = sphi 0, %s273
      %s276 = sphi 0, %s275
      %s290 = sphi 0, %s276
      %s294 = sphi 0, %s294
      %s296 = sphi 0, %s294
      %s297 = sphi 0, %s296
      %s311 = sphi 0, %s297
      %s315 = sphi 0, %s315
      %s317 = sphi 0, %s315
      %s318 = sphi 0, %s317
      %s332 = sphi 0, %s318
      %s336 = sphi 0, %s336
      %s338 = sphi 0, %s336
      %s339 = sphi 0, %s338
      %s353 = sphi 0, %s339
      %s357 = sphi 0, %s357
      %s359 = sphi 0, %s357
      %s360 = sphi 0, %s359
      %s374 = sphi 0, %s360
      %s378 = sphi 0, %s378
      %s380 = sphi 0, %s378
      %s381 = sphi 0, %s380
      %s395 = sphi 0, %s381
      %s399 = sphi 0, %s399
      %s401 = sphi 0, %s399
      %s402 = sphi 0, %s401
      %s416 = sphi 0, %s402
      %s420 = sphi 0, %s420
      %s422 = sphi 0, %s420
      %s423 = sphi 0, %s422
      %s437 = sphi 0, %s423
      %s441 = sphi 0, %s441
      %s443 = sphi 0, %s441
      %s444 = sphi 0, %s443
      %s458 = sphi 0, %s444
      %s462 = sphi 0, %s462
      %s464 = sphi 0, %s462
      %s465 = sphi 0, %s464
      %s479 = sphi 0, %s465
      %s483 = sphi 0, %s483
      %s485 = sphi 0, %s483
      %s486 = sphi 0, %s485
      %s500 = sphi 0, %s486
      %s504 = sphi 0, %s504
      %s506 = sphi 0, %s504
      %s507 = sphi 0, %s506
      %s521 = sphi 0, %s507
      %s525 = sphi 0, %s525
      %s527 = sphi 0, %s525
      %s528 = sphi 0, %s527
      %s542 = sphi 0, %s528
      %s546 = sphi 0, %s546
      %s548 = sphi 0, %s546
      %s549 = sphi 0, %s548
      %s563 = sphi 0, %s549
      %s567 = sphi 0, %s567
      %s569 = sphi 0, %s567
      %s570 = sphi 0, %s569
      %s584 = sphi 0, %s570
      %s588 = sphi 0, %s588
      %s590 = sphi 0, %s588
      %s591 = sphi 0, %s590
      %s605 = sphi 0, %s591
      %s609 = sphi 0, %s609
      %s611 = sphi 0, %s609
      %s612 = sphi 0, %s611
      %s626 = sphi 0, %s612
      %s630 = sphi 0, %s630
      %s632 = sphi 0, %s630
      %s633 = sphi 0, %s632
      %s647 = sphi 0, %s633
      %s653 = sphi 0, %s655
      %s656 = sphi 0, %s653
      %s657 = sphi 0, %s656
      %s673 = sphi 0, %s657
    $region4: #{_lambda_.1} parent=1 // loop_header_branch
      %48 = sbr.rel (%p46) target = $region8
    $region5: #{_lambda_.1} parent=1 // loop_body
      %s50 = ssub.s32 %s45, 1
      %s51 = ssub.s32 %s45, 2
      %s52 = sadd.s32 %s45, 1
      %s53 = ssub.s32 %s45, %s52
      %p54 = scmp.eq.s32.totalorder %s53, 0
      %s56 = sadd.s32 %s55, 1
      %s57 = scalar_select %p54, %s55, %s56
      %p60 = pneg %p54
      %p61 = scmp.eq.s32.totalorder %s45, 1
      %p62 = por %p60, %p61
      %p63 = scmp.ne.s32.totalorder %s55, %s58
      %p64 = scmp.eq.s32.totalorder %s45, 0
      %p65 = por %p63, %p64
      %p66 = scmp.ne.s32.totalorder %s55, %s58
      %p67 = scmp.eq.s32.totalorder %s50, 1
      %p68 = por %p66, %p67
      %p69 = scmp.ne.s32.totalorder %s58, %s59
      %p70 = scmp.eq.s32.totalorder %s50, 0
      %p71 = por %p69, %p70
      %p72 = scmp.ne.s32.totalorder %s58, %s59
      %p73 = scmp.eq.s32.totalorder %s51, 1
      %p74 = por %p72, %p73
      %p76 = scmp.ne.s32.totalorder %s59, %s75
      %p77 = scmp.eq.s32.totalorder %s51, 0
      %p78 = por %p76, %p77
      %s79 = ssub.s32 %s45, %s52
      %p80 = scmp.eq.s32.totalorder %s79, 0
      %s82 = sadd.s32 %s81, 1
      %s83 = scalar_select %p80, %s81, %s82
      %p86 = pneg %p80
      %p87 = scmp.eq.s32.totalorder %s45, 1
      %p88 = por %p86, %p87
      %p89 = scmp.ne.s32.totalorder %s81, %s84
      %p90 = scmp.eq.s32.totalorder %s45, 0
      %p91 = por %p89, %p90
      %p92 = scmp.ne.s32.totalorder %s81, %s84
      %p93 = scmp.eq.s32.totalorder %s50, 1
      %p94 = por %p92, %p93
      %p95 = scmp.ne.s32.totalorder %s84, %s85
      %p96 = scmp.eq.s32.totalorder %s50, 0
      %p97 = por %p95, %p96
      %p98 = scmp.ne.s32.totalorder %s84, %s85
      %p99 = scmp.eq.s32.totalorder %s51, 1
      %p100 = por %p98, %p99
      %p102 = scmp.ne.s32.totalorder %s85, %s101
      %p103 = scmp.eq.s32.totalorder %s51, 0
      %p104 = por %p102, %p103
      %s106 = sadd.s32 %s105, 1
      %p109 = scmp.eq.s32.totalorder %s45, 1
      %p110 = scmp.ne.s32.totalorder %s105, %s107
      %p111 = scmp.eq.s32.totalorder %s45, 0
      %p112 = por %p110, %p111
      %p113 = scmp.ne.s32.totalorder %s105, %s107
      %p114 = scmp.eq.s32.totalorder %s50, 1
      %p115 = por %p113, %p114
      %p116 = scmp.ne.s32.totalorder %s107, %s108
      %p117 = scmp.eq.s32.totalorder %s50, 0
      %p118 = por %p116, %p117
      %p119 = scmp.ne.s32.totalorder %s107, %s108
      %p120 = scmp.eq.s32.totalorder %s51, 1
      %p121 = por %p119, %p120
      %p123 = scmp.ne.s32.totalorder %s108, %s122
      %p124 = scmp.eq.s32.totalorder %s51, 0
      %p125 = por %p123, %p124
      %s127 = sadd.s32 %s126, 1
      %p130 = scmp.eq.s32.totalorder %s45, 1
      %p131 = scmp.ne.s32.totalorder %s126, %s128
      %p132 = scmp.eq.s32.totalorder %s45, 0
      %p133 = por %p131, %p132
      %p134 = scmp.ne.s32.totalorder %s126, %s128
      %p135 = scmp.eq.s32.totalorder %s50, 1
      %p136 = por %p134, %p135
      %p137 = scmp.ne.s32.totalorder %s128, %s129
      %p138 = scmp.eq.s32.totalorder %s50, 0
      %p139 = por %p137, %p138
      %p140 = scmp.ne.s32.totalorder %s128, %s129
      %p141 = scmp.eq.s32.totalorder %s51, 1
      %p142 = por %p140, %p141
      %p144 = scmp.ne.s32.totalorder %s129, %s143
      %p145 = scmp.eq.s32.totalorder %s51, 0
      %p146 = por %p144, %p145
      %s148 = sadd.s32 %s147, 1
      %p151 = scmp.eq.s32.totalorder %s45, 1
      %p152 = scmp.ne.s32.totalorder %s147, %s149
      %p153 = scmp.eq.s32.totalorder %s45, 0
      %p154 = por %p152, %p153
      %p155 = scmp.ne.s32.totalorder %s147, %s149
      %p156 = scmp.eq.s32.totalorder %s50, 1
      %p157 = por %p155, %p156
      %p158 = scmp.ne.s32.totalorder %s149, %s150
      %p159 = scmp.eq.s32.totalorder %s50, 0
      %p160 = por %p158, %p159
      %p161 = scmp.ne.s32.totalorder %s149, %s150
      %p162 = scmp.eq.s32.totalorder %s51, 1
      %p163 = por %p161, %p162
      %p165 = scmp.ne.s32.totalorder %s150, %s164
      %p166 = scmp.eq.s32.totalorder %s51, 0
      %p167 = por %p165, %p166
      %s169 = sadd.s32 %s168, 1
      %p172 = scmp.eq.s32.totalorder %s45, 1
      %p173 = scmp.ne.s32.totalorder %s168, %s170
      %p174 = scmp.eq.s32.totalorder %s45, 0
      %p175 = por %p173, %p174
      %p176 = scmp.ne.s32.totalorder %s168, %s170
      %p177 = scmp.eq.s32.totalorder %s50, 1
      %p178 = por %p176, %p177
      %p179 = scmp.ne.s32.totalorder %s170, %s171
      %p180 = scmp.eq.s32.totalorder %s50, 0
      %p181 = por %p179, %p180
      %p182 = scmp.ne.s32.totalorder %s170, %s171
      %p183 = scmp.eq.s32.totalorder %s51, 1
      %p184 = por %p182, %p183
      %p186 = scmp.ne.s32.totalorder %s171, %s185
      %p187 = scmp.eq.s32.totalorder %s51, 0
      %p188 = por %p186, %p187
      %s190 = sadd.s32 %s189, 1
      %p193 = scmp.eq.s32.totalorder %s45, 1
      %p194 = scmp.ne.s32.totalorder %s189, %s191
      %p195 = scmp.eq.s32.totalorder %s45, 0
      %p196 = por %p194, %p195
      %p197 = scmp.ne.s32.totalorder %s189, %s191
      %p198 = scmp.eq.s32.totalorder %s50, 1
      %p199 = por %p197, %p198
      %p200 = scmp.ne.s32.totalorder %s191, %s192
      %p201 = scmp.eq.s32.totalorder %s50, 0
      %p202 = por %p200, %p201
      %p203 = scmp.ne.s32.totalorder %s191, %s192
      %p204 = scmp.eq.s32.totalorder %s51, 1
      %p205 = por %p203, %p204
      %p207 = scmp.ne.s32.totalorder %s192, %s206
      %p208 = scmp.eq.s32.totalorder %s51, 0
      %p209 = por %p207, %p208
      %s211 = sadd.s32 %s210, 1
      %p214 = scmp.eq.s32.totalorder %s45, 1
      %p215 = scmp.ne.s32.totalorder %s210, %s212
      %p216 = scmp.eq.s32.totalorder %s45, 0
      %p217 = por %p215, %p216
      %p218 = scmp.ne.s32.totalorder %s210, %s212
      %p219 = scmp.eq.s32.totalorder %s50, 1
      %p220 = por %p218, %p219
      %p221 = scmp.ne.s32.totalorder %s212, %s213
      %p222 = scmp.eq.s32.totalorder %s50, 0
      %p223 = por %p221, %p222
      %p224 = scmp.ne.s32.totalorder %s212, %s213
      %p225 = scmp.eq.s32.totalorder %s51, 1
      %p226 = por %p224, %p225
      %p228 = scmp.ne.s32.totalorder %s213, %s227
      %p229 = scmp.eq.s32.totalorder %s51, 0
      %p230 = por %p228, %p229
      %s232 = sadd.s32 %s231, 1
      %p235 = scmp.eq.s32.totalorder %s45, 1
      %p236 = scmp.ne.s32.totalorder %s231, %s233
      %p237 = scmp.eq.s32.totalorder %s45, 0
      %p238 = por %p236, %p237
      %p239 = scmp.ne.s32.totalorder %s231, %s233
      %p240 = scmp.eq.s32.totalorder %s50, 1
      %p241 = por %p239, %p240
      %p242 = scmp.ne.s32.totalorder %s233, %s234
      %p243 = scmp.eq.s32.totalorder %s50, 0
      %p244 = por %p242, %p243
      %p245 = scmp.ne.s32.totalorder %s233, %s234
      %p246 = scmp.eq.s32.totalorder %s51, 1
      %p247 = por %p245, %p246
      %p249 = scmp.ne.s32.totalorder %s234, %s248
      %p250 = scmp.eq.s32.totalorder %s51, 0
      %p251 = por %p249, %p250
      %s253 = sadd.s32 %s252, 1
      %p256 = scmp.eq.s32.totalorder %s45, 1
      %p257 = scmp.ne.s32.totalorder %s252, %s254
      %p258 = scmp.eq.s32.totalorder %s45, 0
      %p259 = por %p257, %p258
      %p260 = scmp.ne.s32.totalorder %s252, %s254
      %p261 = scmp.eq.s32.totalorder %s50, 1
      %p262 = por %p260, %p261
      %p263 = scmp.ne.s32.totalorder %s254, %s255
      %p264 = scmp.eq.s32.totalorder %s50, 0
      %p265 = por %p263, %p264
      %p266 = scmp.ne.s32.totalorder %s254, %s255
      %p267 = scmp.eq.s32.totalorder %s51, 1
      %p268 = por %p266, %p267
      %p270 = scmp.ne.s32.totalorder %s255, %s269
      %p271 = scmp.eq.s32.totalorder %s51, 0
      %p272 = por %p270, %p271
      %s274 = sadd.s32 %s273, 1
      %p277 = scmp.eq.s32.totalorder %s45, 1
      %p278 = scmp.ne.s32.totalorder %s273, %s275
      %p279 = scmp.eq.s32.totalorder %s45, 0
      %p280 = por %p278, %p279
      %p281 = scmp.ne.s32.totalorder %s273, %s275
      %p282 = scmp.eq.s32.totalorder %s50, 1
      %p283 = por %p281, %p282
      %p284 = scmp.ne.s32.totalorder %s275, %s276
      %p285 = scmp.eq.s32.totalorder %s50, 0
      %p286 = por %p284, %p285
      %p287 = scmp.ne.s32.totalorder %s275, %s276
      %p288 = scmp.eq.s32.totalorder %s51, 1
      %p289 = por %p287, %p288
      %p291 = scmp.ne.s32.totalorder %s276, %s290
      %p292 = scmp.eq.s32.totalorder %s51, 0
      %p293 = por %p291, %p292
      %s295 = sadd.s32 %s294, 1
      %p298 = scmp.eq.s32.totalorder %s45, 1
      %p299 = scmp.ne.s32.totalorder %s294, %s296
      %p300 = scmp.eq.s32.totalorder %s45, 0
      %p301 = por %p299, %p300
      %p302 = scmp.ne.s32.totalorder %s294, %s296
      %p303 = scmp.eq.s32.totalorder %s50, 1
      %p304 = por %p302, %p303
      %p305 = scmp.ne.s32.totalorder %s296, %s297
      %p306 = scmp.eq.s32.totalorder %s50, 0
      %p307 = por %p305, %p306
      %p308 = scmp.ne.s32.totalorder %s296, %s297
      %p309 = scmp.eq.s32.totalorder %s51, 1
      %p310 = por %p308, %p309
      %p312 = scmp.ne.s32.totalorder %s297, %s311
      %p313 = scmp.eq.s32.totalorder %s51, 0
      %p314 = por %p312, %p313
      %s316 = sadd.s32 %s315, 1
      %p319 = scmp.eq.s32.totalorder %s45, 1
      %p320 = scmp.ne.s32.totalorder %s315, %s317
      %p321 = scmp.eq.s32.totalorder %s45, 0
      %p322 = por %p320, %p321
      %p323 = scmp.ne.s32.totalorder %s315, %s317
      %p324 = scmp.eq.s32.totalorder %s50, 1
      %p325 = por %p323, %p324
      %p326 = scmp.ne.s32.totalorder %s317, %s318
      %p327 = scmp.eq.s32.totalorder %s50, 0
      %p328 = por %p326, %p327
      %p329 = scmp.ne.s32.totalorder %s317, %s318
      %p330 = scmp.eq.s32.totalorder %s51, 1
      %p331 = por %p329, %p330
      %p333 = scmp.ne.s32.totalorder %s318, %s332
      %p334 = scmp.eq.s32.totalorder %s51, 0
      %p335 = por %p333, %p334
      %s337 = sadd.s32 %s336, 1
      %p340 = scmp.eq.s32.totalorder %s45, 1
      %p341 = scmp.ne.s32.totalorder %s336, %s338
      %p342 = scmp.eq.s32.totalorder %s45, 0
      %p343 = por %p341, %p342
      %p344 = scmp.ne.s32.totalorder %s336, %s338
      %p345 = scmp.eq.s32.totalorder %s50, 1
      %p346 = por %p344, %p345
      %p347 = scmp.ne.s32.totalorder %s338, %s339
      %p348 = scmp.eq.s32.totalorder %s50, 0
      %p349 = por %p347, %p348
      %p350 = scmp.ne.s32.totalorder %s338, %s339
      %p351 = scmp.eq.s32.totalorder %s51, 1
      %p352 = por %p350, %p351
      %p354 = scmp.ne.s32.totalorder %s339, %s353
      %p355 = scmp.eq.s32.totalorder %s51, 0
      %p356 = por %p354, %p355
      %s358 = sadd.s32 %s357, 1
      %p361 = scmp.eq.s32.totalorder %s45, 1
      %p362 = scmp.ne.s32.totalorder %s357, %s359
      %p363 = scmp.eq.s32.totalorder %s45, 0
      %p364 = por %p362, %p363
      %p365 = scmp.ne.s32.totalorder %s357, %s359
      %p366 = scmp.eq.s32.totalorder %s50, 1
      %p367 = por %p365, %p366
      %p368 = scmp.ne.s32.totalorder %s359, %s360
      %p369 = scmp.eq.s32.totalorder %s50, 0
      %p370 = por %p368, %p369
      %p371 = scmp.ne.s32.totalorder %s359, %s360
      %p372 = scmp.eq.s32.totalorder %s51, 1
      %p373 = por %p371, %p372
      %p375 = scmp.ne.s32.totalorder %s360, %s374
      %p376 = scmp.eq.s32.totalorder %s51, 0
      %p377 = por %p375, %p376
      %s379 = sadd.s32 %s378, 1
      %p382 = scmp.eq.s32.totalorder %s45, 1
      %p383 = scmp.ne.s32.totalorder %s378, %s380
      %p384 = scmp.eq.s32.totalorder %s45, 0
      %p385 = por %p383, %p384
      %p386 = scmp.ne.s32.totalorder %s378, %s380
      %p387 = scmp.eq.s32.totalorder %s50, 1
      %p388 = por %p386, %p387
      %p389 = scmp.ne.s32.totalorder %s380, %s381
      %p390 = scmp.eq.s32.totalorder %s50, 0
      %p391 = por %p389, %p390
      %p392 = scmp.ne.s32.totalorder %s380, %s381
      %p393 = scmp.eq.s32.totalorder %s51, 1
      %p394 = por %p392, %p393
      %p396 = scmp.ne.s32.totalorder %s381, %s395
      %p397 = scmp.eq.s32.totalorder %s51, 0
      %p398 = por %p396, %p397
      %s400 = sadd.s32 %s399, 1
      %p403 = scmp.eq.s32.totalorder %s45, 1
      %p404 = scmp.ne.s32.totalorder %s399, %s401
      %p405 = scmp.eq.s32.totalorder %s45, 0
      %p406 = por %p404, %p405
      %p407 = scmp.ne.s32.totalorder %s399, %s401
      %p408 = scmp.eq.s32.totalorder %s50, 1
      %p409 = por %p407, %p408
      %p410 = scmp.ne.s32.totalorder %s401, %s402
      %p411 = scmp.eq.s32.totalorder %s50, 0
      %p412 = por %p410, %p411
      %p413 = scmp.ne.s32.totalorder %s401, %s402
      %p414 = scmp.eq.s32.totalorder %s51, 1
      %p415 = por %p413, %p414
      %p417 = scmp.ne.s32.totalorder %s402, %s416
      %p418 = scmp.eq.s32.totalorder %s51, 0
      %p419 = por %p417, %p418
      %s421 = sadd.s32 %s420, 1
      %p424 = scmp.eq.s32.totalorder %s45, 1
      %p425 = scmp.ne.s32.totalorder %s420, %s422
      %p426 = scmp.eq.s32.totalorder %s45, 0
      %p427 = por %p425, %p426
      %p428 = scmp.ne.s32.totalorder %s420, %s422
      %p429 = scmp.eq.s32.totalorder %s50, 1
      %p430 = por %p428, %p429
      %p431 = scmp.ne.s32.totalorder %s422, %s423
      %p432 = scmp.eq.s32.totalorder %s50, 0
      %p433 = por %p431, %p432
      %p434 = scmp.ne.s32.totalorder %s422, %s423
      %p435 = scmp.eq.s32.totalorder %s51, 1
      %p436 = por %p434, %p435
      %p438 = scmp.ne.s32.totalorder %s423, %s437
      %p439 = scmp.eq.s32.totalorder %s51, 0
      %p440 = por %p438, %p439
      %s442 = sadd.s32 %s441, 1
      %p445 = scmp.eq.s32.totalorder %s45, 1
      %p446 = scmp.ne.s32.totalorder %s441, %s443
      %p447 = scmp.eq.s32.totalorder %s45, 0
      %p448 = por %p446, %p447
      %p449 = scmp.ne.s32.totalorder %s441, %s443
      %p450 = scmp.eq.s32.totalorder %s50, 1
      %p451 = por %p449, %p450
      %p452 = scmp.ne.s32.totalorder %s443, %s444
      %p453 = scmp.eq.s32.totalorder %s50, 0
      %p454 = por %p452, %p453
      %p455 = scmp.ne.s32.totalorder %s443, %s444
      %p456 = scmp.eq.s32.totalorder %s51, 1
      %p457 = por %p455, %p456
      %p459 = scmp.ne.s32.totalorder %s444, %s458
      %p460 = scmp.eq.s32.totalorder %s51, 0
      %p461 = por %p459, %p460
      %s463 = sadd.s32 %s462, 1
      %p466 = scmp.eq.s32.totalorder %s45, 1
      %p467 = scmp.ne.s32.totalorder %s462, %s464
      %p468 = scmp.eq.s32.totalorder %s45, 0
      %p469 = por %p467, %p468
      %p470 = scmp.ne.s32.totalorder %s462, %s464
      %p471 = scmp.eq.s32.totalorder %s50, 1
      %p472 = por %p470, %p471
      %p473 = scmp.ne.s32.totalorder %s464, %s465
      %p474 = scmp.eq.s32.totalorder %s50, 0
      %p475 = por %p473, %p474
      %p476 = scmp.ne.s32.totalorder %s464, %s465
      %p477 = scmp.eq.s32.totalorder %s51, 1
      %p478 = por %p476, %p477
      %p480 = scmp.ne.s32.totalorder %s465, %s479
      %p481 = scmp.eq.s32.totalorder %s51, 0
      %p482 = por %p480, %p481
      %s484 = sadd.s32 %s483, 1
      %p487 = scmp.eq.s32.totalorder %s45, 1
      %p488 = scmp.ne.s32.totalorder %s483, %s485
      %p489 = scmp.eq.s32.totalorder %s45, 0
      %p490 = por %p488, %p489
      %p491 = scmp.ne.s32.totalorder %s483, %s485
      %p492 = scmp.eq.s32.totalorder %s50, 1
      %p493 = por %p491, %p492
      %p494 = scmp.ne.s32.totalorder %s485, %s486
      %p495 = scmp.eq.s32.totalorder %s50, 0
      %p496 = por %p494, %p495
      %p497 = scmp.ne.s32.totalorder %s485, %s486
      %p498 = scmp.eq.s32.totalorder %s51, 1
      %p499 = por %p497, %p498
      %p501 = scmp.ne.s32.totalorder %s486, %s500
      %p502 = scmp.eq.s32.totalorder %s51, 0
      %p503 = por %p501, %p502
      %s505 = sadd.s32 %s504, 1
      %p508 = scmp.eq.s32.totalorder %s45, 1
      %p509 = scmp.ne.s32.totalorder %s504, %s506
      %p510 = scmp.eq.s32.totalorder %s45, 0
      %p511 = por %p509, %p510
      %p512 = scmp.ne.s32.totalorder %s504, %s506
      %p513 = scmp.eq.s32.totalorder %s50, 1
      %p514 = por %p512, %p513
      %p515 = scmp.ne.s32.totalorder %s506, %s507
      %p516 = scmp.eq.s32.totalorder %s50, 0
      %p517 = por %p515, %p516
      %p518 = scmp.ne.s32.totalorder %s506, %s507
      %p519 = scmp.eq.s32.totalorder %s51, 1
      %p520 = por %p518, %p519
      %p522 = scmp.ne.s32.totalorder %s507, %s521
      %p523 = scmp.eq.s32.totalorder %s51, 0
      %p524 = por %p522, %p523
      %s526 = sadd.s32 %s525, 1
      %p529 = scmp.eq.s32.totalorder %s45, 1
      %p530 = scmp.ne.s32.totalorder %s525, %s527
      %p531 = scmp.eq.s32.totalorder %s45, 0
      %p532 = por %p530, %p531
      %p533 = scmp.ne.s32.totalorder %s525, %s527
      %p534 = scmp.eq.s32.totalorder %s50, 1
      %p535 = por %p533, %p534
      %p536 = scmp.ne.s32.totalorder %s527, %s528
      %p537 = scmp.eq.s32.totalorder %s50, 0
      %p538 = por %p536, %p537
      %p539 = scmp.ne.s32.totalorder %s527, %s528
      %p540 = scmp.eq.s32.totalorder %s51, 1
      %p541 = por %p539, %p540
      %p543 = scmp.ne.s32.totalorder %s528, %s542
      %p544 = scmp.eq.s32.totalorder %s51, 0
      %p545 = por %p543, %p544
      %s547 = sadd.s32 %s546, 1
      %p550 = scmp.eq.s32.totalorder %s45, 1
      %p551 = scmp.ne.s32.totalorder %s546, %s548
      %p552 = scmp.eq.s32.totalorder %s45, 0
      %p553 = por %p551, %p552
      %p554 = scmp.ne.s32.totalorder %s546, %s548
      %p555 = scmp.eq.s32.totalorder %s50, 1
      %p556 = por %p554, %p555
      %p557 = scmp.ne.s32.totalorder %s548, %s549
      %p558 = scmp.eq.s32.totalorder %s50, 0
      %p559 = por %p557, %p558
      %p560 = scmp.ne.s32.totalorder %s548, %s549
      %p561 = scmp.eq.s32.totalorder %s51, 1
      %p562 = por %p560, %p561
      %p564 = scmp.ne.s32.totalorder %s549, %s563
      %p565 = scmp.eq.s32.totalorder %s51, 0
      %p566 = por %p564, %p565
      %s568 = sadd.s32 %s567, 1
      %p571 = scmp.eq.s32.totalorder %s45, 1
      %p572 = scmp.ne.s32.totalorder %s567, %s569
      %p573 = scmp.eq.s32.totalorder %s45, 0
      %p574 = por %p572, %p573
      %p575 = scmp.ne.s32.totalorder %s567, %s569
      %p576 = scmp.eq.s32.totalorder %s50, 1
      %p577 = por %p575, %p576
      %p578 = scmp.ne.s32.totalorder %s569, %s570
      %p579 = scmp.eq.s32.totalorder %s50, 0
      %p580 = por %p578, %p579
      %p581 = scmp.ne.s32.totalorder %s569, %s570
      %p582 = scmp.eq.s32.totalorder %s51, 1
      %p583 = por %p581, %p582
      %p585 = scmp.ne.s32.totalorder %s570, %s584
      %p586 = scmp.eq.s32.totalorder %s51, 0
      %p587 = por %p585, %p586
      %s589 = sadd.s32 %s588, 1
      %p592 = scmp.eq.s32.totalorder %s45, 1
      %p593 = scmp.ne.s32.totalorder %s588, %s590
      %p594 = scmp.eq.s32.totalorder %s45, 0
      %p595 = por %p593, %p594
      %p596 = scmp.ne.s32.totalorder %s588, %s590
      %p597 = scmp.eq.s32.totalorder %s50, 1
      %p598 = por %p596, %p597
      %p599 = scmp.ne.s32.totalorder %s590, %s591
      %p600 = scmp.eq.s32.totalorder %s50, 0
      %p601 = por %p599, %p600
      %p602 = scmp.ne.s32.totalorder %s590, %s591
      %p603 = scmp.eq.s32.totalorder %s51, 1
      %p604 = por %p602, %p603
      %p606 = scmp.ne.s32.totalorder %s591, %s605
      %p607 = scmp.eq.s32.totalorder %s51, 0
      %p608 = por %p606, %p607
      %s610 = sadd.s32 %s609, 1
      %p613 = scmp.eq.s32.totalorder %s45, 1
      %p614 = scmp.ne.s32.totalorder %s609, %s611
      %p615 = scmp.eq.s32.totalorder %s45, 0
      %p616 = por %p614, %p615
      %p617 = scmp.ne.s32.totalorder %s609, %s611
      %p618 = scmp.eq.s32.totalorder %s50, 1
      %p619 = por %p617, %p618
      %p620 = scmp.ne.s32.totalorder %s611, %s612
      %p621 = scmp.eq.s32.totalorder %s50, 0
      %p622 = por %p620, %p621
      %p623 = scmp.ne.s32.totalorder %s611, %s612
      %p624 = scmp.eq.s32.totalorder %s51, 1
      %p625 = por %p623, %p624
      %p627 = scmp.ne.s32.totalorder %s612, %s626
      %p628 = scmp.eq.s32.totalorder %s51, 0
      %p629 = por %p627, %p628
      %s631 = sadd.s32 %s630, 1
      %p634 = scmp.eq.s32.totalorder %s45, 1
      %p635 = scmp.ne.s32.totalorder %s630, %s632
      %p636 = scmp.eq.s32.totalorder %s45, 0
      %p637 = por %p635, %p636
      %p638 = scmp.ne.s32.totalorder %s630, %s632
      %p639 = scmp.eq.s32.totalorder %s50, 1
      %p640 = por %p638, %p639
      %p641 = scmp.ne.s32.totalorder %s632, %s633
      %p642 = scmp.eq.s32.totalorder %s50, 0
      %p643 = por %p641, %p642
      %p644 = scmp.ne.s32.totalorder %s632, %s633
      %p645 = scmp.eq.s32.totalorder %s51, 1
      %p646 = por %p644, %p645
      %p648 = scmp.ne.s32.totalorder %s633, %s647
      %p649 = scmp.eq.s32.totalorder %s51, 0
      %p650 = por %p648, %p649
      %s651 = ssub.s32 %s45, %s52
      %p652 = scmp.eq.s32.totalorder %s651, 0
      %s654 = sadd.s32 %s653, 1
      %s655 = scalar_select %p652, %s653, %s654
      %p658 = pneg %p652
      %p659 = scmp.eq.s32.totalorder %s45, 1
      %p660 = por %p658, %p659
      %p661 = scmp.ne.s32.totalorder %s653, %s656
      %p662 = scmp.eq.s32.totalorder %s45, 0
      %p663 = por %p661, %p662
      %p664 = scmp.ne.s32.totalorder %s653, %s656
      %p665 = scmp.eq.s32.totalorder %s50, 1
      %p666 = por %p664, %p665
      %p667 = scmp.ne.s32.totalorder %s656, %s657
      %p668 = scmp.eq.s32.totalorder %s50, 0
      %p669 = por %p667, %p668
      %p670 = scmp.ne.s32.totalorder %s656, %s657
      %p671 = scmp.eq.s32.totalorder %s51, 1
      %p672 = por %p670, %p671
      %p674 = scmp.ne.s32.totalorder %s657, %s673
      %p675 = scmp.eq.s32.totalorder %s51, 0
      %p676 = por %p674, %p675
      %p677 = scmp.le.s32.totalorder 1, %s45
      %p678 = scmp.lt.s32.totalorder %s45, 3
      %p679 = pnand %p677, %p678
      %p680 = pneg %p679
      // Predicated region
      $region9: #{_lambda_.1} parent=5 // pred_check
        _
      $region10: #{_lambda_.1} parent=5 // pred_check_branch
        %682 = sbr.rel (%p679) target = $region12
      $region11: #{_lambda_.1} parent=5 // pred_region
        %s683 = ssub.s32 %s45, 1
        // Predicated region
        $region13: #{_lambda_.1} parent=11 // pred_check
          %p684 = pneg %p118
        $region14: #{_lambda_.1} parent=11 // pred_check_branch
          %686 = sbr.rel (%p684) target = $region16
        $region15: #{_lambda_.1} parent=11 // pred_region
          _
        $region16: #{_lambda_.1} parent=11 // pred_fallthru
          _
        // Predicated region
        $region17: #{_lambda_.1} parent=11 // pred_check
          %p687 = pneg %p139
        $region18: #{_lambda_.1} parent=11 // pred_check_branch
          %689 = sbr.rel (%p687) target = $region20
        $region19: #{_lambda_.1} parent=11 // pred_region
          %s691 = ssub.s32 128, 128
          %692 = vsyncadd [#allocation3], %s691
          %s694 = sshll.u32 [#allocation2], 4
          %s695 = int_to_ptr.vmem [resolvable:$true] %s694
          %697 = dma.hbm_to_vmem [thread:$0]  %s3, 128, %s695, [#allocation3]
        $region20: #{_lambda_.1} parent=11 // pred_fallthru
          _
        // Predicated region
        $region21: #{_lambda_.1} parent=11 // pred_check
          %p698 = pneg %p160
        $region22: #{_lambda_.1} parent=11 // pred_check_branch
          %700 = sbr.rel (%p698) target = $region24
        $region23: #{_lambda_.1} parent=11 // pred_region
          _
        $region24: #{_lambda_.1} parent=11 // pred_fallthru
          _
        // Predicated region
        $region25: #{_lambda_.1} parent=11 // pred_check
          %p701 = pneg %p181
        $region26: #{_lambda_.1} parent=11 // pred_check_branch
          %703 = sbr.rel (%p701) target = $region28
        $region27: #{_lambda_.1} parent=11 // pred_region
          _
        $region28: #{_lambda_.1} parent=11 // pred_fallthru
          _
        // Predicated region
        $region29: #{_lambda_.1} parent=11 // pred_check
          %p704 = pneg %p202
        $region30: #{_lambda_.1} parent=11 // pred_check_branch
          %706 = sbr.rel (%p704) target = $region32
        $region31: #{_lambda_.1} parent=11 // pred_region
          _
        $region32: #{_lambda_.1} parent=11 // pred_fallthru
          _
        // Predicated region
        $region33: #{_lambda_.1} parent=11 // pred_check
          %p707 = pneg %p223
        $region34: #{_lambda_.1} parent=11 // pred_check_branch
          %709 = sbr.rel (%p707) target = $region36
        $region35: #{_lambda_.1} parent=11 // pred_region
          _
        $region36: #{_lambda_.1} parent=11 // pred_fallthru
          _
        // Predicated region
        $region37: #{_lambda_.1} parent=11 // pred_check
          %p710 = pneg %p244
        $region38: #{_lambda_.1} parent=11 // pred_check_branch
          %712 = sbr.rel (%p710) target = $region40
        $region39: #{_lambda_.1} parent=11 // pred_region
          _
        $region40: #{_lambda_.1} parent=11 // pred_fallthru
          _
        // Predicated region
        $region41: #{_lambda_.1} parent=11 // pred_check
          %p713 = pneg %p265
        $region42: #{_lambda_.1} parent=11 // pred_check_branch
          %715 = sbr.rel (%p713) target = $region44
        $region43: #{_lambda_.1} parent=11 // pred_region
          _
        $region44: #{_lambda_.1} parent=11 // pred_fallthru
          _
        // Predicated region
        $region45: #{_lambda_.1} parent=11 // pred_check
          %p716 = pneg %p286
        $region46: #{_lambda_.1} parent=11 // pred_check_branch
          %718 = sbr.rel (%p716) target = $region48
        $region47: #{_lambda_.1} parent=11 // pred_region
          _
        $region48: #{_lambda_.1} parent=11 // pred_fallthru
          _
        // Predicated region
        $region49: #{_lambda_.1} parent=11 // pred_check
          %p719 = pneg %p307
        $region50: #{_lambda_.1} parent=11 // pred_check_branch
          %721 = sbr.rel (%p719) target = $region52
        $region51: #{_lambda_.1} parent=11 // pred_region
          %s723 = ssub.s32 16, 16
          %724 = vsyncadd [#allocation6], %s723
          %s726 = sshll.u32 [#allocation5], 4
          %s727 = int_to_ptr.vmem [resolvable:$true] %s726
          %729 = dma.hbm_to_vmem [thread:$0]  %s11, 16, %s727, [#allocation6]
        $region52: #{_lambda_.1} parent=11 // pred_fallthru
          _
        // Predicated region
        $region53: #{_lambda_.1} parent=11 // pred_check
          %p730 = pneg %p328
        $region54: #{_lambda_.1} parent=11 // pred_check_branch
          %732 = sbr.rel (%p730) target = $region56
        $region55: #{_lambda_.1} parent=11 // pred_region
          _
        $region56: #{_lambda_.1} parent=11 // pred_fallthru
          _
        // Predicated region
        $region57: #{_lambda_.1} parent=11 // pred_check
          %p733 = pneg %p349
        $region58: #{_lambda_.1} parent=11 // pred_check_branch
          %735 = sbr.rel (%p733) target = $region60
        $region59: #{_lambda_.1} parent=11 // pred_region
          _
        $region60: #{_lambda_.1} parent=11 // pred_fallthru
          _
        // Predicated region
        $region61: #{_lambda_.1} parent=11 // pred_check
          %p736 = pneg %p370
        $region62: #{_lambda_.1} parent=11 // pred_check_branch
          %738 = sbr.rel (%p736) target = $region64
        $region63: #{_lambda_.1} parent=11 // pred_region
          _
        $region64: #{_lambda_.1} parent=11 // pred_fallthru
          _
        // Predicated region
        $region65: #{_lambda_.1} parent=11 // pred_check
          %p739 = pneg %p391
        $region66: #{_lambda_.1} parent=11 // pred_check_branch
          %741 = sbr.rel (%p739) target = $region68
        $region67: #{_lambda_.1} parent=11 // pred_region
          %s743 = ssub.s32 16, 16
          %744 = vsyncadd [#allocation6], %s743
          %s746 = sshll.u32 [#allocation7], 4
          %s747 = int_to_ptr.vmem [resolvable:$true] %s746
          %749 = dma.hbm_to_vmem [thread:$0]  %s15, 16, %s747, [#allocation6]
        $region68: #{_lambda_.1} parent=11 // pred_fallthru
          _
        // Predicated region
        $region69: #{_lambda_.1} parent=11 // pred_check
          %p750 = pneg %p412
        $region70: #{_lambda_.1} parent=11 // pred_check_branch
          %752 = sbr.rel (%p750) target = $region72
        $region71: #{_lambda_.1} parent=11 // pred_region
          %s754 = ssub.s32 256, 256
          %755 = vsyncadd [#allocation9], %s754
          %s756 = sshll.u32 [#allocation8], 4
          %s757 = int_to_ptr.vmem [resolvable:$true] %s756
          %762 = dma.hbm_to_vmem [thread:$0]  %s16, 256, %s757, [#allocation9], 64, 64, 4
        $region72: #{_lambda_.1} parent=11 // pred_fallthru
          _
        // Predicated region
        $region73: #{_lambda_.1} parent=11 // pred_check
          %p763 = pneg %p433
        $region74: #{_lambda_.1} parent=11 // pred_check_branch
          %765 = sbr.rel (%p763) target = $region76
        $region75: #{_lambda_.1} parent=11 // pred_region
          %s767 = ssub.s32 16, 16
          %768 = vsyncadd [#allocation9], %s767
          %s770 = sshll.u32 [#allocation10], 4
          %s771 = int_to_ptr.vmem [resolvable:$true] %s770
          %773 = dma.hbm_to_vmem [thread:$0]  %s17, 16, %s771, [#allocation9]
        $region76: #{_lambda_.1} parent=11 // pred_fallthru
          _
        // Predicated region
        $region77: #{_lambda_.1} parent=11 // pred_check
          %p774 = pneg %p454
        $region78: #{_lambda_.1} parent=11 // pred_check_branch
          %776 = sbr.rel (%p774) target = $region80
        $region79: #{_lambda_.1} parent=11 // pred_region
          %s778 = ssub.s32 128, 128
          %779 = vsyncadd [#allocation12], %s778
          %s780 = sshll.u32 [#allocation11], 4
          %s781 = int_to_ptr.vmem [resolvable:$true] %s780
          %786 = dma.hbm_to_vmem [thread:$0]  %s18, 128, %s781, [#allocation12], 64, 64, 4
        $region80: #{_lambda_.1} parent=11 // pred_fallthru
          _
        // Predicated region
        $region81: #{_lambda_.1} parent=11 // pred_check
          %p787 = pneg %p475
        $region82: #{_lambda_.1} parent=11 // pred_check_branch
          %789 = sbr.rel (%p787) target = $region84
        $region83: #{_lambda_.1} parent=11 // pred_region
          %s791 = ssub.s32 16, 16
          %792 = vsyncadd [#allocation12], %s791
          %s794 = sshll.u32 [#allocation13], 4
          %s795 = int_to_ptr.vmem [resolvable:$true] %s794
          %797 = dma.hbm_to_vmem [thread:$0]  %s19, 16, %s795, [#allocation12]
        $region84: #{_lambda_.1} parent=11 // pred_fallthru
          _
        // Predicated region
        $region85: #{_lambda_.1} parent=11 // pred_check
          %p798 = pneg %p496
        $region86: #{_lambda_.1} parent=11 // pred_check_branch
          %800 = sbr.rel (%p798) target = $region88
        $region87: #{_lambda_.1} parent=11 // pred_region
          %s802 = ssub.s32 128, 128
          %803 = vsyncadd [#allocation15], %s802
          %s804 = sshll.u32 [#allocation14], 4
          %s805 = int_to_ptr.vmem [resolvable:$true] %s804
          %810 = dma.hbm_to_vmem [thread:$0]  %s20, 128, %s805, [#allocation15], 64, 64, 4
        $region88: #{_lambda_.1} parent=11 // pred_fallthru
          _
        // Predicated region
        $region89: #{_lambda_.1} parent=11 // pred_check
          %p811 = pneg %p517
        $region90: #{_lambda_.1} parent=11 // pred_check_branch
          %813 = sbr.rel (%p811) target = $region92
        $region91: #{_lambda_.1} parent=11 // pred_region
          %s815 = ssub.s32 16, 16
          %816 = vsyncadd [#allocation15], %s815
          %s818 = sshll.u32 [#allocation16], 4
          %s819 = int_to_ptr.vmem [resolvable:$true] %s818
          %821 = dma.hbm_to_vmem [thread:$0]  %s21, 16, %s819, [#allocation15]
        $region92: #{_lambda_.1} parent=11 // pred_fallthru
          _
        // Predicated region
        $region93: #{_lambda_.1} parent=11 // pred_check
          %p822 = pneg %p538
        $region94: #{_lambda_.1} parent=11 // pred_check_branch
          %824 = sbr.rel (%p822) target = $region96
        $region95: #{_lambda_.1} parent=11 // pred_region
          %s826 = ssub.s32 256, 256
          %827 = vsyncadd [#allocation18], %s826
          %s828 = sshll.u32 [#allocation17], 4
          %s829 = int_to_ptr.vmem [resolvable:$true] %s828
          %834 = dma.hbm_to_vmem [thread:$0]  %s22, 256, %s829, [#allocation18], 64, 64, 4
        $region96: #{_lambda_.1} parent=11 // pred_fallthru
          _
        // Predicated region
        $region97: #{_lambda_.1} parent=11 // pred_check
          %p835 = pneg %p559
        $region98: #{_lambda_.1} parent=11 // pred_check_branch
          %837 = sbr.rel (%p835) target = $region100
        $region99: #{_lambda_.1} parent=11 // pred_region
          %s839 = ssub.s32 16, 16
          %840 = vsyncadd [#allocation18], %s839
          %s842 = sshll.u32 [#allocation19], 4
          %s843 = int_to_ptr.vmem [resolvable:$true] %s842
          %845 = dma.hbm_to_vmem [thread:$0]  %s23, 16, %s843, [#allocation18]
        $region100: #{_lambda_.1} parent=11 // pred_fallthru
          _
        // Predicated region
        $region101: #{_lambda_.1} parent=11 // pred_check
          %p846 = pneg %p580
        $region102: #{_lambda_.1} parent=11 // pred_check_branch
          %848 = sbr.rel (%p846) target = $region104
        $region103: #{_lambda_.1} parent=11 // pred_region
          %s850 = ssub.s32 256, 256
          %851 = vsyncadd [#allocation21], %s850
          %s852 = sshll.u32 [#allocation20], 4
          %s853 = int_to_ptr.vmem [resolvable:$true] %s852
          %858 = dma.hbm_to_vmem [thread:$0]  %s24, 256, %s853, [#allocation21], 64, 64, 4
        $region104: #{_lambda_.1} parent=11 // pred_fallthru
          _
        // Predicated region
        $region105: #{_lambda_.1} parent=11 // pred_check
          %p859 = pneg %p601
        $region106: #{_lambda_.1} parent=11 // pred_check_branch
          %861 = sbr.rel (%p859) target = $region108
        $region107: #{_lambda_.1} parent=11 // pred_region
          %s863 = ssub.s32 16, 16
          %864 = vsyncadd [#allocation21], %s863
          %s866 = sshll.u32 [#allocation22], 4
          %s867 = int_to_ptr.vmem [resolvable:$true] %s866
          %869 = dma.hbm_to_vmem [thread:$0]  %s25, 16, %s867, [#allocation21]
        $region108: #{_lambda_.1} parent=11 // pred_fallthru
          _
        // Predicated region
        $region109: #{_lambda_.1} parent=11 // pred_check
          %p870 = pneg %p622
        $region110: #{_lambda_.1} parent=11 // pred_check_branch
          %872 = sbr.rel (%p870) target = $region112
        $region111: #{_lambda_.1} parent=11 // pred_region
          _
        $region112: #{_lambda_.1} parent=11 // pred_fallthru
          _
        // Predicated region
        $region113: #{_lambda_.1} parent=11 // pred_check
          %p873 = pneg %p643
        $region114: #{_lambda_.1} parent=11 // pred_check_branch
          %875 = sbr.rel (%p873) target = $region116
        $region115: #{_lambda_.1} parent=11 // pred_region
          %s877 = ssub.s32 16, 16
          %878 = vsyncadd [#allocation24], %s877
          %s880 = sshll.u32 [#allocation23], 4
          %s881 = int_to_ptr.vmem [resolvable:$true] %s880
          %883 = dma.hbm_to_vmem [thread:$0]  %s27, 16, %s881, [#allocation24]
        $region116: #{_lambda_.1} parent=11 // pred_fallthru
          _
      $region12: #{_lambda_.1} parent=5 // pred_fallthru
        _
      %p884 = scmp.lt.s32.totalorder %s45, 2
      // Predicated region
      $region117: #{_lambda_.1} parent=5 // pred_check
        %p885 = pneg %p884
      $region118: #{_lambda_.1} parent=5 // pred_check_branch
        %887 = sbr.rel (%p885) target = $region120
      $region119: #{_lambda_.1} parent=5 // pred_region
        // Predicated region
        $region121: #{_lambda_.1} parent=119 // pred_check
          %p888 = pneg %p65
        $region122: #{_lambda_.1} parent=119 // pred_check_branch
          %890 = sbr.rel (%p888) target = $region124
        $region123: #{_lambda_.1} parent=119 // pred_region
          %p891 = scmp.lt.s32.totalorder %s45, 1
          %s892 = scalar_select %p891, %s45, 1
          %s893 = smul.addr %s892, 8
          %s894 = scalar_lea.vmem %s0, %s893
        $region124: #{_lambda_.1} parent=119 // pred_fallthru
          _
        // Predicated region
        $region125: #{_lambda_.1} parent=119 // pred_check
          %p895 = pneg %p91
        $region126: #{_lambda_.1} parent=119 // pred_check_branch
          %897 = sbr.rel (%p895) target = $region128
        $region127: #{_lambda_.1} parent=119 // pred_region
          %p898 = scmp.lt.s32.totalorder %s45, 1
          %s899 = scalar_select %p898, %s45, 1
          %s900 = smul.addr %s899, 8
          %s901 = scalar_lea.vmem %s1, %s900
        $region128: #{_lambda_.1} parent=119 // pred_fallthru
          _
      $region120: #{_lambda_.1} parent=5 // pred_fallthru
        _
      %p902 = scmp.le.s32.totalorder 1, %s45
      %p903 = scmp.lt.s32.totalorder %s45, 3
      %p904 = pnand %p902, %p903
      %p905 = pneg %p904
      // Predicated region
      $region129: #{_lambda_.1} parent=5 // pred_check
        _
      $region130: #{_lambda_.1} parent=5 // pred_check_branch
        %907 = sbr.rel (%p904) target = $region132
      $region131: #{_lambda_.1} parent=5 // pred_region
        %s908 = ssub.s32 %s45, 1
        // Predicated region
        $region133: #{_lambda_.1} parent=131 // pred_check
          %p909 = pneg %p139
        $region134: #{_lambda_.1} parent=131 // pred_check_branch
          %911 = sbr.rel (%p909) target = $region136
        $region135: #{_lambda_.1} parent=131 // pred_region
          %912 = dma.done [#allocation3], 128
        $region136: #{_lambda_.1} parent=131 // pred_fallthru
          _
        // Predicated region
        $region137: #{_lambda_.1} parent=131 // pred_check
          %p913 = pneg %p307
        $region138: #{_lambda_.1} parent=131 // pred_check_branch
          %915 = sbr.rel (%p913) target = $region140
        $region139: #{_lambda_.1} parent=131 // pred_region
          %916 = dma.done [#allocation6], 16
        $region140: #{_lambda_.1} parent=131 // pred_fallthru
          _
        // Predicated region
        $region141: #{_lambda_.1} parent=131 // pred_check
          %p917 = pneg %p391
        $region142: #{_lambda_.1} parent=131 // pred_check_branch
          %919 = sbr.rel (%p917) target = $region144
        $region143: #{_lambda_.1} parent=131 // pred_region
          %920 = dma.done [#allocation6], 16
        $region144: #{_lambda_.1} parent=131 // pred_fallthru
          _
        // Predicated region
        $region145: #{_lambda_.1} parent=131 // pred_check
          %p921 = pneg %p412
        $region146: #{_lambda_.1} parent=131 // pred_check_branch
          %923 = sbr.rel (%p921) target = $region148
        $region147: #{_lambda_.1} parent=131 // pred_region
          %924 = dma.done [#allocation9], 256
        $region148: #{_lambda_.1} parent=131 // pred_fallthru
          _
        // Predicated region
        $region149: #{_lambda_.1} parent=131 // pred_check
          %p925 = pneg %p433
        $region150: #{_lambda_.1} parent=131 // pred_check_branch
          %927 = sbr.rel (%p925) target = $region152
        $region151: #{_lambda_.1} parent=131 // pred_region
          %928 = dma.done [#allocation9], 16
        $region152: #{_lambda_.1} parent=131 // pred_fallthru
          _
        // Predicated region
        $region153: #{_lambda_.1} parent=131 // pred_check
          %p929 = pneg %p454
        $region154: #{_lambda_.1} parent=131 // pred_check_branch
          %931 = sbr.rel (%p929) target = $region156
        $region155: #{_lambda_.1} parent=131 // pred_region
          %932 = dma.done [#allocation12], 128
        $region156: #{_lambda_.1} parent=131 // pred_fallthru
          _
        // Predicated region
        $region157: #{_lambda_.1} parent=131 // pred_check
          %p933 = pneg %p475
        $region158: #{_lambda_.1} parent=131 // pred_check_branch
          %935 = sbr.rel (%p933) target = $region160
        $region159: #{_lambda_.1} parent=131 // pred_region
          %936 = dma.done [#allocation12], 16
        $region160: #{_lambda_.1} parent=131 // pred_fallthru
          _
        // Predicated region
        $region161: #{_lambda_.1} parent=131 // pred_check
          %p937 = pneg %p496
        $region162: #{_lambda_.1} parent=131 // pred_check_branch
          %939 = sbr.rel (%p937) target = $region164
        $region163: #{_lambda_.1} parent=131 // pred_region
          %940 = dma.done [#allocation15], 128
        $region164: #{_lambda_.1} parent=131 // pred_fallthru
          _
        // Predicated region
        $region165: #{_lambda_.1} parent=131 // pred_check
          %p941 = pneg %p517
        $region166: #{_lambda_.1} parent=131 // pred_check_branch
          %943 = sbr.rel (%p941) target = $region168
        $region167: #{_lambda_.1} parent=131 // pred_region
          %944 = dma.done [#allocation15], 16
        $region168: #{_lambda_.1} parent=131 // pred_fallthru
          _
        // Predicated region
        $region169: #{_lambda_.1} parent=131 // pred_check
          %p945 = pneg %p538
        $region170: #{_lambda_.1} parent=131 // pred_check_branch
          %947 = sbr.rel (%p945) target = $region172
        $region171: #{_lambda_.1} parent=131 // pred_region
          %948 = dma.done [#allocation18], 256
        $region172: #{_lambda_.1} parent=131 // pred_fallthru
          _
        // Predicated region
        $region173: #{_lambda_.1} parent=131 // pred_check
          %p949 = pneg %p559
        $region174: #{_lambda_.1} parent=131 // pred_check_branch
          %951 = sbr.rel (%p949) target = $region176
        $region175: #{_lambda_.1} parent=131 // pred_region
          %952 = dma.done [#allocation18], 16
        $region176: #{_lambda_.1} parent=131 // pred_fallthru
          _
        // Predicated region
        $region177: #{_lambda_.1} parent=131 // pred_check
          %p953 = pneg %p580
        $region178: #{_lambda_.1} parent=131 // pred_check_branch
          %955 = sbr.rel (%p953) target = $region180
        $region179: #{_lambda_.1} parent=131 // pred_region
          %956 = dma.done [#allocation21], 256
        $region180: #{_lambda_.1} parent=131 // pred_fallthru
          _
        // Predicated region
        $region181: #{_lambda_.1} parent=131 // pred_check
          %p957 = pneg %p601
        $region182: #{_lambda_.1} parent=131 // pred_check_branch
          %959 = sbr.rel (%p957) target = $region184
        $region183: #{_lambda_.1} parent=131 // pred_region
          %960 = dma.done [#allocation21], 16
        $region184: #{_lambda_.1} parent=131 // pred_fallthru
          _
        // Predicated region
        $region185: #{_lambda_.1} parent=131 // pred_check
          %p961 = pneg %p643
        $region186: #{_lambda_.1} parent=131 // pred_check_branch
          %963 = sbr.rel (%p961) target = $region188
        $region187: #{_lambda_.1} parent=131 // pred_region
          %964 = dma.done [#allocation24], 16
        $region188: #{_lambda_.1} parent=131 // pred_fallthru
          _
        %p965 = scmp.lt.s32.totalorder %s50, 1
        %s966 = scalar_select %p965, %s50, 1
        %s967 = smul.addr %s966, 8
        %s968 = scalar_lea.vmem %s0, %s967
        %p969 = pneg %p71
        %p970 = pneg %p68
        %p971 = scmp.lt.s32.totalorder %s50, 1
        %s972 = scalar_select %p971, %s50, 1
        %s973 = smul.addr %s972, 8
        %s974 = scalar_lea.vmem %s1, %s973
        %p975 = pneg %p97
        %p976 = pneg %p94
        %p977 = pneg %p118
        %p978 = pneg %p115
        %p979 = pneg %p139
        %p980 = pneg %p136
        %p981 = pneg %p160
        %p982 = pneg %p157
        %p983 = pneg %p181
        %p984 = pneg %p178
        %p985 = pneg %p202
        %p986 = pneg %p199
        %p987 = pneg %p223
        %p988 = pneg %p220
        %p989 = pneg %p244
        %p990 = pneg %p241
        %p991 = pneg %p265
        %p992 = pneg %p262
        %p993 = pneg %p286
        %p994 = pneg %p283
        %p995 = pneg %p307
        %p996 = pneg %p304
        %p997 = pneg %p328
        %p998 = pneg %p325
        %p999 = pneg %p349
        %p1000 = pneg %p346
        %p1001 = pneg %p370
        %p1002 = pneg %p367
        %p1003 = pneg %p391
        %p1004 = pneg %p388
        %p1005 = pneg %p412
        %p1006 = pneg %p409
        %p1007 = pneg %p433
        %p1008 = pneg %p430
        %p1009 = pneg %p454
        %p1010 = pneg %p451
        %p1011 = pneg %p475
        %p1012 = pneg %p472
        %p1013 = pneg %p496
        %p1014 = pneg %p493
        %p1015 = pneg %p517
        %p1016 = pneg %p514
        %p1017 = pneg %p538
        %p1018 = pneg %p535
        %p1019 = pneg %p559
        %p1020 = pneg %p556
        %p1021 = pneg %p580
        %p1022 = pneg %p577
        %p1023 = pneg %p601
        %p1024 = pneg %p598
        %p1025 = pneg %p622
        %p1026 = pneg %p619
        %p1027 = pneg %p643
        %p1028 = pneg %p640
        %p1029 = pneg %p669
        %p1030 = pneg %p666
        %s1031 = sand.u32 %s656, 1
        %s1032 = scalar_lea.sflag [#allocation4], %s1031
        %s1033 = sand.u32 %s656, 1
        %s1034 = smul.addr %s1033, 8
        %s1035 = scalar_lea.vmem [#allocation25], %s1034
        %p1036 = scmp.lt.s32.totalorder %s50, 1
        %s1037 = scalar_select %p1036, %s50, 1
        %s1038 = smul.addr %s1037, 8
        %s1039 = scalar_lea.vmem %s0, %s1038
        %p1040 = scmp.lt.s32.totalorder %s50, 1
        %s1041 = scalar_select %p1040, %s50, 1
        %s1042 = smul.addr %s1041, 8
        %s1043 = scalar_lea.vmem %s1, %s1042
        %v1045 = vld [vmem:[%s1039] sm:$0xff]
        %v1046 = vld [vmem:[%s1043] sm:$0xff]
        %v1047 = vld [vmem:[%s2] sm:$0xff]
        %v1048 = vld [vmem:[#allocation2] sm:$0xff]
        %v1049 = vld [vmem:[%s4] sm:$0x1]
        %v1050 = vld [vmem:[%s5] sm:$0x1]
        %vm1051 = vcmask 261120
        %v1052 = vsel %vm1051, %v1045, 0.0
        %1053 = vadd.xlane.f32.xlu0 %v1052
        %v1054 = vpop.xlane.xlu0 %1053
        %v1055 = vrcp.pop 32.0
        %v1056 = vmul.f32 %v1054, %v1055
        %v1057 = vsub.f32 %v1045, %v1056
        %v1058 = vmul.f32 %v1057, %v1057
        %v1059 = vsel %vm1051, %v1058, 0.0
        %1060 = vadd.xlane.f32.xlu0 %v1059
        %v1061 = vpop.xlane.xlu0 %1060
        %v1062 = vmul.f32 %v1061, %v1055
        %v1063 = vadd.f32 %v1062, 1e-05
        %v1064 = vrsqrt.pop %v1063
        %v1065 = vmul.f32 %v1057, %v1064
        %v1067 = vlaneseq
        %v1068 = vshrl.u32 %v1067, 7
        %v1069 = vsub.s32 0, %v1068
        %v1070 = vrot.slane %v1049, %v1069
        %v1072 = vmul.f32 %v1065, %v1070
        %v1074 = vlaneseq
        %v1075 = vshrl.u32 %v1074, 7
        %v1076 = vsub.s32 0, %v1075
        %v1077 = vrot.slane %v1050, %v1076
        %v1079 = vadd.f32 %v1072, %v1077
        %v1080 = vadd.f32 %v1079, %v1047
        %v1081 = vld [vmem:[%s10] sm:$0xf]
        %v1082 = vld [vmem:[%s10 + $0x4] sm:$0xf]
        %v1083 = vld [vmem:[%s10 + $0x8] sm:$0xf]
        %v1084 = vld [vmem:[%s10 + $0xc] sm:$0xf]
        %v1085 = vld [vmem:[#allocation5] sm:$0x1]
        %v1086 = vpack.c.bf16 %v1080, %v1080
        %v1088 = vlaneseq
        %v1089 = vshrl.u32 %v1088, 7
        %v1090 = vsub.s32 0, %v1089
        %v1091 = vrot.slane %v1085, %v1090
        %v1097 = vunpack.c.l.b16 %v1081
        %v1098 = vunpack.c.l.b16 %v1082
        %v1099 = vunpack.c.l.b16 %v1083
        %v1100 = vunpack.c.l.b16 %v1084
        %v1101 = vpack.c.b16 %v1098, %v1097
        %v1102 = vpack.c.b16 %v1100, %v1099
        %v1106 = vsel %vm1051, %v1086, 0
        %1108 = vmatprep.subr.bf16.mxu0 0
        %1109 = vmatpush1.bf16.msra.mxu0 %v1101
        %1110 = vmatprep.subr.bf16.mxu0 0
        %1111 = vmatpush1.bf16.msra.mxu0 %v1102
        %1112 = vmatprep.subr.bf16.mxu0 0
        %1113 = vmatpush1.bf16.msra.mxu0 0
        %1114 = vmatprep.subr.bf16.mxu0 0
        %1115 = vmatpush1.bf16.msra.mxu0 0
        %1116 = vmatprep.subr.bf16.mxu0 0
        %1117 = vmatpush1.bf16.msra.mxu0 0
        %1118 = vmatprep.subr.bf16.mxu0 0
        %1119 = vmatpush1.bf16.msra.mxu0 0
        %1120 = vmatprep.subr.bf16.mxu0 0
        %1121 = vmatpush1.bf16.msra.mxu0 0
        %1122 = vmatprep.subr.bf16.mxu0 0
        %1123 = vmatpush1.bf16.msra.mxu0 0
        %1124 = vmatprep.subr.bf16.mxu0 0
        %1125 = vmatpush1.bf16.msra.mxu0 0
        %1126 = vmatprep.subr.bf16.mxu0 0
        %1127 = vmatpush1.bf16.msra.mxu0 0
        %1128 = vmatprep.subr.bf16.mxu0 0
        %1129 = vmatpush1.bf16.msra.mxu0 0
        %1130 = vmatprep.subr.bf16.mxu0 0
        %1131 = vmatpush1.bf16.msra.mxu0 0
        %1132 = vmatprep.subr.bf16.mxu0 0
        %1133 = vmatpush1.bf16.msra.mxu0 0
        %1134 = vmatprep.subr.bf16.mxu0 0
        %1135 = vmatpush1.bf16.msra.mxu0 0
        %1136 = vmatprep.subr.bf16.mxu0 0
        %1137 = vmatpush1.bf16.msra.mxu0 0
        %1138 = vmatprep.subr.bf16.mxu0 0
        %1139 = vmatpush1.bf16.msra.mxu0 0
        %1140 = vmatprep.mubr.bf16.mxu0 0
        %1141 = vmatmul.mubr.bf16.gmra.mrb[0].mxu0 %v1106
        %v1142 = vpop.f32.mrb[0].mxu0
        %v1143 = vadd.f32 %v1091, %v1142
        %v1144 = vpop.f32.mrb[0].mxu0
        %v1145 = vpop.f32.mrb[0].mxu0
        %v1146 = vpop.f32.mrb[0].mxu0
        %1147 = vdwg.mxu0
        %v1148 = vmul.f32 %v1143, 0.35355338
        %v1149 = vld [vmem:[%s12] sm:$0xf]
        %v1150 = vld [vmem:[%s12 + $0x4] sm:$0xf]
        %v1151 = vld [vmem:[%s12 + $0x8] sm:$0xf]
        %v1152 = vld [vmem:[%s12 + $0xc] sm:$0xf]
        %v1153 = vld [vmem:[%s13] sm:$0x1]
        %v1154 = vpack.c.bf16 %v1079, %v1079
        %v1156 = vlaneseq
        %v1157 = vshrl.u32 %v1156, 7
        %v1158 = vsub.s32 0, %v1157
        %v1159 = vrot.slane %v1153, %v1158
        %v1165 = vunpack.c.l.b16 %v1149
        %v1166 = vunpack.c.l.b16 %v1150
        %v1167 = vunpack.c.l.b16 %v1151
        %v1168 = vunpack.c.l.b16 %v1152
        %v1169 = vpack.c.b16 %v1166, %v1165
        %v1170 = vpack.c.b16 %v1168, %v1167
        %v1174 = vsel %vm1051, %v1154, 0
        %1176 = vmatprep.subr.bf16.mxu0 0
        %1177 = vmatpush1.bf16.msra.mxu0 %v1169
        %1178 = vmatprep.subr.bf16.mxu0 0
        %1179 = vmatpush1.bf16.msra.mxu0 %v1170
        %1180 = vmatprep.subr.bf16.mxu0 0
        %1181 = vmatpush1.bf16.msra.mxu0 0
        %1182 = vmatprep.subr.bf16.mxu0 0
        %1183 = vmatpush1.bf16.msra.mxu0 0
        %1184 = vmatprep.subr.bf16.mxu0 0
        %1185 = vmatpush1.bf16.msra.mxu0 0
        %1186 = vmatprep.subr.bf16.mxu0 0
        %1187 = vmatpush1.bf16.msra.mxu0 0
        %1188 = vmatprep.subr.bf16.mxu0 0
        %1189 = vmatpush1.bf16.msra.mxu0 0
        %1190 = vmatprep.subr.bf16.mxu0 0
        %1191 = vmatpush1.bf16.msra.mxu0 0
        %1192 = vmatprep.subr.bf16.mxu0 0
        %1193 = vmatpush1.bf16.msra.mxu0 0
        %1194 = vmatprep.subr.bf16.mxu0 0
        %1195 = vmatpush1.bf16.msra.mxu0 0
        %1196 = vmatprep.subr.bf16.mxu0 0
        %1197 = vmatpush1.bf16.msra.mxu0 0
        %1198 = vmatprep.subr.bf16.mxu0 0
        %1199 = vmatpush1.bf16.msra.mxu0 0
        %1200 = vmatprep.subr.bf16.mxu0 0
        %1201 = vmatpush1.bf16.msra.mxu0 0
        %1202 = vmatprep.subr.bf16.mxu0 0
        %1203 = vmatpush1.bf16.msra.mxu0 0
        %1204 = vmatprep.subr.bf16.mxu0 0
        %1205 = vmatpush1.bf16.msra.mxu0 0
        %1206 = vmatprep.subr.bf16.mxu0 0
        %1207 = vmatpush1.bf16.msra.mxu0 0
        %1208 = vmatprep.mubr.bf16.mxu0 0
        %1209 = vmatmul.mubr.bf16.gmra.mrb[0].mxu0 %v1174
        %v1210 = vpop.f32.mrb[0].mxu0
        %v1211 = vadd.f32 %v1159, %v1210
        %v1212 = vpop.f32.mrb[0].mxu0
        %v1213 = vpop.f32.mrb[0].mxu0
        %v1214 = vpop.f32.mrb[0].mxu0
        %1215 = vdwg.mxu0
        %v1216 = vld [vmem:[%s14] sm:$0xf]
        %v1217 = vld [vmem:[%s14 + $0x4] sm:$0xf]
        %v1218 = vld [vmem:[%s14 + $0x8] sm:$0xf]
        %v1219 = vld [vmem:[%s14 + $0xc] sm:$0xf]
        %v1220 = vld [vmem:[#allocation7] sm:$0x1]
        %v1221 = vpack.c.bf16 %v1148, %v1148
        %v1222 = vpack.c.bf16 %v1143, %v1143
        %v1223 = vpack.c.bf16 %v1211, %v1211
        %1225 = vrot.lane.b32.xlu0 %v1222, 96
        %v1226 = vpop.permute.xlu0 %1225
        %vm1227 = vcmask 64512
        %v1229 = vsel %vm1227, %v1221, 0
        %v1232 = vsel %vm1227, %v1226, 0
        %1234 = vmatprep.subr.bf16.mxu0 0
        %1235 = vmatpush1.bf16.xpose.msra.mxu0 %v1232
        %1236 = vmatprep.subr.bf16.mxu0 0
        %1237 = vmatpush1.bf16.xpose.msra.mxu0 0
        %1238 = vmatprep.subr.bf16.mxu0 0
        %1239 = vmatpush1.bf16.xpose.msra.mxu0 0
        %1240 = vmatprep.subr.bf16.mxu0 0
        %1241 = vmatpush1.bf16.xpose.msra.mxu0 0
        %1242 = vmatprep.subr.bf16.mxu0 0
        %1243 = vmatpush1.bf16.xpose.msra.mxu0 0
        %1244 = vmatprep.subr.bf16.mxu0 0
        %1245 = vmatpush1.bf16.xpose.msra.mxu0 0
        %1246 = vmatprep.subr.bf16.mxu0 0
        %1247 = vmatpush1.bf16.xpose.msra.mxu0 0
        %1248 = vmatprep.subr.bf16.mxu0 0
        %1249 = vmatpush1.bf16.xpose.msra.mxu0 0
        %1250 = vmatprep.subr.bf16.mxu0 0
        %1251 = vmatpush1.bf16.xpose.msra.mxu0 0
        %1252 = vmatprep.subr.bf16.mxu0 0
        %1253 = vmatpush1.bf16.xpose.msra.mxu0 0
        %1254 = vmatprep.subr.bf16.mxu0 0
        %1255 = vmatpush1.bf16.xpose.msra.mxu0 0
        %1256 = vmatprep.subr.bf16.mxu0 0
        %1257 = vmatpush1.bf16.xpose.msra.mxu0 0
        %1258 = vmatprep.subr.bf16.mxu0 0
        %1259 = vmatpush1.bf16.xpose.msra.mxu0 0
        %1260 = vmatprep.subr.bf16.mxu0 0
        %1261 = vmatpush1.bf16.xpose.msra.mxu0 0
        %1262 = vmatprep.subr.bf16.mxu0 0
        %1263 = vmatpush1.bf16.xpose.msra.mxu0 0
        %1264 = vmatprep.subr.bf16.mxu0 0
        %1265 = vmatpush1.bf16.xpose.msra.mxu0 0
        %1266 = vmatprep.mubr.bf16.mxu0 0
        %1267 = vmatmul.mubr.bf16.gmra.mrb[0].mxu0 %v1229
        %v1268 = vpop.f32.mrb[0].mxu0
        %v1269 = vadd.f32 0.0, %v1268
        %v1270 = vpop.f32.mrb[0].mxu0
        %v1271 = vpop.f32.mrb[0].mxu0
        %v1272 = vpop.f32.mrb[0].mxu0
        %1273 = vdwg.mxu0
        %v1274 = vsel %vm1227, %v1269, -inf
        %1275 = vmax.xlane.f32.xlu0 %v1274
        %v1276 = vpop.xlane.xlu0 %1275
        %v1277 = vsub.f32 %v1269, %v1276
        %v1278 = vmul.f32 %v1277, 1.442695
        %v1279 = vpow.pop %v1278
        %v1280 = vsel %vm1227, %v1279, 0.0
        %1281 = vadd.xlane.f32.xlu0 %v1280
        %v1282 = vpop.xlane.xlu0 %1281
        %v1283 = vrcp.pop %v1282
        %v1284 = vmul.f32 %v1279, %v1283
        %v1285 = vpack.c.bf16 %v1284, %v1284
        %v1287 = vsel %vm1227, %v1285, 0
        %vm1289 = vcmask 1043456
        %v1291 = vsel %vm1289, %v1223, 0
        %1293 = vmatprep.subr.bf16.mxu0 0
        %1294 = vmatpush1.bf16.msra.mxu0 %v1291
        %1295 = vmatprep.subr.bf16.mxu0 0
        %1296 = vmatpush1.bf16.msra.mxu0 0
        %1297 = vmatprep.subr.bf16.mxu0 0
        %1298 = vmatpush1.bf16.msra.mxu0 0
        %1299 = vmatprep.subr.bf16.mxu0 0
        %1300 = vmatpush1.bf16.msra.mxu0 0
        %1301 = vmatprep.subr.bf16.mxu0 0
        %1302 = vmatpush1.bf16.msra.mxu0 0
        %1303 = vmatprep.subr.bf16.mxu0 0
        %1304 = vmatpush1.bf16.msra.mxu0 0
        %1305 = vmatprep.subr.bf16.mxu0 0
        %1306 = vmatpush1.bf16.msra.mxu0 0
        %1307 = vmatprep.subr.bf16.mxu0 0
        %1308 = vmatpush1.bf16.msra.mxu0 0
        %1309 = vmatprep.subr.bf16.mxu0 0
        %1310 = vmatpush1.bf16.msra.mxu0 0
        %1311 = vmatprep.subr.bf16.mxu0 0
        %1312 = vmatpush1.bf16.msra.mxu0 0
        %1313 = vmatprep.subr.bf16.mxu0 0
        %1314 = vmatpush1.bf16.msra.mxu0 0
        %1315 = vmatprep.subr.bf16.mxu0 0
        %1316 = vmatpush1.bf16.msra.mxu0 0
        %1317 = vmatprep.subr.bf16.mxu0 0
        %1318 = vmatpush1.bf16.msra.mxu0 0
        %1319 = vmatprep.subr.bf16.mxu0 0
        %1320 = vmatpush1.bf16.msra.mxu0 0
        %1321 = vmatprep.subr.bf16.mxu0 0
        %1322 = vmatpush1.bf16.msra.mxu0 0
        %1323 = vmatprep.subr.bf16.mxu0 0
        %1324 = vmatpush1.bf16.msra.mxu0 0
        %1325 = vmatprep.mubr.bf16.mxu0 0
        %1326 = vmatmul.mubr.bf16.gmra.mrb[0].mxu0 %v1287
        %v1327 = vpop.f32.mrb[0].mxu0
        %v1328 = vadd.f32 0.0, %v1327
        %v1329 = vpop.f32.mrb[0].mxu0
        %v1330 = vpop.f32.mrb[0].mxu0
        %v1331 = vpop.f32.mrb[0].mxu0
        %1332 = vdwg.mxu0
        %v1333 = vpack.c.bf16 %v1328, %v1328
        %1335 = vrot.lane.b32.xlu0 %v1221, 120
        %v1336 = vpop.permute.xlu0 %1335
        %1337 = vrot.lane.b32.xlu0 %v1222, 88
        %v1338 = vpop.permute.xlu0 %1337
        %v1340 = vsel %vm1227, %v1336, 0
        %v1343 = vsel %vm1227, %v1338, 0
        %1345 = vmatprep.subr.bf16.mxu0 0
        %1346 = vmatpush1.bf16.xpose.msra.mxu0 %v1343
        %1347 = vmatprep.subr.bf16.mxu0 0
        %1348 = vmatpush1.bf16.xpose.msra.mxu0 0
        %1349 = vmatprep.subr.bf16.mxu0 0
        %1350 = vmatpush1.bf16.xpose.msra.mxu0 0
        %1351 = vmatprep.subr.bf16.mxu0 0
        %1352 = vmatpush1.bf16.xpose.msra.mxu0 0
        %1353 = vmatprep.subr.bf16.mxu0 0
        %1354 = vmatpush1.bf16.xpose.msra.mxu0 0
        %1355 = vmatprep.subr.bf16.mxu0 0
        %1356 = vmatpush1.bf16.xpose.msra.mxu0 0
        %1357 = vmatprep.subr.bf16.mxu0 0
        %1358 = vmatpush1.bf16.xpose.msra.mxu0 0
        %1359 = vmatprep.subr.bf16.mxu0 0
        %1360 = vmatpush1.bf16.xpose.msra.mxu0 0
        %1361 = vmatprep.subr.bf16.mxu0 0
        %1362 = vmatpush1.bf16.xpose.msra.mxu0 0
        %1363 = vmatprep.subr.bf16.mxu0 0
        %1364 = vmatpush1.bf16.xpose.msra.mxu0 0
        %1365 = vmatprep.subr.bf16.mxu0 0
        %1366 = vmatpush1.bf16.xpose.msra.mxu0 0
        %1367 = vmatprep.subr.bf16.mxu0 0
        %1368 = vmatpush1.bf16.xpose.msra.mxu0 0
        %1369 = vmatprep.subr.bf16.mxu0 0
        %1370 = vmatpush1.bf16.xpose.msra.mxu0 0
        %1371 = vmatprep.subr.bf16.mxu0 0
        %1372 = vmatpush1.bf16.xpose.msra.mxu0 0
        %1373 = vmatprep.subr.bf16.mxu0 0
        %1374 = vmatpush1.bf16.xpose.msra.mxu0 0
        %1375 = vmatprep.subr.bf16.mxu0 0
        %1376 = vmatpush1.bf16.xpose.msra.mxu0 0
        %1377 = vmatprep.mubr.bf16.mxu0 0
        %1378 = vmatmul.mubr.bf16.gmra.mrb[0].mxu0 %v1340
        %v1379 = vpop.f32.mrb[0].mxu0
        %v1380 = vadd.f32 0.0, %v1379
        %v1381 = vpop.f32.mrb[0].mxu0
        %v1382 = vpop.f32.mrb[0].mxu0
        %v1383 = vpop.f32.mrb[0].mxu0
        %1384 = vdwg.mxu0
        %v1385 = vsel %vm1227, %v1380, -inf
        %1386 = vmax.xlane.f32.xlu0 %v1385
        %v1387 = vpop.xlane.xlu0 %1386
        %v1388 = vsub.f32 %v1380, %v1387
        %v1389 = vmul.f32 %v1388, 1.442695
        %v1390 = vpow.pop %v1389
        %v1391 = vsel %vm1227, %v1390, 0.0
        %1392 = vadd.xlane.f32.xlu0 %v1391
        %v1393 = vpop.xlane.xlu0 %1392
        %v1394 = vrcp.pop %v1393
        %v1395 = vmul.f32 %v1390, %v1394
        %v1396 = vpack.c.bf16 %v1395, %v1395
        %1398 = vrot.lane.b32.xlu0 %v1223, 120
        %v1399 = vpop.permute.xlu0 %1398
        %v1401 = vsel %vm1227, %v1396, 0
        %v1404 = vsel %vm1289, %v1399, 0
        %1406 = vmatprep.subr.bf16.mxu0 0
        %1407 = vmatpush1.bf16.msra.mxu0 %v1404
        %1408 = vmatprep.subr.bf16.mxu0 0
        %1409 = vmatpush1.bf16.msra.mxu0 0
        %1410 = vmatprep.subr.bf16.mxu0 0
        %1411 = vmatpush1.bf16.msra.mxu0 0
        %1412 = vmatprep.subr.bf16.mxu0 0
        %1413 = vmatpush1.bf16.msra.mxu0 0
        %1414 = vmatprep.subr.bf16.mxu0 0
        %1415 = vmatpush1.bf16.msra.mxu0 0
        %1416 = vmatprep.subr.bf16.mxu0 0
        %1417 = vmatpush1.bf16.msra.mxu0 0
        %1418 = vmatprep.subr.bf16.mxu0 0
        %1419 = vmatpush1.bf16.msra.mxu0 0
        %1420 = vmatprep.subr.bf16.mxu0 0
        %1421 = vmatpush1.bf16.msra.mxu0 0
        %1422 = vmatprep.subr.bf16.mxu0 0
        %1423 = vmatpush1.bf16.msra.mxu0 0
        %1424 = vmatprep.subr.bf16.mxu0 0
        %1425 = vmatpush1.bf16.msra.mxu0 0
        %1426 = vmatprep.subr.bf16.mxu0 0
        %1427 = vmatpush1.bf16.msra.mxu0 0
        %1428 = vmatprep.subr.bf16.mxu0 0
        %1429 = vmatpush1.bf16.msra.mxu0 0
        %1430 = vmatprep.subr.bf16.mxu0 0
        %1431 = vmatpush1.bf16.msra.mxu0 0
        %1432 = vmatprep.subr.bf16.mxu0 0
        %1433 = vmatpush1.bf16.msra.mxu0 0
        %1434 = vmatprep.subr.bf16.mxu0 0
        %1435 = vmatpush1.bf16.msra.mxu0 0
        %1436 = vmatprep.subr.bf16.mxu0 0
        %1437 = vmatpush1.bf16.msra.mxu0 0
        %1438 = vmatprep.mubr.bf16.mxu0 0
        %1439 = vmatmul.mubr.bf16.gmra.mrb[0].mxu0 %v1401
        %v1440 = vpop.f32.mrb[0].mxu0
        %v1441 = vadd.f32 0.0, %v1440
        %v1442 = vpop.f32.mrb[0].mxu0
        %v1443 = vpop.f32.mrb[0].mxu0
        %v1444 = vpop.f32.mrb[0].mxu0
        %1445 = vdwg.mxu0
        %v1446 = vpack.c.bf16 %v1441, %v1441
        %v1448 = vsel %vm1227, %v1446, 0
        %v1451 = vsel %vm1289, %v1217, 0
        %1453 = vmatprep.subr.bf16.mxu0 0
        %1454 = vmatpush1.bf16.msra.mxu0 %v1451
        %1455 = vmatprep.subr.bf16.mxu0 0
        %1456 = vmatpush1.bf16.msra.mxu0 0
        %1457 = vmatprep.subr.bf16.mxu0 0
        %1458 = vmatpush1.bf16.msra.mxu0 0
        %1459 = vmatprep.subr.bf16.mxu0 0
        %1460 = vmatpush1.bf16.msra.mxu0 0
        %1461 = vmatprep.subr.bf16.mxu0 0
        %1462 = vmatpush1.bf16.msra.mxu0 0
        %1463 = vmatprep.subr.bf16.mxu0 0
        %1464 = vmatpush1.bf16.msra.mxu0 0
        %1465 = vmatprep.subr.bf16.mxu0 0
        %1466 = vmatpush1.bf16.msra.mxu0 0
        %1467 = vmatprep.subr.bf16.mxu0 0
        %1468 = vmatpush1.bf16.msra.mxu0 0
        %1469 = vmatprep.subr.bf16.mxu0 0
        %1470 = vmatpush1.bf16.msra.mxu0 0
        %1471 = vmatprep.subr.bf16.mxu0 0
        %1472 = vmatpush1.bf16.msra.mxu0 0
        %1473 = vmatprep.subr.bf16.mxu0 0
        %1474 = vmatpush1.bf16.msra.mxu0 0
        %1475 = vmatprep.subr.bf16.mxu0 0
        %1476 = vmatpush1.bf16.msra.mxu0 0
        %1477 = vmatprep.subr.bf16.mxu0 0
        %1478 = vmatpush1.bf16.msra.mxu0 0
        %1479 = vmatprep.subr.bf16.mxu0 0
        %1480 = vmatpush1.bf16.msra.mxu0 0
        %1481 = vmatprep.subr.bf16.mxu0 0
        %1482 = vmatpush1.bf16.msra.mxu0 0
        %1483 = vmatprep.subr.bf16.mxu0 0
        %1484 = vmatpush1.bf16.msra.mxu0 0
        %1485 = vmatprep.mubr.bf16.mxu0 0
        %1486 = vmatmul.mubr.bf16.gmra.mrb[0].mxu0 %v1448
        %v1487 = vpop.f32.mrb[0].mxu0
        %v1488 = vadd.f32 0.0, %v1487
        %v1489 = vpop.f32.mrb[0].mxu0
        %v1490 = vpop.f32.mrb[0].mxu0
        %v1491 = vpop.f32.mrb[0].mxu0
        %1492 = vdwg.mxu0
        %v1494 = vsel %vm1227, %v1333, 0
        %v1497 = vsel %vm1289, %v1216, 0
        %1499 = vmatprep.subr.bf16.mxu0 0
        %1500 = vmatpush1.bf16.msra.mxu0 %v1497
        %1501 = vmatprep.subr.bf16.mxu0 0
        %1502 = vmatpush1.bf16.msra.mxu0 0
        %1503 = vmatprep.subr.bf16.mxu0 0
        %1504 = vmatpush1.bf16.msra.mxu0 0
        %1505 = vmatprep.subr.bf16.mxu0 0
        %1506 = vmatpush1.bf16.msra.mxu0 0
        %1507 = vmatprep.subr.bf16.mxu0 0
        %1508 = vmatpush1.bf16.msra.mxu0 0
        %1509 = vmatprep.subr.bf16.mxu0 0
        %1510 = vmatpush1.bf16.msra.mxu0 0
        %1511 = vmatprep.subr.bf16.mxu0 0
        %1512 = vmatpush1.bf16.msra.mxu0 0
        %1513 = vmatprep.subr.bf16.mxu0 0
        %1514 = vmatpush1.bf16.msra.mxu0 0
        %1515 = vmatprep.subr.bf16.mxu0 0
        %1516 = vmatpush1.bf16.msra.mxu0 0
        %1517 = vmatprep.subr.bf16.mxu0 0
        %1518 = vmatpush1.bf16.msra.mxu0 0
        %1519 = vmatprep.subr.bf16.mxu0 0
        %1520 = vmatpush1.bf16.msra.mxu0 0
        %1521 = vmatprep.subr.bf16.mxu0 0
        %1522 = vmatpush1.bf16.msra.mxu0 0
        %1523 = vmatprep.subr.bf16.mxu0 0
        %1524 = vmatpush1.bf16.msra.mxu0 0
        %1525 = vmatprep.subr.bf16.mxu0 0
        %1526 = vmatpush1.bf16.msra.mxu0 0
        %1527 = vmatprep.subr.bf16.mxu0 0
        %1528 = vmatpush1.bf16.msra.mxu0 0
        %1529 = vmatprep.subr.bf16.mxu0 0
        %1530 = vmatpush1.bf16.msra.mxu0 0
        %1531 = vmatprep.mubr.bf16.mxu0 0
        %1532 = vmatmul.mubr.bf16.gmra.mrb[0].mxu0 %v1494
        %v1533 = vpop.f32.mrb[0].mxu0
        %v1534 = vadd.f32 %v1488, %v1533
        %v1535 = vpop.f32.mrb[0].mxu0
        %v1536 = vpop.f32.mrb[0].mxu0
        %v1537 = vpop.f32.mrb[0].mxu0
        %1538 = vdwg.mxu0
        %1539 = vrot.lane.b32.xlu0 %v1221, 112
        %v1540 = vpop.permute.xlu0 %1539
        %1541 = vrot.lane.b32.xlu0 %v1222, 80
        %v1542 = vpop.permute.xlu0 %1541
        %v1544 = vsel %vm1227, %v1540, 0
        %v1547 = vsel %vm1227, %v1542, 0
        %1549 = vmatprep.subr.bf16.mxu0 0
        %1550 = vmatpush1.bf16.xpose.msra.mxu0 %v1547
        %1551 = vmatprep.subr.bf16.mxu0 0
        %1552 = vmatpush1.bf16.xpose.msra.mxu0 0
        %1553 = vmatprep.subr.bf16.mxu0 0
        %1554 = vmatpush1.bf16.xpose.msra.mxu0 0
        %1555 = vmatprep.subr.bf16.mxu0 0
        %1556 = vmatpush1.bf16.xpose.msra.mxu0 0
        %1557 = vmatprep.subr.bf16.mxu0 0
        %1558 = vmatpush1.bf16.xpose.msra.mxu0 0
        %1559 = vmatprep.subr.bf16.mxu0 0
        %1560 = vmatpush1.bf16.xpose.msra.mxu0 0
        %1561 = vmatprep.subr.bf16.mxu0 0
        %1562 = vmatpush1.bf16.xpose.msra.mxu0 0
        %1563 = vmatprep.subr.bf16.mxu0 0
        %1564 = vmatpush1.bf16.xpose.msra.mxu0 0
        %1565 = vmatprep.subr.bf16.mxu0 0
        %1566 = vmatpush1.bf16.xpose.msra.mxu0 0
        %1567 = vmatprep.subr.bf16.mxu0 0
        %1568 = vmatpush1.bf16.xpose.msra.mxu0 0
        %1569 = vmatprep.subr.bf16.mxu0 0
        %1570 = vmatpush1.bf16.xpose.msra.mxu0 0
        %1571 = vmatprep.subr.bf16.mxu0 0
        %1572 = vmatpush1.bf16.xpose.msra.mxu0 0
        %1573 = vmatprep.subr.bf16.mxu0 0
        %1574 = vmatpush1.bf16.xpose.msra.mxu0 0
        %1575 = vmatprep.subr.bf16.mxu0 0
        %1576 = vmatpush1.bf16.xpose.msra.mxu0 0
        %1577 = vmatprep.subr.bf16.mxu0 0
        %1578 = vmatpush1.bf16.xpose.msra.mxu0 0
        %1579 = vmatprep.subr.bf16.mxu0 0
        %1580 = vmatpush1.bf16.xpose.msra.mxu0 0
        %1581 = vmatprep.mubr.bf16.mxu0 0
        %1582 = vmatmul.mubr.bf16.gmra.mrb[0].mxu0 %v1544
        %v1583 = vpop.f32.mrb[0].mxu0
        %v1584 = vadd.f32 0.0, %v1583
        %v1585 = vpop.f32.mrb[0].mxu0
        %v1586 = vpop.f32.mrb[0].mxu0
        %v1587 = vpop.f32.mrb[0].mxu0
        %1588 = vdwg.mxu0
        %v1589 = vsel %vm1227, %v1584, -inf
        %1590 = vmax.xlane.f32.xlu0 %v1589
        %v1591 = vpop.xlane.xlu0 %1590
        %v1592 = vsub.f32 %v1584, %v1591
        %v1593 = vmul.f32 %v1592, 1.442695
        %v1594 = vpow.pop %v1593
        %v1595 = vsel %vm1227, %v1594, 0.0
        %1596 = vadd.xlane.f32.xlu0 %v1595
        %v1597 = vpop.xlane.xlu0 %1596
        %v1598 = vrcp.pop %v1597
        %v1599 = vmul.f32 %v1594, %v1598
        %v1600 = vpack.c.bf16 %v1599, %v1599
        %1601 = vrot.lane.b32.xlu0 %v1223, 112
        %v1602 = vpop.permute.xlu0 %1601
        %v1604 = vsel %vm1227, %v1600, 0
        %v1607 = vsel %vm1289, %v1602, 0
        %1609 = vmatprep.subr.bf16.mxu0 0
        %1610 = vmatpush1.bf16.msra.mxu0 %v1607
        %1611 = vmatprep.subr.bf16.mxu0 0
        %1612 = vmatpush1.bf16.msra.mxu0 0
        %1613 = vmatprep.subr.bf16.mxu0 0
        %1614 = vmatpush1.bf16.msra.mxu0 0
        %1615 = vmatprep.subr.bf16.mxu0 0
        %1616 = vmatpush1.bf16.msra.mxu0 0
        %1617 = vmatprep.subr.bf16.mxu0 0
        %1618 = vmatpush1.bf16.msra.mxu0 0
        %1619 = vmatprep.subr.bf16.mxu0 0
        %1620 = vmatpush1.bf16.msra.mxu0 0
        %1621 = vmatprep.subr.bf16.mxu0 0
        %1622 = vmatpush1.bf16.msra.mxu0 0
        %1623 = vmatprep.subr.bf16.mxu0 0
        %1624 = vmatpush1.bf16.msra.mxu0 0
        %1625 = vmatprep.subr.bf16.mxu0 0
        %1626 = vmatpush1.bf16.msra.mxu0 0
        %1627 = vmatprep.subr.bf16.mxu0 0
        %1628 = vmatpush1.bf16.msra.mxu0 0
        %1629 = vmatprep.subr.bf16.mxu0 0
        %1630 = vmatpush1.bf16.msra.mxu0 0
        %1631 = vmatprep.subr.bf16.mxu0 0
        %1632 = vmatpush1.bf16.msra.mxu0 0
        %1633 = vmatprep.subr.bf16.mxu0 0
        %1634 = vmatpush1.bf16.msra.mxu0 0
        %1635 = vmatprep.subr.bf16.mxu0 0
        %1636 = vmatpush1.bf16.msra.mxu0 0
        %1637 = vmatprep.subr.bf16.mxu0 0
        %1638 = vmatpush1.bf16.msra.mxu0 0
        %1639 = vmatprep.subr.bf16.mxu0 0
        %1640 = vmatpush1.bf16.msra.mxu0 0
        %1641 = vmatprep.mubr.bf16.mxu0 0
        %1642 = vmatmul.mubr.bf16.gmra.mrb[0].mxu0 %v1604
        %v1643 = vpop.f32.mrb[0].mxu0
        %v1644 = vadd.f32 0.0, %v1643
        %v1645 = vpop.f32.mrb[0].mxu0
        %v1646 = vpop.f32.mrb[0].mxu0
        %v1647 = vpop.f32.mrb[0].mxu0
        %1648 = vdwg.mxu0
        %v1649 = vpack.c.bf16 %v1644, %v1644
        %v1651 = vsel %vm1227, %v1649, 0
        %v1654 = vsel %vm1289, %v1218, 0
        %1656 = vmatprep.subr.bf16.mxu0 0
        %1657 = vmatpush1.bf16.msra.mxu0 %v1654
        %1658 = vmatprep.subr.bf16.mxu0 0
        %1659 = vmatpush1.bf16.msra.mxu0 0
        %1660 = vmatprep.subr.bf16.mxu0 0
        %1661 = vmatpush1.bf16.msra.mxu0 0
        %1662 = vmatprep.subr.bf16.mxu0 0
        %1663 = vmatpush1.bf16.msra.mxu0 0
        %1664 = vmatprep.subr.bf16.mxu0 0
        %1665 = vmatpush1.bf16.msra.mxu0 0
        %1666 = vmatprep.subr.bf16.mxu0 0
        %1667 = vmatpush1.bf16.msra.mxu0 0
        %1668 = vmatprep.subr.bf16.mxu0 0
        %1669 = vmatpush1.bf16.msra.mxu0 0
        %1670 = vmatprep.subr.bf16.mxu0 0
        %1671 = vmatpush1.bf16.msra.mxu0 0
        %1672 = vmatprep.subr.bf16.mxu0 0
        %1673 = vmatpush1.bf16.msra.mxu0 0
        %1674 = vmatprep.subr.bf16.mxu0 0
        %1675 = vmatpush1.bf16.msra.mxu0 0
        %1676 = vmatprep.subr.bf16.mxu0 0
        %1677 = vmatpush1.bf16.msra.mxu0 0
        %1678 = vmatprep.subr.bf16.mxu0 0
        %1679 = vmatpush1.bf16.msra.mxu0 0
        %1680 = vmatprep.subr.bf16.mxu0 0
        %1681 = vmatpush1.bf16.msra.mxu0 0
        %1682 = vmatprep.subr.bf16.mxu0 0
        %1683 = vmatpush1.bf16.msra.mxu0 0
        %1684 = vmatprep.subr.bf16.mxu0 0
        %1685 = vmatpush1.bf16.msra.mxu0 0
        %1686 = vmatprep.subr.bf16.mxu0 0
        %1687 = vmatpush1.bf16.msra.mxu0 0
        %1688 = vmatprep.mubr.bf16.mxu0 0
        %1689 = vmatmul.mubr.bf16.gmra.mrb[0].mxu0 %v1651
        %v1690 = vpop.f32.mrb[0].mxu0
        %v1691 = vadd.f32 0.0, %v1690
        %v1692 = vpop.f32.mrb[0].mxu0
        %v1693 = vpop.f32.mrb[0].mxu0
        %v1694 = vpop.f32.mrb[0].mxu0
        %1695 = vdwg.mxu0
        %v1696 = vadd.f32 %v1534, %v1691
        %1697 = vrot.lane.b32.xlu0 %v1221, 104
        %v1698 = vpop.permute.xlu0 %1697
        %1699 = vrot.lane.b32.xlu0 %v1222, 72
        %v1700 = vpop.permute.xlu0 %1699
        %v1702 = vsel %vm1227, %v1698, 0
        %v1705 = vsel %vm1227, %v1700, 0
        %1707 = vmatprep.subr.bf16.mxu0 0
        %1708 = vmatpush1.bf16.xpose.msra.mxu0 %v1705
        %1709 = vmatprep.subr.bf16.mxu0 0
        %1710 = vmatpush1.bf16.xpose.msra.mxu0 0
        %1711 = vmatprep.subr.bf16.mxu0 0
        %1712 = vmatpush1.bf16.xpose.msra.mxu0 0
        %1713 = vmatprep.subr.bf16.mxu0 0
        %1714 = vmatpush1.bf16.xpose.msra.mxu0 0
        %1715 = vmatprep.subr.bf16.mxu0 0
        %1716 = vmatpush1.bf16.xpose.msra.mxu0 0
        %1717 = vmatprep.subr.bf16.mxu0 0
        %1718 = vmatpush1.bf16.xpose.msra.mxu0 0
        %1719 = vmatprep.subr.bf16.mxu0 0
        %1720 = vmatpush1.bf16.xpose.msra.mxu0 0
        %1721 = vmatprep.subr.bf16.mxu0 0
        %1722 = vmatpush1.bf16.xpose.msra.mxu0 0
        %1723 = vmatprep.subr.bf16.mxu0 0
        %1724 = vmatpush1.bf16.xpose.msra.mxu0 0
        %1725 = vmatprep.subr.bf16.mxu0 0
        %1726 = vmatpush1.bf16.xpose.msra.mxu0 0
        %1727 = vmatprep.subr.bf16.mxu0 0
        %1728 = vmatpush1.bf16.xpose.msra.mxu0 0
        %1729 = vmatprep.subr.bf16.mxu0 0
        %1730 = vmatpush1.bf16.xpose.msra.mxu0 0
        %1731 = vmatprep.subr.bf16.mxu0 0
        %1732 = vmatpush1.bf16.xpose.msra.mxu0 0
        %1733 = vmatprep.subr.bf16.mxu0 0
        %1734 = vmatpush1.bf16.xpose.msra.mxu0 0
        %1735 = vmatprep.subr.bf16.mxu0 0
        %1736 = vmatpush1.bf16.xpose.msra.mxu0 0
        %1737 = vmatprep.subr.bf16.mxu0 0
        %1738 = vmatpush1.bf16.xpose.msra.mxu0 0
        %1739 = vmatprep.mubr.bf16.mxu0 0
        %1740 = vmatmul.mubr.bf16.gmra.mrb[0].mxu0 %v1702
        %v1741 = vpop.f32.mrb[0].mxu0
        %v1742 = vadd.f32 0.0, %v1741
        %v1743 = vpop.f32.mrb[0].mxu0
        %v1744 = vpop.f32.mrb[0].mxu0
        %v1745 = vpop.f32.mrb[0].mxu0
        %1746 = vdwg.mxu0
        %v1747 = vsel %vm1227, %v1742, -inf
        %1748 = vmax.xlane.f32.xlu0 %v1747
        %v1749 = vpop.xlane.xlu0 %1748
        %v1750 = vsub.f32 %v1742, %v1749
        %v1751 = vmul.f32 %v1750, 1.442695
        %v1752 = vpow.pop %v1751
        %v1753 = vsel %vm1227, %v1752, 0.0
        %1754 = vadd.xlane.f32.xlu0 %v1753
        %v1755 = vpop.xlane.xlu0 %1754
        %v1756 = vrcp.pop %v1755
        %v1757 = vmul.f32 %v1752, %v1756
        %v1758 = vpack.c.bf16 %v1757, %v1757
        %1759 = vrot.lane.b32.xlu0 %v1223, 104
        %v1760 = vpop.permute.xlu0 %1759
        %v1762 = vsel %vm1227, %v1758, 0
        %v1765 = vsel %vm1289, %v1760, 0
        %1767 = vmatprep.subr.bf16.mxu0 0
        %1768 = vmatpush1.bf16.msra.mxu0 %v1765
        %1769 = vmatprep.subr.bf16.mxu0 0
        %1770 = vmatpush1.bf16.msra.mxu0 0
        %1771 = vmatprep.subr.bf16.mxu0 0
        %1772 = vmatpush1.bf16.msra.mxu0 0
        %1773 = vmatprep.subr.bf16.mxu0 0
        %1774 = vmatpush1.bf16.msra.mxu0 0
        %1775 = vmatprep.subr.bf16.mxu0 0
        %1776 = vmatpush1.bf16.msra.mxu0 0
        %1777 = vmatprep.subr.bf16.mxu0 0
        %1778 = vmatpush1.bf16.msra.mxu0 0
        %1779 = vmatprep.subr.bf16.mxu0 0
        %1780 = vmatpush1.bf16.msra.mxu0 0
        %1781 = vmatprep.subr.bf16.mxu0 0
        %1782 = vmatpush1.bf16.msra.mxu0 0
        %1783 = vmatprep.subr.bf16.mxu0 0
        %1784 = vmatpush1.bf16.msra.mxu0 0
        %1785 = vmatprep.subr.bf16.mxu0 0
        %1786 = vmatpush1.bf16.msra.mxu0 0
        %1787 = vmatprep.subr.bf16.mxu0 0
        %1788 = vmatpush1.bf16.msra.mxu0 0
        %1789 = vmatprep.subr.bf16.mxu0 0
        %1790 = vmatpush1.bf16.msra.mxu0 0
        %1791 = vmatprep.subr.bf16.mxu0 0
        %1792 = vmatpush1.bf16.msra.mxu0 0
        %1793 = vmatprep.subr.bf16.mxu0 0
        %1794 = vmatpush1.bf16.msra.mxu0 0
        %1795 = vmatprep.subr.bf16.mxu0 0
        %1796 = vmatpush1.bf16.msra.mxu0 0
        %1797 = vmatprep.subr.bf16.mxu0 0
        %1798 = vmatpush1.bf16.msra.mxu0 0
        %1799 = vmatprep.mubr.bf16.mxu0 0
        %1800 = vmatmul.mubr.bf16.gmra.mrb[0].mxu0 %v1762
        %v1801 = vpop.f32.mrb[0].mxu0
        %v1802 = vadd.f32 0.0, %v1801
        %v1803 = vpop.f32.mrb[0].mxu0
        %v1804 = vpop.f32.mrb[0].mxu0
        %v1805 = vpop.f32.mrb[0].mxu0
        %1806 = vdwg.mxu0
        %v1807 = vpack.c.bf16 %v1802, %v1802
        %v1809 = vsel %vm1227, %v1807, 0
        %v1812 = vsel %vm1289, %v1219, 0
        %1814 = vmatprep.subr.bf16.mxu0 0
        %1815 = vmatpush1.bf16.msra.mxu0 %v1812
        %1816 = vmatprep.subr.bf16.mxu0 0
        %1817 = vmatpush1.bf16.msra.mxu0 0
        %1818 = vmatprep.subr.bf16.mxu0 0
        %1819 = vmatpush1.bf16.msra.mxu0 0
        %1820 = vmatprep.subr.bf16.mxu0 0
        %1821 = vmatpush1.bf16.msra.mxu0 0
        %1822 = vmatprep.subr.bf16.mxu0 0
        %1823 = vmatpush1.bf16.msra.mxu0 0
        %1824 = vmatprep.subr.bf16.mxu0 0
        %1825 = vmatpush1.bf16.msra.mxu0 0
        %1826 = vmatprep.subr.bf16.mxu0 0
        %1827 = vmatpush1.bf16.msra.mxu0 0
        %1828 = vmatprep.subr.bf16.mxu0 0
        %1829 = vmatpush1.bf16.msra.mxu0 0
        %1830 = vmatprep.subr.bf16.mxu0 0
        %1831 = vmatpush1.bf16.msra.mxu0 0
        %1832 = vmatprep.subr.bf16.mxu0 0
        %1833 = vmatpush1.bf16.msra.mxu0 0
        %1834 = vmatprep.subr.bf16.mxu0 0
        %1835 = vmatpush1.bf16.msra.mxu0 0
        %1836 = vmatprep.subr.bf16.mxu0 0
        %1837 = vmatpush1.bf16.msra.mxu0 0
        %1838 = vmatprep.subr.bf16.mxu0 0
        %1839 = vmatpush1.bf16.msra.mxu0 0
        %1840 = vmatprep.subr.bf16.mxu0 0
        %1841 = vmatpush1.bf16.msra.mxu0 0
        %1842 = vmatprep.subr.bf16.mxu0 0
        %1843 = vmatpush1.bf16.msra.mxu0 0
        %1844 = vmatprep.subr.bf16.mxu0 0
        %1845 = vmatpush1.bf16.msra.mxu0 0
        %1846 = vmatprep.mubr.bf16.mxu0 0
        %1847 = vmatmul.mubr.bf16.gmra.mrb[0].mxu0 %v1809
        %v1848 = vpop.f32.mrb[0].mxu0
        %v1849 = vadd.f32 0.0, %v1848
        %v1850 = vpop.f32.mrb[0].mxu0
        %v1851 = vpop.f32.mrb[0].mxu0
        %v1852 = vpop.f32.mrb[0].mxu0
        %1853 = vdwg.mxu0
        %v1854 = vadd.f32 %v1696, %v1849
        %v1856 = vlaneseq
        %v1857 = vshrl.u32 %v1856, 7
        %v1858 = vsub.s32 0, %v1857
        %v1859 = vrot.slane %v1220, %v1858
        %v1861 = vadd.f32 %v1854, %v1859
        %v1862 = vadd.f32 %v1045, %v1861
        %v1863 = vld [vmem:[%s6] sm:$0x1]
        %v1864 = vld [vmem:[%s7] sm:$0x1]
        %v1865 = vsel %vm1051, %v1862, 0.0
        %1866 = vadd.xlane.f32.xlu0 %v1865
        %v1867 = vpop.xlane.xlu0 %1866
        %v1868 = vmul.f32 %v1867, %v1055
        %v1869 = vsub.f32 %v1862, %v1868
        %v1870 = vmul.f32 %v1869, %v1869
        %v1871 = vsel %vm1051, %v1870, 0.0
        %1872 = vadd.xlane.f32.xlu0 %v1871
        %v1873 = vpop.xlane.xlu0 %1872
        %v1874 = vmul.f32 %v1873, %v1055
        %v1875 = vadd.f32 %v1874, 1e-05
        %v1876 = vrsqrt.pop %v1875
        %v1877 = vmul.f32 %v1869, %v1876
        %v1879 = vlaneseq
        %v1880 = vshrl.u32 %v1879, 7
        %v1881 = vsub.s32 0, %v1880
        %v1882 = vrot.slane %v1863, %v1881
        %v1884 = vmul.f32 %v1877, %v1882
        %v1886 = vlaneseq
        %v1887 = vshrl.u32 %v1886, 7
        %v1888 = vsub.s32 0, %v1887
        %v1889 = vrot.slane %v1864, %v1888
        %v1891 = vadd.f32 %v1884, %v1889
        %v1892 = vadd.f32 %v1891, %v1047
        %v1893 = vld [vmem:[#allocation8] sm:$0xf]
        %v1894 = vld [vmem:[#allocation8 + $0x4] sm:$0xf]
        %v1895 = vld [vmem:[#allocation8 + $0x8] sm:$0xf]
        %v1896 = vld [vmem:[#allocation8 + $0xc] sm:$0xf]
        %v1897 = vld [vmem:[#allocation10] sm:$0x1]
        %v1898 = vpack.c.bf16 %v1892, %v1892
        %v1900 = vlaneseq
        %v1901 = vshrl.u32 %v1900, 7
        %v1902 = vsub.s32 0, %v1901
        %v1903 = vrot.slane %v1897, %v1902
        %v1909 = vunpack.c.l.b16 %v1893
        %v1910 = vunpack.c.l.b16 %v1894
        %v1911 = vunpack.c.l.b16 %v1895
        %v1912 = vunpack.c.l.b16 %v1896
        %v1913 = vpack.c.b16 %v1910, %v1909
        %v1914 = vpack.c.b16 %v1912, %v1911
        %v1918 = vsel %vm1051, %v1898, 0
        %1920 = vmatprep.subr.bf16.mxu0 0
        %1921 = vmatpush1.bf16.msra.mxu0 %v1913
        %1922 = vmatprep.subr.bf16.mxu0 0
        %1923 = vmatpush1.bf16.msra.mxu0 %v1914
        %1924 = vmatprep.subr.bf16.mxu0 0
        %1925 = vmatpush1.bf16.msra.mxu0 0
        %1926 = vmatprep.subr.bf16.mxu0 0
        %1927 = vmatpush1.bf16.msra.mxu0 0
        %1928 = vmatprep.subr.bf16.mxu0 0
        %1929 = vmatpush1.bf16.msra.mxu0 0
        %1930 = vmatprep.subr.bf16.mxu0 0
        %1931 = vmatpush1.bf16.msra.mxu0 0
        %1932 = vmatprep.subr.bf16.mxu0 0
        %1933 = vmatpush1.bf16.msra.mxu0 0
        %1934 = vmatprep.subr.bf16.mxu0 0
        %1935 = vmatpush1.bf16.msra.mxu0 0
        %1936 = vmatprep.subr.bf16.mxu0 0
        %1937 = vmatpush1.bf16.msra.mxu0 0
        %1938 = vmatprep.subr.bf16.mxu0 0
        %1939 = vmatpush1.bf16.msra.mxu0 0
        %1940 = vmatprep.subr.bf16.mxu0 0
        %1941 = vmatpush1.bf16.msra.mxu0 0
        %1942 = vmatprep.subr.bf16.mxu0 0
        %1943 = vmatpush1.bf16.msra.mxu0 0
        %1944 = vmatprep.subr.bf16.mxu0 0
        %1945 = vmatpush1.bf16.msra.mxu0 0
        %1946 = vmatprep.subr.bf16.mxu0 0
        %1947 = vmatpush1.bf16.msra.mxu0 0
        %1948 = vmatprep.subr.bf16.mxu0 0
        %1949 = vmatpush1.bf16.msra.mxu0 0
        %1950 = vmatprep.subr.bf16.mxu0 0
        %1951 = vmatpush1.bf16.msra.mxu0 0
        %1952 = vmatprep.mubr.bf16.mxu0 0
        %1953 = vmatmul.mubr.bf16.gmra.mrb[0].mxu0 %v1918
        %v1954 = vpop.f32.mrb[0].mxu0
        %v1955 = vadd.f32 %v1903, %v1954
        %v1956 = vpop.f32.mrb[0].mxu0
        %v1957 = vpop.f32.mrb[0].mxu0
        %v1958 = vpop.f32.mrb[0].mxu0
        %1959 = vdwg.mxu0
        %v1960 = vmul.f32 %v1955, 0.35355338
        %v1961 = vadd.f32 %v1046, %v1048
        %v1962 = vld [vmem:[#allocation11] sm:$0xf]
        %v1963 = vld [vmem:[#allocation11 + $0x4] sm:$0xf]
        %v1964 = vld [vmem:[#allocation13] sm:$0x1]
        %v1965 = vpack.c.bf16 %v1961, %v1961
        %v1967 = vlaneseq
        %v1968 = vshrl.u32 %v1967, 7
        %v1969 = vsub.s32 0, %v1968
        %v1970 = vrot.slane %v1964, %v1969
        %v1974 = vunpack.c.l.b16 %v1962
        %v1975 = vunpack.c.l.b16 %v1963
        %v1976 = vpack.c.b16 %v1975, %v1974
        %vm1978 = vcmask 130048
        %v1980 = vsel %vm1978, %v1965, 0
        %1982 = vmatprep.subr.bf16.mxu0 0
        %1983 = vmatpush1.bf16.msra.mxu0 %v1976
        %1984 = vmatprep.subr.bf16.mxu0 0
        %1985 = vmatpush1.bf16.msra.mxu0 0
        %1986 = vmatprep.subr.bf16.mxu0 0
        %1987 = vmatpush1.bf16.msra.mxu0 0
        %1988 = vmatprep.subr.bf16.mxu0 0
        %1989 = vmatpush1.bf16.msra.mxu0 0
        %1990 = vmatprep.subr.bf16.mxu0 0
        %1991 = vmatpush1.bf16.msra.mxu0 0
        %1992 = vmatprep.subr.bf16.mxu0 0
        %1993 = vmatpush1.bf16.msra.mxu0 0
        %1994 = vmatprep.subr.bf16.mxu0 0
        %1995 = vmatpush1.bf16.msra.mxu0 0
        %1996 = vmatprep.subr.bf16.mxu0 0
        %1997 = vmatpush1.bf16.msra.mxu0 0
        %1998 = vmatprep.subr.bf16.mxu0 0
        %1999 = vmatpush1.bf16.msra.mxu0 0
        %2000 = vmatprep.subr.bf16.mxu0 0
        %2001 = vmatpush1.bf16.msra.mxu0 0
        %2002 = vmatprep.subr.bf16.mxu0 0
        %2003 = vmatpush1.bf16.msra.mxu0 0
        %2004 = vmatprep.subr.bf16.mxu0 0
        %2005 = vmatpush1.bf16.msra.mxu0 0
        %2006 = vmatprep.subr.bf16.mxu0 0
        %2007 = vmatpush1.bf16.msra.mxu0 0
        %2008 = vmatprep.subr.bf16.mxu0 0
        %2009 = vmatpush1.bf16.msra.mxu0 0
        %2010 = vmatprep.subr.bf16.mxu0 0
        %2011 = vmatpush1.bf16.msra.mxu0 0
        %2012 = vmatprep.subr.bf16.mxu0 0
        %2013 = vmatpush1.bf16.msra.mxu0 0
        %2014 = vmatprep.mubr.bf16.mxu0 0
        %2015 = vmatmul.mubr.bf16.gmra.mrb[0].mxu0 %v1980
        %v2016 = vpop.f32.mrb[0].mxu0
        %v2017 = vadd.f32 %v1970, %v2016
        %v2018 = vpop.f32.mrb[0].mxu0
        %v2019 = vpop.f32.mrb[0].mxu0
        %v2020 = vpop.f32.mrb[0].mxu0
        %2021 = vdwg.mxu0
        %v2022 = vld [vmem:[#allocation14] sm:$0xf]
        %v2023 = vld [vmem:[#allocation14 + $0x4] sm:$0xf]
        %v2024 = vld [vmem:[#allocation16] sm:$0x1]
        %v2025 = vpack.c.bf16 %v1046, %v1046
        %v2027 = vlaneseq
        %v2028 = vshrl.u32 %v2027, 7
        %v2029 = vsub.s32 0, %v2028
        %v2030 = vrot.slane %v2024, %v2029
        %v2034 = vunpack.c.l.b16 %v2022
        %v2035 = vunpack.c.l.b16 %v2023
        %v2036 = vpack.c.b16 %v2035, %v2034
        %v2039 = vsel %vm1978, %v2025, 0
        %2041 = vmatprep.subr.bf16.mxu0 0
        %2042 = vmatpush1.bf16.msra.mxu0 %v2036
        %2043 = vmatprep.subr.bf16.mxu0 0
        %2044 = vmatpush1.bf16.msra.mxu0 0
        %2045 = vmatprep.subr.bf16.mxu0 0
        %2046 = vmatpush1.bf16.msra.mxu0 0
        %2047 = vmatprep.subr.bf16.mxu0 0
        %2048 = vmatpush1.bf16.msra.mxu0 0
        %2049 = vmatprep.subr.bf16.mxu0 0
        %2050 = vmatpush1.bf16.msra.mxu0 0
        %2051 = vmatprep.subr.bf16.mxu0 0
        %2052 = vmatpush1.bf16.msra.mxu0 0
        %2053 = vmatprep.subr.bf16.mxu0 0
        %2054 = vmatpush1.bf16.msra.mxu0 0
        %2055 = vmatprep.subr.bf16.mxu0 0
        %2056 = vmatpush1.bf16.msra.mxu0 0
        %2057 = vmatprep.subr.bf16.mxu0 0
        %2058 = vmatpush1.bf16.msra.mxu0 0
        %2059 = vmatprep.subr.bf16.mxu0 0
        %2060 = vmatpush1.bf16.msra.mxu0 0
        %2061 = vmatprep.subr.bf16.mxu0 0
        %2062 = vmatpush1.bf16.msra.mxu0 0
        %2063 = vmatprep.subr.bf16.mxu0 0
        %2064 = vmatpush1.bf16.msra.mxu0 0
        %2065 = vmatprep.subr.bf16.mxu0 0
        %2066 = vmatpush1.bf16.msra.mxu0 0
        %2067 = vmatprep.subr.bf16.mxu0 0
        %2068 = vmatpush1.bf16.msra.mxu0 0
        %2069 = vmatprep.subr.bf16.mxu0 0
        %2070 = vmatpush1.bf16.msra.mxu0 0
        %2071 = vmatprep.subr.bf16.mxu0 0
        %2072 = vmatpush1.bf16.msra.mxu0 0
        %2073 = vmatprep.mubr.bf16.mxu0 0
        %2074 = vmatmul.mubr.bf16.gmra.mrb[0].mxu0 %v2039
        %v2075 = vpop.f32.mrb[0].mxu0
        %v2076 = vadd.f32 %v2030, %v2075
        %v2077 = vpop.f32.mrb[0].mxu0
        %v2078 = vpop.f32.mrb[0].mxu0
        %v2079 = vpop.f32.mrb[0].mxu0
        %2080 = vdwg.mxu0
        %v2081 = vld [vmem:[#allocation17] sm:$0xf]
        %v2082 = vld [vmem:[#allocation17 + $0x4] sm:$0xf]
        %v2083 = vld [vmem:[#allocation17 + $0x8] sm:$0xf]
        %v2084 = vld [vmem:[#allocation17 + $0xc] sm:$0xf]
        %v2085 = vld [vmem:[#allocation19] sm:$0x1]
        %v2086 = vpack.c.bf16 %v1960, %v1960
        %v2087 = vpack.c.bf16 %v2017, %v2017
        %v2088 = vpack.c.bf16 %v2076, %v2076
        %v2090 = vsel %vm1227, %v2086, 0
        %v2093 = vsel %vm1227, %v2087, 0
        %2095 = vmatprep.subr.bf16.mxu0 0
        %2096 = vmatpush1.bf16.xpose.msra.mxu0 %v2093
        %2097 = vmatprep.subr.bf16.mxu0 0
        %2098 = vmatpush1.bf16.xpose.msra.mxu0 0
        %2099 = vmatprep.subr.bf16.mxu0 0
        %2100 = vmatpush1.bf16.xpose.msra.mxu0 0
        %2101 = vmatprep.subr.bf16.mxu0 0
        %2102 = vmatpush1.bf16.xpose.msra.mxu0 0
        %2103 = vmatprep.subr.bf16.mxu0 0
        %2104 = vmatpush1.bf16.xpose.msra.mxu0 0
        %2105 = vmatprep.subr.bf16.mxu0 0
        %2106 = vmatpush1.bf16.xpose.msra.mxu0 0
        %2107 = vmatprep.subr.bf16.mxu0 0
        %2108 = vmatpush1.bf16.xpose.msra.mxu0 0
        %2109 = vmatprep.subr.bf16.mxu0 0
        %2110 = vmatpush1.bf16.xpose.msra.mxu0 0
        %2111 = vmatprep.subr.bf16.mxu0 0
        %2112 = vmatpush1.bf16.xpose.msra.mxu0 0
        %2113 = vmatprep.subr.bf16.mxu0 0
        %2114 = vmatpush1.bf16.xpose.msra.mxu0 0
        %2115 = vmatprep.subr.bf16.mxu0 0
        %2116 = vmatpush1.bf16.xpose.msra.mxu0 0
        %2117 = vmatprep.subr.bf16.mxu0 0
        %2118 = vmatpush1.bf16.xpose.msra.mxu0 0
        %2119 = vmatprep.subr.bf16.mxu0 0
        %2120 = vmatpush1.bf16.xpose.msra.mxu0 0
        %2121 = vmatprep.subr.bf16.mxu0 0
        %2122 = vmatpush1.bf16.xpose.msra.mxu0 0
        %2123 = vmatprep.subr.bf16.mxu0 0
        %2124 = vmatpush1.bf16.xpose.msra.mxu0 0
        %2125 = vmatprep.subr.bf16.mxu0 0
        %2126 = vmatpush1.bf16.xpose.msra.mxu0 0
        %2127 = vmatprep.mubr.bf16.mxu0 0
        %2128 = vmatmul.mubr.bf16.gmra.mrb[0].mxu0 %v2090
        %v2129 = vpop.f32.mrb[0].mxu0
        %v2130 = vadd.f32 0.0, %v2129
        %v2131 = vpop.f32.mrb[0].mxu0
        %v2132 = vpop.f32.mrb[0].mxu0
        %v2133 = vpop.f32.mrb[0].mxu0
        %2134 = vdwg.mxu0
        %v2135 = vsel %vm1227, %v2130, -inf
        %2136 = vmax.xlane.f32.xlu0 %v2135
        %v2137 = vpop.xlane.xlu0 %2136
        %v2138 = vsub.f32 %v2130, %v2137
        %v2139 = vmul.f32 %v2138, 1.442695
        %v2140 = vpow.pop %v2139
        %v2141 = vsel %vm1227, %v2140, 0.0
        %2142 = vadd.xlane.f32.xlu0 %v2141
        %v2143 = vpop.xlane.xlu0 %2142
        %v2144 = vrcp.pop %v2143
        %v2145 = vmul.f32 %v2140, %v2144
        %v2146 = vpack.c.bf16 %v2145, %v2145
        %v2148 = vsel %vm1227, %v2146, 0
        %v2151 = vsel %vm1289, %v2088, 0
        %2153 = vmatprep.subr.bf16.mxu0 0
        %2154 = vmatpush1.bf16.msra.mxu0 %v2151
        %2155 = vmatprep.subr.bf16.mxu0 0
        %2156 = vmatpush1.bf16.msra.mxu0 0
        %2157 = vmatprep.subr.bf16.mxu0 0
        %2158 = vmatpush1.bf16.msra.mxu0 0
        %2159 = vmatprep.subr.bf16.mxu0 0
        %2160 = vmatpush1.bf16.msra.mxu0 0
        %2161 = vmatprep.subr.bf16.mxu0 0
        %2162 = vmatpush1.bf16.msra.mxu0 0
        %2163 = vmatprep.subr.bf16.mxu0 0
        %2164 = vmatpush1.bf16.msra.mxu0 0
        %2165 = vmatprep.subr.bf16.mxu0 0
        %2166 = vmatpush1.bf16.msra.mxu0 0
        %2167 = vmatprep.subr.bf16.mxu0 0
        %2168 = vmatpush1.bf16.msra.mxu0 0
        %2169 = vmatprep.subr.bf16.mxu0 0
        %2170 = vmatpush1.bf16.msra.mxu0 0
        %2171 = vmatprep.subr.bf16.mxu0 0
        %2172 = vmatpush1.bf16.msra.mxu0 0
        %2173 = vmatprep.subr.bf16.mxu0 0
        %2174 = vmatpush1.bf16.msra.mxu0 0
        %2175 = vmatprep.subr.bf16.mxu0 0
        %2176 = vmatpush1.bf16.msra.mxu0 0
        %2177 = vmatprep.subr.bf16.mxu0 0
        %2178 = vmatpush1.bf16.msra.mxu0 0
        %2179 = vmatprep.subr.bf16.mxu0 0
        %2180 = vmatpush1.bf16.msra.mxu0 0
        %2181 = vmatprep.subr.bf16.mxu0 0
        %2182 = vmatpush1.bf16.msra.mxu0 0
        %2183 = vmatprep.subr.bf16.mxu0 0
        %2184 = vmatpush1.bf16.msra.mxu0 0
        %2185 = vmatprep.mubr.bf16.mxu0 0
        %2186 = vmatmul.mubr.bf16.gmra.mrb[0].mxu0 %v2148
        %v2187 = vpop.f32.mrb[0].mxu0
        %v2188 = vadd.f32 0.0, %v2187
        %v2189 = vpop.f32.mrb[0].mxu0
        %v2190 = vpop.f32.mrb[0].mxu0
        %v2191 = vpop.f32.mrb[0].mxu0
        %2192 = vdwg.mxu0
        %v2193 = vpack.c.bf16 %v2188, %v2188
        %2195 = vrot.lane.b32.xlu0 %v2086, 120
        %v2196 = vpop.permute.xlu0 %2195
        %2198 = vrot.lane.b32.xlu0 %v2087, 120
        %v2199 = vpop.permute.xlu0 %2198
        %v2201 = vsel %vm1227, %v2196, 0
        %v2204 = vsel %vm1227, %v2199, 0
        %2206 = vmatprep.subr.bf16.mxu0 0
        %2207 = vmatpush1.bf16.xpose.msra.mxu0 %v2204
        %2208 = vmatprep.subr.bf16.mxu0 0
        %2209 = vmatpush1.bf16.xpose.msra.mxu0 0
        %2210 = vmatprep.subr.bf16.mxu0 0
        %2211 = vmatpush1.bf16.xpose.msra.mxu0 0
        %2212 = vmatprep.subr.bf16.mxu0 0
        %2213 = vmatpush1.bf16.xpose.msra.mxu0 0
        %2214 = vmatprep.subr.bf16.mxu0 0
        %2215 = vmatpush1.bf16.xpose.msra.mxu0 0
        %2216 = vmatprep.subr.bf16.mxu0 0
        %2217 = vmatpush1.bf16.xpose.msra.mxu0 0
        %2218 = vmatprep.subr.bf16.mxu0 0
        %2219 = vmatpush1.bf16.xpose.msra.mxu0 0
        %2220 = vmatprep.subr.bf16.mxu0 0
        %2221 = vmatpush1.bf16.xpose.msra.mxu0 0
        %2222 = vmatprep.subr.bf16.mxu0 0
        %2223 = vmatpush1.bf16.xpose.msra.mxu0 0
        %2224 = vmatprep.subr.bf16.mxu0 0
        %2225 = vmatpush1.bf16.xpose.msra.mxu0 0
        %2226 = vmatprep.subr.bf16.mxu0 0
        %2227 = vmatpush1.bf16.xpose.msra.mxu0 0
        %2228 = vmatprep.subr.bf16.mxu0 0
        %2229 = vmatpush1.bf16.xpose.msra.mxu0 0
        %2230 = vmatprep.subr.bf16.mxu0 0
        %2231 = vmatpush1.bf16.xpose.msra.mxu0 0
        %2232 = vmatprep.subr.bf16.mxu0 0
        %2233 = vmatpush1.bf16.xpose.msra.mxu0 0
        %2234 = vmatprep.subr.bf16.mxu0 0
        %2235 = vmatpush1.bf16.xpose.msra.mxu0 0
        %2236 = vmatprep.subr.bf16.mxu0 0
        %2237 = vmatpush1.bf16.xpose.msra.mxu0 0
        %2238 = vmatprep.mubr.bf16.mxu0 0
        %2239 = vmatmul.mubr.bf16.gmra.mrb[0].mxu0 %v2201
        %v2240 = vpop.f32.mrb[0].mxu0
        %v2241 = vadd.f32 0.0, %v2240
        %v2242 = vpop.f32.mrb[0].mxu0
        %v2243 = vpop.f32.mrb[0].mxu0
        %v2244 = vpop.f32.mrb[0].mxu0
        %2245 = vdwg.mxu0
        %v2246 = vsel %vm1227, %v2241, -inf
        %2247 = vmax.xlane.f32.xlu0 %v2246
        %v2248 = vpop.xlane.xlu0 %2247
        %v2249 = vsub.f32 %v2241, %v2248
        %v2250 = vmul.f32 %v2249, 1.442695
        %v2251 = vpow.pop %v2250
        %v2252 = vsel %vm1227, %v2251, 0.0
        %2253 = vadd.xlane.f32.xlu0 %v2252
        %v2254 = vpop.xlane.xlu0 %2253
        %v2255 = vrcp.pop %v2254
        %v2256 = vmul.f32 %v2251, %v2255
        %v2257 = vpack.c.bf16 %v2256, %v2256
        %2259 = vrot.lane.b32.xlu0 %v2088, 120
        %v2260 = vpop.permute.xlu0 %2259
        %v2262 = vsel %vm1227, %v2257, 0
        %v2265 = vsel %vm1289, %v2260, 0
        %2267 = vmatprep.subr.bf16.mxu0 0
        %2268 = vmatpush1.bf16.msra.mxu0 %v2265
        %2269 = vmatprep.subr.bf16.mxu0 0
        %2270 = vmatpush1.bf16.msra.mxu0 0
        %2271 = vmatprep.subr.bf16.mxu0 0
        %2272 = vmatpush1.bf16.msra.mxu0 0
        %2273 = vmatprep.subr.bf16.mxu0 0
        %2274 = vmatpush1.bf16.msra.mxu0 0
        %2275 = vmatprep.subr.bf16.mxu0 0
        %2276 = vmatpush1.bf16.msra.mxu0 0
        %2277 = vmatprep.subr.bf16.mxu0 0
        %2278 = vmatpush1.bf16.msra.mxu0 0
        %2279 = vmatprep.subr.bf16.mxu0 0
        %2280 = vmatpush1.bf16.msra.mxu0 0
        %2281 = vmatprep.subr.bf16.mxu0 0
        %2282 = vmatpush1.bf16.msra.mxu0 0
        %2283 = vmatprep.subr.bf16.mxu0 0
        %2284 = vmatpush1.bf16.msra.mxu0 0
        %2285 = vmatprep.subr.bf16.mxu0 0
        %2286 = vmatpush1.bf16.msra.mxu0 0
        %2287 = vmatprep.subr.bf16.mxu0 0
        %2288 = vmatpush1.bf16.msra.mxu0 0
        %2289 = vmatprep.subr.bf16.mxu0 0
        %2290 = vmatpush1.bf16.msra.mxu0 0
        %2291 = vmatprep.subr.bf16.mxu0 0
        %2292 = vmatpush1.bf16.msra.mxu0 0
        %2293 = vmatprep.subr.bf16.mxu0 0
        %2294 = vmatpush1.bf16.msra.mxu0 0
        %2295 = vmatprep.subr.bf16.mxu0 0
        %2296 = vmatpush1.bf16.msra.mxu0 0
        %2297 = vmatprep.subr.bf16.mxu0 0
        %2298 = vmatpush1.bf16.msra.mxu0 0
        %2299 = vmatprep.mubr.bf16.mxu0 0
        %2300 = vmatmul.mubr.bf16.gmra.mrb[0].mxu0 %v2262
        %v2301 = vpop.f32.mrb[0].mxu0
        %v2302 = vadd.f32 0.0, %v2301
        %v2303 = vpop.f32.mrb[0].mxu0
        %v2304 = vpop.f32.mrb[0].mxu0
        %v2305 = vpop.f32.mrb[0].mxu0
        %2306 = vdwg.mxu0
        %v2307 = vpack.c.bf16 %v2302, %v2302
        %v2309 = vsel %vm1227, %v2307, 0
        %v2312 = vsel %vm1289, %v2082, 0
        %2314 = vmatprep.subr.bf16.mxu0 0
        %2315 = vmatpush1.bf16.msra.mxu0 %v2312
        %2316 = vmatprep.subr.bf16.mxu0 0
        %2317 = vmatpush1.bf16.msra.mxu0 0
        %2318 = vmatprep.subr.bf16.mxu0 0
        %2319 = vmatpush1.bf16.msra.mxu0 0
        %2320 = vmatprep.subr.bf16.mxu0 0
        %2321 = vmatpush1.bf16.msra.mxu0 0
        %2322 = vmatprep.subr.bf16.mxu0 0
        %2323 = vmatpush1.bf16.msra.mxu0 0
        %2324 = vmatprep.subr.bf16.mxu0 0
        %2325 = vmatpush1.bf16.msra.mxu0 0
        %2326 = vmatprep.subr.bf16.mxu0 0
        %2327 = vmatpush1.bf16.msra.mxu0 0
        %2328 = vmatprep.subr.bf16.mxu0 0
        %2329 = vmatpush1.bf16.msra.mxu0 0
        %2330 = vmatprep.subr.bf16.mxu0 0
        %2331 = vmatpush1.bf16.msra.mxu0 0
        %2332 = vmatprep.subr.bf16.mxu0 0
        %2333 = vmatpush1.bf16.msra.mxu0 0
        %2334 = vmatprep.subr.bf16.mxu0 0
        %2335 = vmatpush1.bf16.msra.mxu0 0
        %2336 = vmatprep.subr.bf16.mxu0 0
        %2337 = vmatpush1.bf16.msra.mxu0 0
        %2338 = vmatprep.subr.bf16.mxu0 0
        %2339 = vmatpush1.bf16.msra.mxu0 0
        %2340 = vmatprep.subr.bf16.mxu0 0
        %2341 = vmatpush1.bf16.msra.mxu0 0
        %2342 = vmatprep.subr.bf16.mxu0 0
        %2343 = vmatpush1.bf16.msra.mxu0 0
        %2344 = vmatprep.subr.bf16.mxu0 0
        %2345 = vmatpush1.bf16.msra.mxu0 0
        %2346 = vmatprep.mubr.bf16.mxu0 0
        %2347 = vmatmul.mubr.bf16.gmra.mrb[0].mxu0 %v2309
        %v2348 = vpop.f32.mrb[0].mxu0
        %v2349 = vadd.f32 0.0, %v2348
        %v2350 = vpop.f32.mrb[0].mxu0
        %v2351 = vpop.f32.mrb[0].mxu0
        %v2352 = vpop.f32.mrb[0].mxu0
        %2353 = vdwg.mxu0
        %v2355 = vsel %vm1227, %v2193, 0
        %v2358 = vsel %vm1289, %v2081, 0
        %2360 = vmatprep.subr.bf16.mxu0 0
        %2361 = vmatpush1.bf16.msra.mxu0 %v2358
        %2362 = vmatprep.subr.bf16.mxu0 0
        %2363 = vmatpush1.bf16.msra.mxu0 0
        %2364 = vmatprep.subr.bf16.mxu0 0
        %2365 = vmatpush1.bf16.msra.mxu0 0
        %2366 = vmatprep.subr.bf16.mxu0 0
        %2367 = vmatpush1.bf16.msra.mxu0 0
        %2368 = vmatprep.subr.bf16.mxu0 0
        %2369 = vmatpush1.bf16.msra.mxu0 0
        %2370 = vmatprep.subr.bf16.mxu0 0
        %2371 = vmatpush1.bf16.msra.mxu0 0
        %2372 = vmatprep.subr.bf16.mxu0 0
        %2373 = vmatpush1.bf16.msra.mxu0 0
        %2374 = vmatprep.subr.bf16.mxu0 0
        %2375 = vmatpush1.bf16.msra.mxu0 0
        %2376 = vmatprep.subr.bf16.mxu0 0
        %2377 = vmatpush1.bf16.msra.mxu0 0
        %2378 = vmatprep.subr.bf16.mxu0 0
        %2379 = vmatpush1.bf16.msra.mxu0 0
        %2380 = vmatprep.subr.bf16.mxu0 0
        %2381 = vmatpush1.bf16.msra.mxu0 0
        %2382 = vmatprep.subr.bf16.mxu0 0
        %2383 = vmatpush1.bf16.msra.mxu0 0
        %2384 = vmatprep.subr.bf16.mxu0 0
        %2385 = vmatpush1.bf16.msra.mxu0 0
        %2386 = vmatprep.subr.bf16.mxu0 0
        %2387 = vmatpush1.bf16.msra.mxu0 0
        %2388 = vmatprep.subr.bf16.mxu0 0
        %2389 = vmatpush1.bf16.msra.mxu0 0
        %2390 = vmatprep.subr.bf16.mxu0 0
        %2391 = vmatpush1.bf16.msra.mxu0 0
        %2392 = vmatprep.mubr.bf16.mxu0 0
        %2393 = vmatmul.mubr.bf16.gmra.mrb[0].mxu0 %v2355
        %v2394 = vpop.f32.mrb[0].mxu0
        %v2395 = vadd.f32 %v2349, %v2394
        %v2396 = vpop.f32.mrb[0].mxu0
        %v2397 = vpop.f32.mrb[0].mxu0
        %v2398 = vpop.f32.mrb[0].mxu0
        %2399 = vdwg.mxu0
        %2400 = vrot.lane.b32.xlu0 %v2086, 112
        %v2401 = vpop.permute.xlu0 %2400
        %2402 = vrot.lane.b32.xlu0 %v2087, 112
        %v2403 = vpop.permute.xlu0 %2402
        %v2405 = vsel %vm1227, %v2401, 0
        %v2408 = vsel %vm1227, %v2403, 0
        %2410 = vmatprep.subr.bf16.mxu0 0
        %2411 = vmatpush1.bf16.xpose.msra.mxu0 %v2408
        %2412 = vmatprep.subr.bf16.mxu0 0
        %2413 = vmatpush1.bf16.xpose.msra.mxu0 0
        %2414 = vmatprep.subr.bf16.mxu0 0
        %2415 = vmatpush1.bf16.xpose.msra.mxu0 0
        %2416 = vmatprep.subr.bf16.mxu0 0
        %2417 = vmatpush1.bf16.xpose.msra.mxu0 0
        %2418 = vmatprep.subr.bf16.mxu0 0
        %2419 = vmatpush1.bf16.xpose.msra.mxu0 0
        %2420 = vmatprep.subr.bf16.mxu0 0
        %2421 = vmatpush1.bf16.xpose.msra.mxu0 0
        %2422 = vmatprep.subr.bf16.mxu0 0
        %2423 = vmatpush1.bf16.xpose.msra.mxu0 0
        %2424 = vmatprep.subr.bf16.mxu0 0
        %2425 = vmatpush1.bf16.xpose.msra.mxu0 0
        %2426 = vmatprep.subr.bf16.mxu0 0
        %2427 = vmatpush1.bf16.xpose.msra.mxu0 0
        %2428 = vmatprep.subr.bf16.mxu0 0
        %2429 = vmatpush1.bf16.xpose.msra.mxu0 0
        %2430 = vmatprep.subr.bf16.mxu0 0
        %2431 = vmatpush1.bf16.xpose.msra.mxu0 0
        %2432 = vmatprep.subr.bf16.mxu0 0
        %2433 = vmatpush1.bf16.xpose.msra.mxu0 0
        %2434 = vmatprep.subr.bf16.mxu0 0
        %2435 = vmatpush1.bf16.xpose.msra.mxu0 0
        %2436 = vmatprep.subr.bf16.mxu0 0
        %2437 = vmatpush1.bf16.xpose.msra.mxu0 0
        %2438 = vmatprep.subr.bf16.mxu0 0
        %2439 = vmatpush1.bf16.xpose.msra.mxu0 0
        %2440 = vmatprep.subr.bf16.mxu0 0
        %2441 = vmatpush1.bf16.xpose.msra.mxu0 0
        %2442 = vmatprep.mubr.bf16.mxu0 0
        %2443 = vmatmul.mubr.bf16.gmra.mrb[0].mxu0 %v2405
        %v2444 = vpop.f32.mrb[0].mxu0
        %v2445 = vadd.f32 0.0, %v2444
        %v2446 = vpop.f32.mrb[0].mxu0
        %v2447 = vpop.f32.mrb[0].mxu0
        %v2448 = vpop.f32.mrb[0].mxu0
        %2449 = vdwg.mxu0
        %v2450 = vsel %vm1227, %v2445, -inf
        %2451 = vmax.xlane.f32.xlu0 %v2450
        %v2452 = vpop.xlane.xlu0 %2451
        %v2453 = vsub.f32 %v2445, %v2452
        %v2454 = vmul.f32 %v2453, 1.442695
        %v2455 = vpow.pop %v2454
        %v2456 = vsel %vm1227, %v2455, 0.0
        %2457 = vadd.xlane.f32.xlu0 %v2456
        %v2458 = vpop.xlane.xlu0 %2457
        %v2459 = vrcp.pop %v2458
        %v2460 = vmul.f32 %v2455, %v2459
        %v2461 = vpack.c.bf16 %v2460, %v2460
        %2462 = vrot.lane.b32.xlu0 %v2088, 112
        %v2463 = vpop.permute.xlu0 %2462
        %v2465 = vsel %vm1227, %v2461, 0
        %v2468 = vsel %vm1289, %v2463, 0
        %2470 = vmatprep.subr.bf16.mxu0 0
        %2471 = vmatpush1.bf16.msra.mxu0 %v2468
        %2472 = vmatprep.subr.bf16.mxu0 0
        %2473 = vmatpush1.bf16.msra.mxu0 0
        %2474 = vmatprep.subr.bf16.mxu0 0
        %2475 = vmatpush1.bf16.msra.mxu0 0
        %2476 = vmatprep.subr.bf16.mxu0 0
        %2477 = vmatpush1.bf16.msra.mxu0 0
        %2478 = vmatprep.subr.bf16.mxu0 0
        %2479 = vmatpush1.bf16.msra.mxu0 0
        %2480 = vmatprep.subr.bf16.mxu0 0
        %2481 = vmatpush1.bf16.msra.mxu0 0
        %2482 = vmatprep.subr.bf16.mxu0 0
        %2483 = vmatpush1.bf16.msra.mxu0 0
        %2484 = vmatprep.subr.bf16.mxu0 0
        %2485 = vmatpush1.bf16.msra.mxu0 0
        %2486 = vmatprep.subr.bf16.mxu0 0
        %2487 = vmatpush1.bf16.msra.mxu0 0
        %2488 = vmatprep.subr.bf16.mxu0 0
        %2489 = vmatpush1.bf16.msra.mxu0 0
        %2490 = vmatprep.subr.bf16.mxu0 0
        %2491 = vmatpush1.bf16.msra.mxu0 0
        %2492 = vmatprep.subr.bf16.mxu0 0
        %2493 = vmatpush1.bf16.msra.mxu0 0
        %2494 = vmatprep.subr.bf16.mxu0 0
        %2495 = vmatpush1.bf16.msra.mxu0 0
        %2496 = vmatprep.subr.bf16.mxu0 0
        %2497 = vmatpush1.bf16.msra.mxu0 0
        %2498 = vmatprep.subr.bf16.mxu0 0
        %2499 = vmatpush1.bf16.msra.mxu0 0
        %2500 = vmatprep.subr.bf16.mxu0 0
        %2501 = vmatpush1.bf16.msra.mxu0 0
        %2502 = vmatprep.mubr.bf16.mxu0 0
        %2503 = vmatmul.mubr.bf16.gmra.mrb[0].mxu0 %v2465
        %v2504 = vpop.f32.mrb[0].mxu0
        %v2505 = vadd.f32 0.0, %v2504
        %v2506 = vpop.f32.mrb[0].mxu0
        %v2507 = vpop.f32.mrb[0].mxu0
        %v2508 = vpop.f32.mrb[0].mxu0
        %2509 = vdwg.mxu0
        %v2510 = vpack.c.bf16 %v2505, %v2505
        %v2512 = vsel %vm1227, %v2510, 0
        %v2515 = vsel %vm1289, %v2083, 0
        %2517 = vmatprep.subr.bf16.mxu0 0
        %2518 = vmatpush1.bf16.msra.mxu0 %v2515
        %2519 = vmatprep.subr.bf16.mxu0 0
        %2520 = vmatpush1.bf16.msra.mxu0 0
        %2521 = vmatprep.subr.bf16.mxu0 0
        %2522 = vmatpush1.bf16.msra.mxu0 0
        %2523 = vmatprep.subr.bf16.mxu0 0
        %2524 = vmatpush1.bf16.msra.mxu0 0
        %2525 = vmatprep.subr.bf16.mxu0 0
        %2526 = vmatpush1.bf16.msra.mxu0 0
        %2527 = vmatprep.subr.bf16.mxu0 0
        %2528 = vmatpush1.bf16.msra.mxu0 0
        %2529 = vmatprep.subr.bf16.mxu0 0
        %2530 = vmatpush1.bf16.msra.mxu0 0
        %2531 = vmatprep.subr.bf16.mxu0 0
        %2532 = vmatpush1.bf16.msra.mxu0 0
        %2533 = vmatprep.subr.bf16.mxu0 0
        %2534 = vmatpush1.bf16.msra.mxu0 0
        %2535 = vmatprep.subr.bf16.mxu0 0
        %2536 = vmatpush1.bf16.msra.mxu0 0
        %2537 = vmatprep.subr.bf16.mxu0 0
        %2538 = vmatpush1.bf16.msra.mxu0 0
        %2539 = vmatprep.subr.bf16.mxu0 0
        %2540 = vmatpush1.bf16.msra.mxu0 0
        %2541 = vmatprep.subr.bf16.mxu0 0
        %2542 = vmatpush1.bf16.msra.mxu0 0
        %2543 = vmatprep.subr.bf16.mxu0 0
        %2544 = vmatpush1.bf16.msra.mxu0 0
        %2545 = vmatprep.subr.bf16.mxu0 0
        %2546 = vmatpush1.bf16.msra.mxu0 0
        %2547 = vmatprep.subr.bf16.mxu0 0
        %2548 = vmatpush1.bf16.msra.mxu0 0
        %2549 = vmatprep.mubr.bf16.mxu0 0
        %2550 = vmatmul.mubr.bf16.gmra.mrb[0].mxu0 %v2512
        %v2551 = vpop.f32.mrb[0].mxu0
        %v2552 = vadd.f32 0.0, %v2551
        %v2553 = vpop.f32.mrb[0].mxu0
        %v2554 = vpop.f32.mrb[0].mxu0
        %v2555 = vpop.f32.mrb[0].mxu0
        %2556 = vdwg.mxu0
        %v2557 = vadd.f32 %v2395, %v2552
        %2558 = vrot.lane.b32.xlu0 %v2086, 104
        %v2559 = vpop.permute.xlu0 %2558
        %2560 = vrot.lane.b32.xlu0 %v2087, 104
        %v2561 = vpop.permute.xlu0 %2560
        %v2563 = vsel %vm1227, %v2559, 0
        %v2566 = vsel %vm1227, %v2561, 0
        %2568 = vmatprep.subr.bf16.mxu0 0
        %2569 = vmatpush1.bf16.xpose.msra.mxu0 %v2566
        %2570 = vmatprep.subr.bf16.mxu0 0
        %2571 = vmatpush1.bf16.xpose.msra.mxu0 0
        %2572 = vmatprep.subr.bf16.mxu0 0
        %2573 = vmatpush1.bf16.xpose.msra.mxu0 0
        %2574 = vmatprep.subr.bf16.mxu0 0
        %2575 = vmatpush1.bf16.xpose.msra.mxu0 0
        %2576 = vmatprep.subr.bf16.mxu0 0
        %2577 = vmatpush1.bf16.xpose.msra.mxu0 0
        %2578 = vmatprep.subr.bf16.mxu0 0
        %2579 = vmatpush1.bf16.xpose.msra.mxu0 0
        %2580 = vmatprep.subr.bf16.mxu0 0
        %2581 = vmatpush1.bf16.xpose.msra.mxu0 0
        %2582 = vmatprep.subr.bf16.mxu0 0
        %2583 = vmatpush1.bf16.xpose.msra.mxu0 0
        %2584 = vmatprep.subr.bf16.mxu0 0
        %2585 = vmatpush1.bf16.xpose.msra.mxu0 0
        %2586 = vmatprep.subr.bf16.mxu0 0
        %2587 = vmatpush1.bf16.xpose.msra.mxu0 0
        %2588 = vmatprep.subr.bf16.mxu0 0
        %2589 = vmatpush1.bf16.xpose.msra.mxu0 0
        %2590 = vmatprep.subr.bf16.mxu0 0
        %2591 = vmatpush1.bf16.xpose.msra.mxu0 0
        %2592 = vmatprep.subr.bf16.mxu0 0
        %2593 = vmatpush1.bf16.xpose.msra.mxu0 0
        %2594 = vmatprep.subr.bf16.mxu0 0
        %2595 = vmatpush1.bf16.xpose.msra.mxu0 0
        %2596 = vmatprep.subr.bf16.mxu0 0
        %2597 = vmatpush1.bf16.xpose.msra.mxu0 0
        %2598 = vmatprep.subr.bf16.mxu0 0
        %2599 = vmatpush1.bf16.xpose.msra.mxu0 0
        %2600 = vmatprep.mubr.bf16.mxu0 0
        %2601 = vmatmul.mubr.bf16.gmra.mrb[0].mxu0 %v2563
        %v2602 = vpop.f32.mrb[0].mxu0
        %v2603 = vadd.f32 0.0, %v2602
        %v2604 = vpop.f32.mrb[0].mxu0
        %v2605 = vpop.f32.mrb[0].mxu0
        %v2606 = vpop.f32.mrb[0].mxu0
        %2607 = vdwg.mxu0
        %v2608 = vsel %vm1227, %v2603, -inf
        %2609 = vmax.xlane.f32.xlu0 %v2608
        %v2610 = vpop.xlane.xlu0 %2609
        %v2611 = vsub.f32 %v2603, %v2610
        %v2612 = vmul.f32 %v2611, 1.442695
        %v2613 = vpow.pop %v2612
        %v2614 = vsel %vm1227, %v2613, 0.0
        %2615 = vadd.xlane.f32.xlu0 %v2614
        %v2616 = vpop.xlane.xlu0 %2615
        %v2617 = vrcp.pop %v2616
        %v2618 = vmul.f32 %v2613, %v2617
        %v2619 = vpack.c.bf16 %v2618, %v2618
        %2620 = vrot.lane.b32.xlu0 %v2088, 104
        %v2621 = vpop.permute.xlu0 %2620
        %v2623 = vsel %vm1227, %v2619, 0
        %v2626 = vsel %vm1289, %v2621, 0
        %2628 = vmatprep.subr.bf16.mxu0 0
        %2629 = vmatpush1.bf16.msra.mxu0 %v2626
        %2630 = vmatprep.subr.bf16.mxu0 0
        %2631 = vmatpush1.bf16.msra.mxu0 0
        %2632 = vmatprep.subr.bf16.mxu0 0
        %2633 = vmatpush1.bf16.msra.mxu0 0
        %2634 = vmatprep.subr.bf16.mxu0 0
        %2635 = vmatpush1.bf16.msra.mxu0 0
        %2636 = vmatprep.subr.bf16.mxu0 0
        %2637 = vmatpush1.bf16.msra.mxu0 0
        %2638 = vmatprep.subr.bf16.mxu0 0
        %2639 = vmatpush1.bf16.msra.mxu0 0
        %2640 = vmatprep.subr.bf16.mxu0 0
        %2641 = vmatpush1.bf16.msra.mxu0 0
        %2642 = vmatprep.subr.bf16.mxu0 0
        %2643 = vmatpush1.bf16.msra.mxu0 0
        %2644 = vmatprep.subr.bf16.mxu0 0
        %2645 = vmatpush1.bf16.msra.mxu0 0
        %2646 = vmatprep.subr.bf16.mxu0 0
        %2647 = vmatpush1.bf16.msra.mxu0 0
        %2648 = vmatprep.subr.bf16.mxu0 0
        %2649 = vmatpush1.bf16.msra.mxu0 0
        %2650 = vmatprep.subr.bf16.mxu0 0
        %2651 = vmatpush1.bf16.msra.mxu0 0
        %2652 = vmatprep.subr.bf16.mxu0 0
        %2653 = vmatpush1.bf16.msra.mxu0 0
        %2654 = vmatprep.subr.bf16.mxu0 0
        %2655 = vmatpush1.bf16.msra.mxu0 0
        %2656 = vmatprep.subr.bf16.mxu0 0
        %2657 = vmatpush1.bf16.msra.mxu0 0
        %2658 = vmatprep.subr.bf16.mxu0 0
        %2659 = vmatpush1.bf16.msra.mxu0 0
        %2660 = vmatprep.mubr.bf16.mxu0 0
        %2661 = vmatmul.mubr.bf16.gmra.mrb[0].mxu0 %v2623
        %v2662 = vpop.f32.mrb[0].mxu0
        %v2663 = vadd.f32 0.0, %v2662
        %v2664 = vpop.f32.mrb[0].mxu0
        %v2665 = vpop.f32.mrb[0].mxu0
        %v2666 = vpop.f32.mrb[0].mxu0
        %2667 = vdwg.mxu0
        %v2668 = vpack.c.bf16 %v2663, %v2663
        %v2670 = vsel %vm1227, %v2668, 0
        %v2673 = vsel %vm1289, %v2084, 0
        %2675 = vmatprep.subr.bf16.mxu0 0
        %2676 = vmatpush1.bf16.msra.mxu0 %v2673
        %2677 = vmatprep.subr.bf16.mxu0 0
        %2678 = vmatpush1.bf16.msra.mxu0 0
        %2679 = vmatprep.subr.bf16.mxu0 0
        %2680 = vmatpush1.bf16.msra.mxu0 0
        %2681 = vmatprep.subr.bf16.mxu0 0
        %2682 = vmatpush1.bf16.msra.mxu0 0
        %2683 = vmatprep.subr.bf16.mxu0 0
        %2684 = vmatpush1.bf16.msra.mxu0 0
        %2685 = vmatprep.subr.bf16.mxu0 0
        %2686 = vmatpush1.bf16.msra.mxu0 0
        %2687 = vmatprep.subr.bf16.mxu0 0
        %2688 = vmatpush1.bf16.msra.mxu0 0
        %2689 = vmatprep.subr.bf16.mxu0 0
        %2690 = vmatpush1.bf16.msra.mxu0 0
        %2691 = vmatprep.subr.bf16.mxu0 0
        %2692 = vmatpush1.bf16.msra.mxu0 0
        %2693 = vmatprep.subr.bf16.mxu0 0
        %2694 = vmatpush1.bf16.msra.mxu0 0
        %2695 = vmatprep.subr.bf16.mxu0 0
        %2696 = vmatpush1.bf16.msra.mxu0 0
        %2697 = vmatprep.subr.bf16.mxu0 0
        %2698 = vmatpush1.bf16.msra.mxu0 0
        %2699 = vmatprep.subr.bf16.mxu0 0
        %2700 = vmatpush1.bf16.msra.mxu0 0
        %2701 = vmatprep.subr.bf16.mxu0 0
        %2702 = vmatpush1.bf16.msra.mxu0 0
        %2703 = vmatprep.subr.bf16.mxu0 0
        %2704 = vmatpush1.bf16.msra.mxu0 0
        %2705 = vmatprep.subr.bf16.mxu0 0
        %2706 = vmatpush1.bf16.msra.mxu0 0
        %2707 = vmatprep.mubr.bf16.mxu0 0
        %2708 = vmatmul.mubr.bf16.gmra.mrb[0].mxu0 %v2670
        %v2709 = vpop.f32.mrb[0].mxu0
        %v2710 = vadd.f32 0.0, %v2709
        %v2711 = vpop.f32.mrb[0].mxu0
        %v2712 = vpop.f32.mrb[0].mxu0
        %v2713 = vpop.f32.mrb[0].mxu0
        %2714 = vdwg.mxu0
        %v2715 = vadd.f32 %v2557, %v2710
        %v2717 = vlaneseq
        %v2718 = vshrl.u32 %v2717, 7
        %v2719 = vsub.s32 0, %v2718
        %v2720 = vrot.slane %v2085, %v2719
        %v2722 = vadd.f32 %v2715, %v2720
        %v2723 = vadd.f32 %v1862, %v2722
        %v2724 = vld [vmem:[%s8] sm:$0x1]
        %v2725 = vld [vmem:[%s9] sm:$0x1]
        %v2726 = vsel %vm1051, %v2723, 0.0
        %2727 = vadd.xlane.f32.xlu0 %v2726
        %v2728 = vpop.xlane.xlu0 %2727
        %v2729 = vmul.f32 %v2728, %v1055
        %v2730 = vsub.f32 %v2723, %v2729
        %v2731 = vmul.f32 %v2730, %v2730
        %v2732 = vsel %vm1051, %v2731, 0.0
        %2733 = vadd.xlane.f32.xlu0 %v2732
        %v2734 = vpop.xlane.xlu0 %2733
        %v2735 = vmul.f32 %v2734, %v1055
        %v2736 = vadd.f32 %v2735, 1e-05
        %v2737 = vrsqrt.pop %v2736
        %v2738 = vmul.f32 %v2730, %v2737
        %v2740 = vlaneseq
        %v2741 = vshrl.u32 %v2740, 7
        %v2742 = vsub.s32 0, %v2741
        %v2743 = vrot.slane %v2724, %v2742
        %v2745 = vmul.f32 %v2738, %v2743
        %v2747 = vlaneseq
        %v2748 = vshrl.u32 %v2747, 7
        %v2749 = vsub.s32 0, %v2748
        %v2750 = vrot.slane %v2725, %v2749
        %v2752 = vadd.f32 %v2745, %v2750
        %v2753 = vld [vmem:[#allocation20] sm:$0xf]
        %v2754 = vld [vmem:[#allocation20 + $0x4] sm:$0xf]
        %v2755 = vld [vmem:[#allocation20 + $0x8] sm:$0xf]
        %v2756 = vld [vmem:[#allocation20 + $0xc] sm:$0xf]
        %v2757 = vld [vmem:[#allocation22] sm:$0x1]
        %v2758 = vpack.c.bf16 %v2752, %v2752
        %v2760 = vlaneseq
        %v2761 = vshrl.u32 %v2760, 7
        %v2762 = vsub.s32 0, %v2761
        %v2763 = vrot.slane %v2757, %v2762
        %v2769 = vunpack.c.l.b16 %v2753
        %v2770 = vunpack.c.l.b16 %v2754
        %v2771 = vunpack.c.l.b16 %v2755
        %v2772 = vunpack.c.l.b16 %v2756
        %v2773 = vpack.c.b16 %v2770, %v2769
        %v2774 = vpack.c.b16 %v2772, %v2771
        %v2778 = vsel %vm1051, %v2758, 0
        %2780 = vmatprep.subr.bf16.mxu0 0
        %2781 = vmatpush1.bf16.msra.mxu0 %v2773
        %2782 = vmatprep.subr.bf16.mxu0 0
        %2783 = vmatpush1.bf16.msra.mxu0 %v2774
        %2784 = vmatprep.subr.bf16.mxu0 0
        %2785 = vmatpush1.bf16.msra.mxu0 0
        %2786 = vmatprep.subr.bf16.mxu0 0
        %2787 = vmatpush1.bf16.msra.mxu0 0
        %2788 = vmatprep.subr.bf16.mxu0 0
        %2789 = vmatpush1.bf16.msra.mxu0 0
        %2790 = vmatprep.subr.bf16.mxu0 0
        %2791 = vmatpush1.bf16.msra.mxu0 0
        %2792 = vmatprep.subr.bf16.mxu0 0
        %2793 = vmatpush1.bf16.msra.mxu0 0
        %2794 = vmatprep.subr.bf16.mxu0 0
        %2795 = vmatpush1.bf16.msra.mxu0 0
        %2796 = vmatprep.subr.bf16.mxu0 0
        %2797 = vmatpush1.bf16.msra.mxu0 0
        %2798 = vmatprep.subr.bf16.mxu0 0
        %2799 = vmatpush1.bf16.msra.mxu0 0
        %2800 = vmatprep.subr.bf16.mxu0 0
        %2801 = vmatpush1.bf16.msra.mxu0 0
        %2802 = vmatprep.subr.bf16.mxu0 0
        %2803 = vmatpush1.bf16.msra.mxu0 0
        %2804 = vmatprep.subr.bf16.mxu0 0
        %2805 = vmatpush1.bf16.msra.mxu0 0
        %2806 = vmatprep.subr.bf16.mxu0 0
        %2807 = vmatpush1.bf16.msra.mxu0 0
        %2808 = vmatprep.subr.bf16.mxu0 0
        %2809 = vmatpush1.bf16.msra.mxu0 0
        %2810 = vmatprep.subr.bf16.mxu0 0
        %2811 = vmatpush1.bf16.msra.mxu0 0
        %2812 = vmatprep.mubr.bf16.mxu0 0
        %2813 = vmatmul.mubr.bf16.gmra.mrb[0].mxu0 %v2778
        %v2814 = vpop.f32.mrb[0].mxu0
        %v2815 = vadd.f32 %v2763, %v2814
        %v2816 = vpop.f32.mrb[0].mxu0
        %v2817 = vpop.f32.mrb[0].mxu0
        %v2818 = vpop.f32.mrb[0].mxu0
        %2819 = vdwg.mxu0
        %v2820 = vmax.f32 %v2815, 0.0
        %v2821 = vld [vmem:[%s26] sm:$0xf]
        %v2822 = vld [vmem:[%s26 + $0x4] sm:$0xf]
        %v2823 = vld [vmem:[%s26 + $0x8] sm:$0xf]
        %v2824 = vld [vmem:[%s26 + $0xc] sm:$0xf]
        %v2825 = vld [vmem:[%s26 + $0x10] sm:$0xf]
        %v2826 = vld [vmem:[%s26 + $0x14] sm:$0xf]
        %v2827 = vld [vmem:[%s26 + $0x18] sm:$0xf]
        %v2828 = vld [vmem:[%s26 + $0x1c] sm:$0xf]
        %v2829 = vld [vmem:[#allocation23] sm:$0x1]
        %v2830 = vpack.c.bf16 %v2820, %v2820
        %v2832 = vlaneseq
        %v2833 = vshrl.u32 %v2832, 7
        %v2834 = vsub.s32 0, %v2833
        %v2835 = vrot.slane %v2829, %v2834
        %v2845 = vunpack.c.l.b16 %v2821
        %v2846 = vunpack.c.l.b16 %v2822
        %v2847 = vunpack.c.l.b16 %v2823
        %v2848 = vunpack.c.l.b16 %v2824
        %v2849 = vunpack.c.l.b16 %v2825
        %v2850 = vunpack.c.l.b16 %v2826
        %v2851 = vunpack.c.l.b16 %v2827
        %v2852 = vunpack.c.l.b16 %v2828
        %v2853 = vpack.c.b16 %v2846, %v2845
        %v2854 = vpack.c.b16 %v2848, %v2847
        %v2855 = vpack.c.b16 %v2850, %v2849
        %v2856 = vpack.c.b16 %v2852, %v2851
        %vm2861 = vcmask 523264
        %v2863 = vsel %vm2861, %v2830, 0
        %2865 = vmatprep.subr.bf16.mxu0 0
        %2866 = vmatpush1.bf16.msra.mxu0 %v2853
        %2867 = vmatprep.subr.bf16.mxu0 0
        %2868 = vmatpush1.bf16.msra.mxu0 %v2854
        %2869 = vmatprep.subr.bf16.mxu0 0
        %2870 = vmatpush1.bf16.msra.mxu0 %v2855
        %2871 = vmatprep.subr.bf16.mxu0 0
        %2872 = vmatpush1.bf16.msra.mxu0 %v2856
        %2873 = vmatprep.subr.bf16.mxu0 0
        %2874 = vmatpush1.bf16.msra.mxu0 0
        %2875 = vmatprep.subr.bf16.mxu0 0
        %2876 = vmatpush1.bf16.msra.mxu0 0
        %2877 = vmatprep.subr.bf16.mxu0 0
        %2878 = vmatpush1.bf16.msra.mxu0 0
        %2879 = vmatprep.subr.bf16.mxu0 0
        %2880 = vmatpush1.bf16.msra.mxu0 0
        %2881 = vmatprep.subr.bf16.mxu0 0
        %2882 = vmatpush1.bf16.msra.mxu0 0
        %2883 = vmatprep.subr.bf16.mxu0 0
        %2884 = vmatpush1.bf16.msra.mxu0 0
        %2885 = vmatprep.subr.bf16.mxu0 0
        %2886 = vmatpush1.bf16.msra.mxu0 0
        %2887 = vmatprep.subr.bf16.mxu0 0
        %2888 = vmatpush1.bf16.msra.mxu0 0
        %2889 = vmatprep.subr.bf16.mxu0 0
        %2890 = vmatpush1.bf16.msra.mxu0 0
        %2891 = vmatprep.subr.bf16.mxu0 0
        %2892 = vmatpush1.bf16.msra.mxu0 0
        %2893 = vmatprep.subr.bf16.mxu0 0
        %2894 = vmatpush1.bf16.msra.mxu0 0
        %2895 = vmatprep.subr.bf16.mxu0 0
        %2896 = vmatpush1.bf16.msra.mxu0 0
        %2897 = vmatprep.mubr.bf16.mxu0 0
        %2898 = vmatmul.mubr.bf16.gmra.mrb[0].mxu0 %v2863
        %v2899 = vpop.f32.mrb[0].mxu0
        %v2900 = vadd.f32 %v2835, %v2899
        %v2901 = vpop.f32.mrb[0].mxu0
        %v2902 = vpop.f32.mrb[0].mxu0
        %v2903 = vpop.f32.mrb[0].mxu0
        %2904 = vdwg.mxu0
        %v2905 = vadd.f32 %v2723, %v2900
        %2906 = vst.msk [vmem:[%s1035] sm:$0xff] %vm1051, %v2905
        %s2907 = sand.u32 %s656, 1
        %s2908 = scalar_lea.sflag [#allocation4], %s2907
        %s2909 = sand.u32 %s656, 1
        %s2910 = smul.addr %s2909, 8
        %s2911 = scalar_lea.vmem [#allocation25], %s2910
        // Predicated region
        $region189: #{_lambda_.1} parent=131 // pred_check
          %p2912 = pneg %p666
        $region190: #{_lambda_.1} parent=131 // pred_check_branch
          %2914 = sbr.rel (%p2912) target = $region192
        $region191: #{_lambda_.1} parent=131 // pred_region
          %s2916 = ssub.s32 128, 128
          %2917 = vsyncadd %s2908, %s2916
          %s2918 = smul.addr %s50, 128
          %s2919 = scalar_lea.hbm %s28, %s2918
          %s2921 = sshll.u32 %s2911, 4
          %s2922 = int_to_ptr.vmem [resolvable:$true] %s2921
          %2924 = dma.vmem_to_hbm [thread:$0]  %s2922, 128, %s2919, %s2908
        $region192: #{_lambda_.1} parent=131 // pred_fallthru
          _
      $region132: #{_lambda_.1} parent=5 // pred_fallthru
        _
      %p2925 = scmp.le.s32.totalorder 2, %s45
      // Predicated region
      $region193: #{_lambda_.1} parent=5 // pred_check
        %p2926 = pneg %p2925
      $region194: #{_lambda_.1} parent=5 // pred_check_branch
        %2928 = sbr.rel (%p2926) target = $region196
      $region195: #{_lambda_.1} parent=5 // pred_region
        %s2929 = ssub.s32 %s45, 2
        // Predicated region
        $region197: #{_lambda_.1} parent=195 // pred_check
          %p2930 = pneg %p672
        $region198: #{_lambda_.1} parent=195 // pred_check_branch
          %2932 = sbr.rel (%p2930) target = $region200
        $region199: #{_lambda_.1} parent=195 // pred_region
          %s2933 = sand.u32 %s657, 1
          %s2934 = scalar_lea.sflag [#allocation4], %s2933
          %s2935 = sand.u32 %s657, 1
          %s2936 = smul.addr %s2935, 8
          %s2937 = scalar_lea.vmem [#allocation25], %s2936
          %2938 = dma.done %s2934, 128
        $region200: #{_lambda_.1} parent=195 // pred_fallthru
          _
      $region196: #{_lambda_.1} parent=5 // pred_fallthru
        _
    $region6: #{_lambda_.1} parent=1 // loop_footer
      %s49 = sadd.s32 1, %s45
    $region7: #{_lambda_.1} parent=1 // loop_footer_branch
      %44 = sbr.rel target = $region3
    $region8: #{_lambda_.1} parent=1 // loop_exit
      _
    %2939 = vsyncpa [#allocation3], 1
    %s2940 = scalar_lea.sflag [#allocation3], 1
    %2941 = vsyncpa %s2940, 1
    %2942 = vsyncpa [#allocation6], 1
    %2943 = vsyncpa [#allocation9], 1
    %2944 = vsyncpa [#allocation12], 1
    %2945 = vsyncpa [#allocation15], 1
    %2946 = vsyncpa [#allocation18], 1
    %2947 = vsyncpa [#allocation21], 1
    %2948 = vsyncpa [#allocation24], 1
    %2949 = vsyncpa [#allocation4], 1
    %s2950 = scalar_lea.sflag [#allocation4], 1
    %2951 = vsyncpa %s2950, 1

</llo_original>
